<compile_context>
chip_gen: v6e
topology: v6e:2x2x1
jax: 0.10.0
libtpu: 0.0.40
codegen_flags: <defaults>
</compile_context>

<pallas_src>
import functools
import math

import jax
import jax.numpy as jnp
from jax.experimental import pallas as pl
from jax.experimental.pallas import tpu as pltpu


# ----------------------------------------------------------------------------
# In-kernel building blocks (pure functions on loaded values)
# ----------------------------------------------------------------------------
def _add_layernorm(x, r, gamma, beta, eps):
    """LayerNorm(x + r) over the last dim, f32 statistics."""
    s = x + r
    mean = jnp.mean(s, axis=-1, keepdims=True)
    var = jnp.mean((s - mean) ** 2, axis=-1, keepdims=True)
    return (s - mean) * jax.lax.rsqrt(var + eps) * gamma + beta


def _mha_body(x_q, x_kv, mask, wqkv, wo, *, num_heads, head_dim, self_attn, scale):
    """Multi-head attention for one batch element.

    x_q : (Sq, D) f32   x_kv : (Sk, D) f32   mask : (Sq, Sk) f32 (1.0 = masked)
    wqkv: (D, 3D) bf16 fused [Wq | Wk | Wv]   wo: (D, D) bf16
    Returns (out (Sq, D) f32, scores (H, Sq, Sk) f32).
    """
    D = num_heads * head_dim
    bf16 = jnp.bfloat16

    if self_attn:
        # single fused (Sq, D) @ (D, 3D) projection -> one wide MXU pass
        qkv = jnp.dot(x_q.astype(bf16), wqkv, preferred_element_type=jnp.float32)
        q, k, v = qkv[:, :D], qkv[:, D:2 * D], qkv[:, 2 * D:]
    else:
        q = jnp.dot(x_q.astype(bf16), wqkv[:, :D], preferred_element_type=jnp.float32)
        kv = jnp.dot(x_kv.astype(bf16), wqkv[:, D:], preferred_element_type=jnp.float32)
        k, v = kv[:, :D], kv[:, D:]

    # Head-major (H, S, Dh) operands, built with leading-axis stacking
    # (no in-kernel minor-dim transposes).
    def _split_heads(t):
        return jnp.stack(
            [t[:, h * head_dim:(h + 1) * head_dim] for h in range(num_heads)], axis=0)

    qh = _split_heads(q).astype(bf16)
    kh = _split_heads(k).astype(bf16)
    vh = _split_heads(v).astype(bf16)

    # QK^T for all heads in one batched contraction; K consumed in stored
    # layout (no explicit transpose).
    logits = jnp.einsum('hqd,hkd->hqk', qh, kh, preferred_element_type=jnp.float32)
    logits = logits + mask[None, :, :] * (-1e9)   # mask applied before scaling (as in torch)
    logits = logits * scale
    logits = logits - jnp.max(logits, axis=-1, keepdims=True)
    p = jnp.exp(logits)
    p = p * pl.reciprocal(jnp.sum(p, axis=-1, keepdims=True), approx=True)

    ctx = jnp.einsum('hqk,hkd->hqd', p.astype(bf16), vh,
                     preferred_element_type=jnp.float32)           # (H, Sq, Dh)
    merged = jnp.concatenate([ctx[h] for h in range(num_heads)], axis=-1)  # (Sq, D)
    out = jnp.dot(merged.astype(bf16), wo, preferred_element_type=jnp.float32)
    return out, p


def _ffn_body(x, w1, b1, w2, b2):
    """relu(x @ w1 + b1) @ w2 + b2 with bf16 MXU operands, f32 accumulation."""
    bf16 = jnp.bfloat16
    h = jnp.dot(x.astype(bf16), w1, preferred_element_type=jnp.float32) + b1
    h = jnp.maximum(h, 0.0)
    return jnp.dot(h.astype(bf16), w2, preferred_element_type=jnp.float32) + b2


# ----------------------------------------------------------------------------
# Fused per-layer kernels (grid axis = batch, marked "parallel")
# ----------------------------------------------------------------------------
def _encoder_layer_kernel(x_ref, mask_ref,
                          wqkv_ref, wo_ref, g1_ref, b1_ref,
                          fw1_ref, fb1_ref, fw2_ref, fb2_ref, g2_ref, b2_ref,
                          out_ref, scores_ref,
                          *, num_heads, head_dim, scale, eps):
    x = x_ref[0]                 # (S, D)
    mask = mask_ref[0, 0]        # (S, S)

    attn, p = _mha_body(x, x, mask, wqkv_ref[...], wo_ref[...],
                        num_heads=num_heads, head_dim=head_dim,
                        self_attn=True, scale=scale)
    scores_ref[0] = p            # single (H, S, S) store

    h = _add_layernorm(x, attn, g1_ref[...], b1_ref[...], eps)
    ffn = _ffn_body(h, fw1_ref[...], fb1_ref[...], fw2_ref[...], fb2_ref[...])
    out_ref[0] = _add_layernorm(h, ffn, g2_ref[...], b2_ref[...], eps)


def _decoder_layer_kernel(y_ref, enc_ref, smask_ref, cmask_ref,
                          s_wqkv_ref, s_wo_ref, s_g_ref, s_b_ref,
                          c_wqkv_ref, c_wo_ref, c_g_ref, c_b_ref,
                          fw1_ref, fb1_ref, fw2_ref, fb2_ref, f_g_ref, f_b_ref,
                          out_ref, self_scores_ref, cross_scores_ref,
                          *, num_heads, head_dim, scale, eps):
    y = y_ref[0]                 # (Sd, D)
    enc = enc_ref[0]             # (Se, D)
    smask = smask_ref[0, 0]      # (Sd, Sd)
    cmask = cmask_ref[0, 0]      # (Sd, Se)

    attn, sp = _mha_body(y, y, smask, s_wqkv_ref[...], s_wo_ref[...],
                         num_heads=num_heads, head_dim=head_dim,
                         self_attn=True, scale=scale)
    self_scores_ref[0] = sp
    h = _add_layernorm(y, attn, s_g_ref[...], s_b_ref[...], eps)

    cattn, cp = _mha_body(h, enc, cmask, c_wqkv_ref[...], c_wo_ref[...],
                          num_heads=num_heads, head_dim=head_dim,
                          self_attn=False, scale=scale)
    cross_scores_ref[0] = cp
    h = _add_layernorm(h, cattn, c_g_ref[...], c_b_ref[...], eps)

    ffn = _ffn_body(h, fw1_ref[...], fb1_ref[...], fw2_ref[...], fb2_ref[...])
    out_ref[0] = _add_layernorm(h, ffn, f_g_ref[...], f_b_ref[...], eps)


def _linear_kernel(x_ref, w_ref, b_ref, o_ref):
    o_ref[...] = (jnp.dot(x_ref[...].astype(jnp.bfloat16), w_ref[...],
                          preferred_element_type=jnp.float32) + b_ref[...])


# ----------------------------------------------------------------------------
# pallas_call wrappers
# ----------------------------------------------------------------------------
def _rep_spec(shape):
    """Replicated (grid-invariant) BlockSpec covering the whole array."""
    n = len(shape)
    return pl.BlockSpec(shape, lambda *_: (0,) * n)


def pallas_encoder_layer(x, mask, lw, num_heads, eps):
    B, S, D = x.shape
    F = lw['ffn_w1'].shape[1]
    head_dim = D // num_heads
    kernel = functools.partial(_encoder_layer_kernel, num_heads=num_heads,
                               head_dim=head_dim,
                               scale=1.0 / math.sqrt(head_dim), eps=eps)
    out, scores = pl.pallas_call(
        kernel,
        out_shape=(jax.ShapeDtypeStruct((B, S, D), jnp.float32),
                   jax.ShapeDtypeStruct((B, num_heads, S, S), jnp.float32)),
        grid=(B,),
        in_specs=[
            pl.BlockSpec((1, S, D), lambda b: (b, 0, 0)),
            pl.BlockSpec((1, 1, S, S), lambda b: (b, 0, 0, 0)),
            _rep_spec((D, 3 * D)), _rep_spec((D, D)),
            _rep_spec((1, D)), _rep_spec((1, D)),
            _rep_spec((D, F)), _rep_spec((1, F)),
            _rep_spec((F, D)), _rep_spec((1, D)),
            _rep_spec((1, D)), _rep_spec((1, D)),
        ],
        out_specs=(pl.BlockSpec((1, S, D), lambda b: (b, 0, 0)),
                   pl.BlockSpec((1, num_heads, S, S), lambda b: (b, 0, 0, 0))),
        compiler_params=pltpu.CompilerParams(dimension_semantics=("parallel",)),
    )(x, mask,
      lw['self_wqkv'], lw['self_wo'], lw['self_ln_g'], lw['self_ln_b'],
      lw['ffn_w1'], lw['ffn_b1'], lw['ffn_w2'], lw['ffn_b2'],
      lw['ffn_ln_g'], lw['ffn_ln_b'])
    return out, scores


def pallas_decoder_layer(y, enc_out, self_mask, cross_mask, lw, num_heads, eps):
    B, Sd, D = y.shape
    Se = enc_out.shape[1]
    F = lw['ffn_w1'].shape[1]
    head_dim = D // num_heads
    kernel = functools.partial(_decoder_layer_kernel, num_heads=num_heads,
                               head_dim=head_dim,
                               scale=1.0 / math.sqrt(head_dim), eps=eps)
    out, s_scores, c_scores = pl.pallas_call(
        kernel,
        out_shape=(jax.ShapeDtypeStruct((B, Sd, D), jnp.float32),
                   jax.ShapeDtypeStruct((B, num_heads, Sd, Sd), jnp.float32),
                   jax.ShapeDtypeStruct((B, num_heads, Sd, Se), jnp.float32)),
        grid=(B,),
        in_specs=[
            pl.BlockSpec((1, Sd, D), lambda b: (b, 0, 0)),
            pl.BlockSpec((1, Se, D), lambda b: (b, 0, 0)),
            pl.BlockSpec((1, 1, Sd, Sd), lambda b: (b, 0, 0, 0)),
            pl.BlockSpec((1, 1, Sd, Se), lambda b: (b, 0, 0, 0)),
            _rep_spec((D, 3 * D)), _rep_spec((D, D)),
            _rep_spec((1, D)), _rep_spec((1, D)),
            _rep_spec((D, 3 * D)), _rep_spec((D, D)),
            _rep_spec((1, D)), _rep_spec((1, D)),
            _rep_spec((D, F)), _rep_spec((1, F)),
            _rep_spec((F, D)), _rep_spec((1, D)),
            _rep_spec((1, D)), _rep_spec((1, D)),
        ],
        out_specs=(pl.BlockSpec((1, Sd, D), lambda b: (b, 0, 0)),
                   pl.BlockSpec((1, num_heads, Sd, Sd), lambda b: (b, 0, 0, 0)),
                   pl.BlockSpec((1, num_heads, Sd, Se), lambda b: (b, 0, 0, 0))),
        compiler_params=pltpu.CompilerParams(dimension_semantics=("parallel",)),
    )(y, enc_out, self_mask, cross_mask,
      lw['self_wqkv'], lw['self_wo'], lw['self_ln_g'], lw['self_ln_b'],
      lw['cross_wqkv'], lw['cross_wo'], lw['cross_ln_g'], lw['cross_ln_b'],
      lw['ffn_w1'], lw['ffn_b1'], lw['ffn_w2'], lw['ffn_b2'],
      lw['ffn_ln_g'], lw['ffn_ln_b'])
    return out, s_scores, c_scores


def _pick_tile(total, pref, align):
    """Largest tile <= pref that is a multiple of `align` and divides `total`;
    falls back to the full dimension (always a legal block)."""
    if total <= pref:
        return total
    t = (pref // align) * align
    while t >= align:
        if total % t == 0:
            return t
        t -= align
    return total


def pallas_linear(x, w_bf16, b):
    """Tiled, lane-dense vocab projection: y = x @ W + b."""
    B, S, D = x.shape
    V = w_bf16.shape[1]
    rows = B * S
    x2 = x.reshape(rows, D)
    tm = _pick_tile(rows, 256, 8)
    tn = _pick_tile(V, 1024, 128)
    out = pl.pallas_call(
        _linear_kernel,
        out_shape=jax.ShapeDtypeStruct((rows, V), jnp.float32),
        grid=(rows // tm, V // tn),
        in_specs=[pl.BlockSpec((tm, D), lambda i, j: (i, 0)),
                  pl.BlockSpec((D, tn), lambda i, j: (0, j)),
                  pl.BlockSpec((1, tn), lambda i, j: (0, j))],
        out_specs=pl.BlockSpec((tm, tn), lambda i, j: (i, j)),
        compiler_params=pltpu.CompilerParams(
            dimension_semantics=("parallel", "parallel")),
    )(x2, w_bf16, b)
    return out.reshape(B, S, V)


# ----------------------------------------------------------------------------
# Parameter initialization (deterministic, synthetic)
# ----------------------------------------------------------------------------
def sinusoidal_pos_encoding(max_length, hidden_size):
    position = jnp.arange(max_length, dtype=jnp.float32)[:, None]
    div_term = jnp.exp(jnp.arange(0, hidden_size, 2, dtype=jnp.float32)
                       * (-math.log(10000.0) / hidden_size))
    pe = jnp.zeros((max_length, hidden_size), jnp.float32)
    pe = pe.at[:, 0::2].set(jnp.sin(position * div_term))
    pe = pe.at[:, 1::2].set(jnp.cos(position * div_term))
    return pe


def init_params(key, cfg):
    D, F = cfg['d_model'], cfg['dim_feedforward']
    state = {'key': key}

    def nxt():
        state['key'], sub = jax.random.split(state['key'])
        return sub

    def dense(shape, scale=0.1):
        return jax.random.normal(nxt(), shape, jnp.float32) * scale

    def mha_params():
        return {n: dense((D, D)) for n in ('wq', 'wk', 'wv', 'wo')}

    def ln_params():
        return {'gamma': jnp.ones((1, D), jnp.float32),
                'beta': jnp.zeros((1, D), jnp.float32)}

    def block_params(cross):
        p = {'self_attn': mha_params(), 'self_ln': ln_params(),
             'ffn_w1': dense((D, F)), 'ffn_b1': dense((1, F), 0.02),
             'ffn_w2': dense((F, D)), 'ffn_b2': dense((1, D), 0.02),
             'ffn_ln': ln_params()}
        if cross:
            p['cross_attn'] = mha_params()
            p['cross_ln'] = ln_params()
        return p

    return {
        'src_word_emb': dense((cfg['en_vocab_size'], D)),
        'trg_word_emb': dense((cfg['zh_vocab_size'], D)),
        'pos_emb': sinusoidal_pos_encoding(cfg['max_length'], D),
        'encoder': [block_params(False) for _ in range(cfg['num_encoder_layers'])],
        'decoder': [block_params(True) for _ in range(cfg['num_decoder_layers'])],
        'out_w': dense((D, cfg['zh_vocab_size'])),
        'out_b': dense((1, cfg['zh_vocab_size']), 0.02),
    }


# ----------------------------------------------------------------------------
# Full forward pass (embedding/mask glue in plain JAX, layers in Pallas)
# ----------------------------------------------------------------------------
def transformer_forward(params, cfg, encoder_inputs, decoder_inputs):
    B, S_e = encoder_inputs.shape
    S_d = decoder_inputs.shape[1]
    H = cfg['num_heads']
    eps = cfg['layer_norm_eps']
    pad = cfg['pad_idx']
    bf16 = jnp.bfloat16

    # Masks (1.0 = masked / not attended)
    enc_pad = (encoder_inputs == pad)
    enc_self_mask = jnp.broadcast_to(enc_pad[:, None, None, :],
                                     (B, 1, S_e, S_e)).astype(jnp.float32)
    cross_mask = jnp.broadcast_to(enc_pad[:, None, None, :],
                                  (B, 1, S_d, S_e)).astype(jnp.float32)
    look_ahead = jnp.triu(jnp.ones((S_d, S_d), jnp.bool_), k=1)
    dec_pad = (decoder_inputs == pad)[:, None, None, :]
    dec_self_mask = jnp.logical_or(dec_pad, look_ahead[None, None]).astype(jnp.float32)

    # Embeddings (word + sinusoidal positional); dropout is identity (eval).
    # TODO(synk): embedding gather stays in plain JAX (no dedicated Pallas kernel).
    pos = params['pos_emb']
    enc_x = jnp.take(params['src_word_emb'], encoder_inputs, axis=0) + pos[:S_e][None]
    dec_x = jnp.take(params['trg_word_emb'], decoder_inputs, axis=0) + pos[:S_d][None]

    def fuse_mha(p):
        wqkv = jnp.concatenate([p['wq'], p['wk'], p['wv']], axis=1).astype(bf16)
        return wqkv, p['wo'].astype(bf16)

    # ---------------- Encoder ----------------
    enc_attn_scores = []
    x = enc_x
    for lp in params['encoder']:
        wqkv, wo = fuse_mha(lp['self_attn'])
        lw = dict(self_wqkv=wqkv, self_wo=wo,
                  self_ln_g=lp['self_ln']['gamma'], self_ln_b=lp['self_ln']['beta'],
                  ffn_w1=lp['ffn_w1'].astype(bf16), ffn_b1=lp['ffn_b1'],
                  ffn_w2=lp['ffn_w2'].astype(bf16), ffn_b2=lp['ffn_b2'],
                  ffn_ln_g=lp['ffn_ln']['gamma'], ffn_ln_b=lp['ffn_ln']['beta'])
        x, scores = pallas_encoder_layer(x, enc_self_mask, lw, H, eps)
        enc_attn_scores.append(scores)
    enc_out = x

    # ---------------- Decoder ----------------
    dec_self_scores, dec_cross_scores = [], []
    y = dec_x
    for lp in params['decoder']:
        s_wqkv, s_wo = fuse_mha(lp['self_attn'])
        c_wqkv, c_wo = fuse_mha(lp['cross_attn'])
        lw = dict(self_wqkv=s_wqkv, self_wo=s_wo,
                  self_ln_g=lp['self_ln']['gamma'], self_ln_b=lp['self_ln']['beta'],
                  cross_wqkv=c_wqkv, cross_wo=c_wo,
                  cross_ln_g=lp['cross_ln']['gamma'], cross_ln_b=lp['cross_ln']['beta'],
                  ffn_w1=lp['ffn_w1'].astype(bf16), ffn_b1=lp['ffn_b1'],
                  ffn_w2=lp['ffn_w2'].astype(bf16), ffn_b2=lp['ffn_b2'],
                  ffn_ln_g=lp['ffn_ln']['gamma'], ffn_ln_b=lp['ffn_ln']['beta'])
        y, s_scores, c_scores = pallas_decoder_layer(
            y, enc_out, dec_self_mask, cross_mask, lw, H, eps)
        dec_self_scores.append(s_scores)
        dec_cross_scores.append(c_scores)
    dec_out = y

    logits = pallas_linear(dec_out, params['out_w'].astype(bf16), params['out_b'])

    return {
        'logits': logits,
        'encoder_last_hidden_states': enc_out,
        'encoder_attn_scores': enc_attn_scores,
        'decoder_last_hidden_states': dec_out,
        'decoder_self_attn_scores': dec_self_scores,
        'decoder_cross_attn_scores': dec_cross_scores,
    }


# ----------------------------------------------------------------------------
if __name__ == "__main__":
    cfg = dict(d_model=32, num_heads=4, dim_feedforward=64,
               num_encoder_layers=2, num_decoder_layers=2,
               dropout=0.1, layer_norm_eps=1e-5,
               pad_idx=0, bos_idx=1, eos_idx=2, max_length=32,
               en_vocab_size=48, zh_vocab_size=64)

    key = jax.random.PRNGKey(0)
    pkey, ekey, dkey = jax.random.split(key, 3)
    params = init_params(pkey, cfg)

    B, S_e, S_d = 2, 16, 8
    enc_ids = jax.random.randint(ekey, (B, S_e), 3, cfg['en_vocab_size'])
    dec_ids = jax.random.randint(dkey, (B, S_d), 3, cfg['zh_vocab_size'])
    # add some padding tokens to exercise the padding masks
    enc_ids = enc_ids.at[:, -3:].set(cfg['pad_idx'])
    dec_ids = dec_ids.at[:, -2:].set(cfg['pad_idx'])
    dec_ids = dec_ids.at[:, 0].set(cfg['bos_idx'])

    fwd = jax.jit(lambda p, e, d: transformer_forward(p, cfg, e, d))
    out = fwd(params, enc_ids, dec_ids)
    jax.block_until_ready(out)

    assert out['logits'].shape == (B, S_d, cfg['zh_vocab_size'])
    assert out['encoder_last_hidden_states'].shape == (B, S_e, cfg['d_model'])
    assert out['encoder_attn_scores'][0].shape == (B, cfg['num_heads'], S_e, S_e)
    assert out['decoder_self_attn_scores'][0].shape == (B, cfg['num_heads'], S_d, S_d)
    assert out['decoder_cross_attn_scores'][0].shape == (B, cfg['num_heads'], S_d, S_e)
    print("KERNEL_OK")
</pallas_src>

<mosaic_0001>
module attributes {stable_mosaic.version = 11 : i64} {
  func.func @_linear_kernel(%arg0: i32, %arg1: i32, %arg2: memref<16x32xf32, #tpu.memory_space<vmem>>, %arg3: memref<32x64xbf16, #tpu.memory_space<vmem>>, %arg4: memref<1x64xf32, #tpu.memory_space<vmem>>, %arg5: memref<16x64xf32, #tpu.memory_space<vmem>>) attributes {dimension_semantics = [#tpu.dimension_semantics<parallel>, #tpu.dimension_semantics<parallel>], iteration_bounds = array<i64: 1, 1>, scalar_prefetch = 0 : i64, scratch_operands = 0 : i64, tpu.core_type = #tpu.core_type<tc>, window_params = [{transform_indices = @transform_0, window_bounds = array<i64: 16, 32>}, {transform_indices = @transform_1, window_bounds = array<i64: 32, 64>}, {transform_indices = @transform_2, window_bounds = array<i64: 1, 64>}, {transform_indices = @transform_3, window_bounds = array<i64: 16, 64>}]} {
    %c0 = arith.constant 0 : index
    %c0_0 = arith.constant 0 : index
    %0 = vector.load %arg2[%c0, %c0_0] : memref<16x32xf32, #tpu.memory_space<vmem>>, vector<16x32xf32>
    %1 = arith.truncf %0 : vector<16x32xf32> to vector<16x32xbf16>
    %c0_1 = arith.constant 0 : index
    %c0_2 = arith.constant 0 : index
    %2 = vector.load %arg3[%c0_1, %c0_2] : memref<32x64xbf16, #tpu.memory_space<vmem>>, vector<32x64xbf16>
    %cst = arith.constant dense<0.000000e+00> : vector<16x64xf32>
    %3 = tpu.matmul %1, %2, %cst {dimension_numbers = #tpu.dot_dimension_numbers<[1], [0], [0], [1], [0, 0, 1, 1], [], []>} : vector<16x32xbf16>, vector<32x64xbf16>, vector<16x64xf32> -> vector<16x64xf32>
    %c0_3 = arith.constant 0 : index
    %c0_4 = arith.constant 0 : index
    %4 = vector.load %arg4[%c0_3, %c0_4] : memref<1x64xf32, #tpu.memory_space<vmem>>, vector<1x64xf32>
    %5 = vector.broadcast %4 : vector<1x64xf32> to vector<16x64xf32>
    %6 = arith.addf %3, %5 : vector<16x64xf32>
    %c0_5 = arith.constant 0 : index
    %c0_6 = arith.constant 0 : index
    %7 = vector.load %arg5[%c0_5, %c0_6] : memref<16x64xf32, #tpu.memory_space<vmem>>, vector<16x64xf32>
    tpu.vector_store %arg5[%c0_5, %c0_6], %6 {strides = array<i32>} : memref<16x64xf32, #tpu.memory_space<vmem>>, vector<16x64xf32>,
    return
  }
  func.func @transform_0(%arg0: i32, %arg1: i32) -> (i32, i32) {
    %c0_i32 = arith.constant 0 : i32
    %c0_i32_0 = arith.constant 0 : i32
    return %arg0, %c0_i32 : i32, i32
  }
  func.func @transform_1(%arg0: i32, %arg1: i32) -> (i32, i32) {
    %c0_i32 = arith.constant 0 : i32
    %c0_i32_0 = arith.constant 0 : i32
    return %c0_i32, %arg1 : i32, i32
  }
  func.func @transform_2(%arg0: i32, %arg1: i32) -> (i32, i32) {
    %c0_i32 = arith.constant 0 : i32
    %c0_i32_0 = arith.constant 0 : i32
    return %c0_i32, %arg1 : i32, i32
  }
  func.func @transform_3(%arg0: i32, %arg1: i32) -> (i32, i32) {
    %c0_i32 = arith.constant 0 : i32
    return %arg0, %arg1 : i32, i32
  }
}

module attributes {stable_mosaic.version = 11 : i64} {
  func.func @_encoder_layer_kernel(%arg0: i32, %arg1: memref<1x16x32xf32, #tpu.memory_space<vmem>>, %arg2: memref<1x1x16x16xf32, #tpu.memory_space<vmem>>, %arg3: memref<32x96xbf16, #tpu.memory_space<vmem>>, %arg4: memref<32x32xbf16, #tpu.memory_space<vmem>>, %arg5: memref<1x32xf32, #tpu.memory_space<vmem>>, %arg6: memref<1x32xf32, #tpu.memory_space<vmem>>, %arg7: memref<32x64xbf16, #tpu.memory_space<vmem>>, %arg8: memref<1x64xf32, #tpu.memory_space<vmem>>, %arg9: memref<64x32xbf16, #tpu.memory_space<vmem>>, %arg10: memref<1x32xf32, #tpu.memory_space<vmem>>, %arg11: memref<1x32xf32, #tpu.memory_space<vmem>>, %arg12: memref<1x32xf32, #tpu.memory_space<vmem>>, %arg13: memref<1x16x32xf32, #tpu.memory_space<vmem>>, %arg14: memref<1x4x16x16xf32, #tpu.memory_space<vmem>>) attributes {dimension_semantics = [#tpu.dimension_semantics<parallel>], iteration_bounds = array<i64: 2>, scalar_prefetch = 0 : i64, scratch_operands = 0 : i64, tpu.core_type = #tpu.core_type<tc>, window_params = [{transform_indices = @transform_0, window_bounds = array<i64: 1, 16, 32>}, {transform_indices = @transform_1, window_bounds = array<i64: 1, 1, 16, 16>}, {pipeline_mode = #tpu.pipeline_mode<synchronous>, transform_indices = @transform_2, window_bounds = array<i64: 32, 96>}, {pipeline_mode = #tpu.pipeline_mode<synchronous>, transform_indices = @transform_3, window_bounds = array<i64: 32, 32>}, {pipeline_mode = #tpu.pipeline_mode<synchronous>, transform_indices = @transform_4, window_bounds = array<i64: 1, 32>}, {pipeline_mode = #tpu.pipeline_mode<synchronous>, transform_indices = @transform_5, window_bounds = array<i64: 1, 32>}, {pipeline_mode = #tpu.pipeline_mode<synchronous>, transform_indices = @transform_6, window_bounds = array<i64: 32, 64>}, {pipeline_mode = #tpu.pipeline_mode<synchronous>, transform_indices = @transform_7, window_bounds = array<i64: 1, 64>}, {pipeline_mode = #tpu.pipeline_mode<synchronous>, transform_indices = @transform_8, window_bounds = array<i64: 64, 32>}, {pipeline_mode = #tpu.pipeline_mode<synchronous>, transform_indices = @transform_9, window_bounds = array<i64: 1, 32>}, {pipeline_mode = #tpu.pipeline_mode<synchronous>, transform_indices = @transform_10, window_bounds = array<i64: 1, 32>}, {pipeline_mode = #tpu.pipeline_mode<synchronous>, transform_indices = @transform_11, window_bounds = array<i64: 1, 32>}, {transform_indices = @transform_12, window_bounds = array<i64: 1, 16, 32>}, {transform_indices = @transform_13, window_bounds = array<i64: 1, 4, 16, 16>}]} {
    %c0 = arith.constant 0 : index
    %c0_0 = arith.constant 0 : index
    %c0_1 = arith.constant 0 : index
    %0 = vector.load %arg1[%c0, %c0_0, %c0_1] : memref<1x16x32xf32, #tpu.memory_space<vmem>>, vector<1x16x32xf32>
    %1 = vector.shape_cast %0 : vector<1x16x32xf32> to vector<16x32xf32>
    %c0_2 = arith.constant 0 : index
    %c0_3 = arith.constant 0 : index
    %c0_4 = arith.constant 0 : index
    %c0_5 = arith.constant 0 : index
    %2 = vector.load %arg2[%c0_2, %c0_3, %c0_4, %c0_5] : memref<1x1x16x16xf32, #tpu.memory_space<vmem>>, vector<1x1x16x16xf32>
    %3 = vector.shape_cast %2 : vector<1x1x16x16xf32> to vector<16x16xf32>
    %c0_6 = arith.constant 0 : index
    %c0_7 = arith.constant 0 : index
    %4 = vector.load %arg3[%c0_6, %c0_7] : memref<32x96xbf16, #tpu.memory_space<vmem>>, vector<32x96xbf16>
    %c0_8 = arith.constant 0 : index
    %c0_9 = arith.constant 0 : index
    %5 = vector.load %arg4[%c0_8, %c0_9] : memref<32x32xbf16, #tpu.memory_space<vmem>>, vector<32x32xbf16>
    %6 = arith.truncf %1 : vector<16x32xf32> to vector<16x32xbf16>
    %cst = arith.constant dense<0.000000e+00> : vector<16x96xf32>
    %7 = tpu.matmul %6, %4, %cst {dimension_numbers = #tpu.dot_dimension_numbers<[1], [0], [0], [1], [0, 0, 1, 1], [], []>} : vector<16x32xbf16>, vector<32x96xbf16>, vector<16x96xf32> -> vector<16x96xf32>
    %8 = vector.extract_strided_slice %7 {offsets = [0, 0], sizes = [16, 32], strides = [1, 1]} : vector<16x96xf32> to vector<16x32xf32>
    %9 = vector.extract_strided_slice %7 {offsets = [0, 32], sizes = [16, 32], strides = [1, 1]} : vector<16x96xf32> to vector<16x32xf32>
    %10 = vector.extract_strided_slice %7 {offsets = [0, 64], sizes = [16, 32], strides = [1, 1]} : vector<16x96xf32> to vector<16x32xf32>
    %11 = vector.extract_strided_slice %8 {offsets = [0, 0], sizes = [16, 8], strides = [1, 1]} : vector<16x32xf32> to vector<16x8xf32>
    %12 = vector.extract_strided_slice %8 {offsets = [0, 8], sizes = [16, 8], strides = [1, 1]} : vector<16x32xf32> to vector<16x8xf32>
    %13 = vector.extract_strided_slice %8 {offsets = [0, 16], sizes = [16, 8], strides = [1, 1]} : vector<16x32xf32> to vector<16x8xf32>
    %14 = vector.extract_strided_slice %8 {offsets = [0, 24], sizes = [16, 8], strides = [1, 1]} : vector<16x32xf32> to vector<16x8xf32>
    %15 = vector.shape_cast %11 : vector<16x8xf32> to vector<1x16x8xf32>
    %16 = vector.shape_cast %12 : vector<16x8xf32> to vector<1x16x8xf32>
    %17 = vector.shape_cast %13 : vector<16x8xf32> to vector<1x16x8xf32>
    %18 = vector.shape_cast %14 : vector<16x8xf32> to vector<1x16x8xf32>
    %19 = tpu.concatenate %15, %16, %17, %18 in 0 : vector<1x16x8xf32>, vector<1x16x8xf32>, vector<1x16x8xf32>, vector<1x16x8xf32> -> vector<4x16x8xf32>
    %20 = arith.truncf %19 : vector<4x16x8xf32> to vector<4x16x8xbf16>
    %21 = vector.extract_strided_slice %9 {offsets = [0, 0], sizes = [16, 8], strides = [1, 1]} : vector<16x32xf32> to vector<16x8xf32>
    %22 = vector.extract_strided_slice %9 {offsets = [0, 8], sizes = [16, 8], strides = [1, 1]} : vector<16x32xf32> to vector<16x8xf32>
    %23 = vector.extract_strided_slice %9 {offsets = [0, 16], sizes = [16, 8], strides = [1, 1]} : vector<16x32xf32> to vector<16x8xf32>
    %24 = vector.extract_strided_slice %9 {offsets = [0, 24], sizes = [16, 8], strides = [1, 1]} : vector<16x32xf32> to vector<16x8xf32>
    %25 = vector.shape_cast %21 : vector<16x8xf32> to vector<1x16x8xf32>
    %26 = vector.shape_cast %22 : vector<16x8xf32> to vector<1x16x8xf32>
    %27 = vector.shape_cast %23 : vector<16x8xf32> to vector<1x16x8xf32>
    %28 = vector.shape_cast %24 : vector<16x8xf32> to vector<1x16x8xf32>
    %29 = tpu.concatenate %25, %26, %27, %28 in 0 : vector<1x16x8xf32>, vector<1x16x8xf32>, vector<1x16x8xf32>, vector<1x16x8xf32> -> vector<4x16x8xf32>
    %30 = arith.truncf %29 : vector<4x16x8xf32> to vector<4x16x8xbf16>
    %31 = vector.extract_strided_slice %10 {offsets = [0, 0], sizes = [16, 8], strides = [1, 1]} : vector<16x32xf32> to vector<16x8xf32>
    %32 = vector.extract_strided_slice %10 {offsets = [0, 8], sizes = [16, 8], strides = [1, 1]} : vector<16x32xf32> to vector<16x8xf32>
    %33 = vector.extract_strided_slice %10 {offsets = [0, 16], sizes = [16, 8], strides = [1, 1]} : vector<16x32xf32> to vector<16x8xf32>
    %34 = vector.extract_strided_slice %10 {offsets = [0, 24], sizes = [16, 8], strides = [1, 1]} : vector<16x32xf32> to vector<16x8xf32>
    %35 = vector.shape_cast %31 : vector<16x8xf32> to vector<1x16x8xf32>
    %36 = vector.shape_cast %32 : vector<16x8xf32> to vector<1x16x8xf32>
    %37 = vector.shape_cast %33 : vector<16x8xf32> to vector<1x16x8xf32>
    %38 = vector.shape_cast %34 : vector<16x8xf32> to vector<1x16x8xf32>
    %39 = tpu.concatenate %35, %36, %37, %38 in 0 : vector<1x16x8xf32>, vector<1x16x8xf32>, vector<1x16x8xf32>, vector<1x16x8xf32> -> vector<4x16x8xf32>
    %40 = arith.truncf %39 : vector<4x16x8xf32> to vector<4x16x8xbf16>
    "tpu.trace_start"() <{level = 10 : i32, message = "hqd,hkd->hqk"}> : () -> ()
    %cst_10 = arith.constant dense<0.000000e+00> : vector<4x16x16xf32>
    %41 = tpu.matmul %20, %30, %cst_10 {dimension_numbers = #tpu.dot_dimension_numbers<[2], [2], [1], [1], [0, 0, 0, 1, 1, 1], [0], [0]>} : vector<4x16x8xbf16>, vector<4x16x8xbf16>, vector<4x16x16xf32> -> vector<4x16x16xf32>
    "tpu.trace_stop"() : () -> ()
    %42 = vector.shape_cast %3 : vector<16x16xf32> to vector<1x16x16xf32>
    %cst_11 = arith.constant -1.000000e+09 : f32
    %43 = vector.broadcast %cst_11 : f32 to vector<1x16x16xf32>
    %44 = arith.mulf %42, %43 : vector<1x16x16xf32>
    %45 = vector.broadcast %44 : vector<1x16x16xf32> to vector<4x16x16xf32>
    %46 = arith.addf %41, %45 : vector<4x16x16xf32>
    %cst_12 = arith.constant 0.353553385 : f32
    %47 = vector.broadcast %cst_12 : f32 to vector<4x16x16xf32>
    %48 = arith.mulf %46, %47 : vector<4x16x16xf32>
    %cst_13 = arith.constant dense<0xFF800000> : vector<4x16xf32>
    %49 = vector.multi_reduction <maximumf>, %48, %cst_13 [2] : vector<4x16x16xf32> to vector<4x16xf32>
    %50 = vector.shape_cast %49 : vector<4x16xf32> to vector<4x16x1xf32>
    %51 = vector.broadcast %50 : vector<4x16x1xf32> to vector<4x16x16xf32>
    %52 = arith.subf %48, %51 : vector<4x16x16xf32>
    %53 = math.exp %52 : vector<4x16x16xf32>
    %cst_14 = arith.constant dense<0.000000e+00> : vector<4x16xf32>
    %54 = vector.multi_reduction <add>, %53, %cst_14 [2] : vector<4x16x16xf32> to vector<4x16xf32>
    %55 = vector.shape_cast %54 : vector<4x16xf32> to vector<4x16x1xf32>
    %56 = tpu.reciprocal %55 {approx = true} : vector<4x16x1xf32> -> vector<4x16x1xf32>
    %57 = vector.broadcast %56 : vector<4x16x1xf32> to vector<4x16x16xf32>
    %58 = arith.mulf %53, %57 : vector<4x16x16xf32>
    %59 = arith.truncf %58 : vector<4x16x16xf32> to vector<4x16x16xbf16>
    "tpu.trace_start"() <{level = 10 : i32, message = "hqk,hkd->hqd"}> : () -> ()
    %cst_15 = arith.constant dense<0.000000e+00> : vector<4x16x8xf32>
    %60 = tpu.matmul %59, %40, %cst_15 {dimension_numbers = #tpu.dot_dimension_numbers<[2], [1], [1], [2], [0, 0, 0, 1, 1, 2], [0], [0]>} : vector<4x16x16xbf16>, vector<4x16x8xbf16>, vector<4x16x8xf32> -> vector<4x16x8xf32>
    "tpu.trace_stop"() : () -> ()
    %61 = vector.extract_strided_slice %60 {offsets = [0, 0, 0], sizes = [1, 16, 8], strides = [1, 1, 1]} : vector<4x16x8xf32> to vector<1x16x8xf32>
    %62 = vector.shape_cast %61 : vector<1x16x8xf32> to vector<16x8xf32>
    %63 = vector.extract_strided_slice %60 {offsets = [1, 0, 0], sizes = [1, 16, 8], strides = [1, 1, 1]} : vector<4x16x8xf32> to vector<1x16x8xf32>
    %64 = vector.shape_cast %63 : vector<1x16x8xf32> to vector<16x8xf32>
    %65 = vector.extract_strided_slice %60 {offsets = [2, 0, 0], sizes = [1, 16, 8], strides = [1, 1, 1]} : vector<4x16x8xf32> to vector<1x16x8xf32>
    %66 = vector.shape_cast %65 : vector<1x16x8xf32> to vector<16x8xf32>
    %67 = vector.extract_strided_slice %60 {offsets = [3, 0, 0], sizes = [1, 16, 8], strides = [1, 1, 1]} : vector<4x16x8xf32> to vector<1x16x8xf32>
    %68 = vector.shape_cast %67 : vector<1x16x8xf32> to vector<16x8xf32>
    %69 = tpu.concatenate %62, %64, %66, %68 in 1 : vector<16x8xf32>, vector<16x8xf32>, vector<16x8xf32>, vector<16x8xf32> -> vector<16x32xf32>
    %70 = arith.truncf %69 : vector<16x32xf32> to vector<16x32xbf16>
    %cst_16 = arith.constant dense<0.000000e+00> : vector<16x32xf32>
    %71 = tpu.matmul %70, %5, %cst_16 {dimension_numbers = #tpu.dot_dimension_numbers<[1], [0], [0], [1], [0, 0, 1, 1], [], []>} : vector<16x32xbf16>, vector<32x32xbf16>, vector<16x32xf32> -> vector<16x32xf32>
    %c0_17 = arith.constant 0 : index
    %c0_18 = arith.constant 0 : index
    %c0_19 = arith.constant 0 : index
    %c0_20 = arith.constant 0 : index
    %72 = vector.load %arg14[%c0_17, %c0_18, %c0_19, %c0_20] : memref<1x4x16x16xf32, #tpu.memory_space<vmem>>, vector<1x4x16x16xf32>
    %73 = vector.shape_cast %72 : vector<1x4x16x16xf32> to vector<4x16x16xf32>
    %74 = vector.shape_cast %58 : vector<4x16x16xf32> to vector<1x4x16x16xf32>
    tpu.vector_store %arg14[%c0_17, %c0_18, %c0_19, %c0_20], %74 {strides = array<i32>} : memref<1x4x16x16xf32, #tpu.memory_space<vmem>>, vector<1x4x16x16xf32>,
    %c0_21 = arith.constant 0 : index
    %c0_22 = arith.constant 0 : index
    %75 = vector.load %arg5[%c0_21, %c0_22] : memref<1x32xf32, #tpu.memory_space<vmem>>, vector<1x32xf32>
    %c0_23 = arith.constant 0 : index
    %c0_24 = arith.constant 0 : index
    %76 = vector.load %arg6[%c0_23, %c0_24] : memref<1x32xf32, #tpu.memory_space<vmem>>, vector<1x32xf32>
    %77 = arith.addf %1, %71 : vector<16x32xf32>
    %cst_25 = arith.constant dense<0.000000e+00> : vector<16xf32>
    %78 = vector.multi_reduction <add>, %77, %cst_25 [1] : vector<16x32xf32> to vector<16xf32>
    %79 = vector.shape_cast %78 : vector<16xf32> to vector<16x1xf32>
    %cst_26 = arith.constant 3.200000e+01 : f32
    %80 = vector.broadcast %cst_26 : f32 to vector<16x1xf32>
    %81 = arith.divf %79, %80 : vector<16x1xf32>
    %82 = vector.broadcast %81 : vector<16x1xf32> to vector<16x32xf32>
    %83 = arith.subf %77, %82 : vector<16x32xf32>
    %84 = arith.mulf %83, %83 : vector<16x32xf32>
    %cst_27 = arith.constant dense<0.000000e+00> : vector<16xf32>
    %85 = vector.multi_reduction <add>, %84, %cst_27 [1] : vector<16x32xf32> to vector<16xf32>
    %86 = vector.shape_cast %85 : vector<16xf32> to vector<16x1xf32>
    %cst_28 = arith.constant 3.200000e+01 : f32
    %87 = vector.broadcast %cst_28 : f32 to vector<16x1xf32>
    %88 = arith.divf %86, %87 : vector<16x1xf32>
    %89 = vector.broadcast %81 : vector<16x1xf32> to vector<16x32xf32>
    %90 = arith.subf %77, %89 : vector<16x32xf32>
    %cst_29 = arith.constant 9.99999974E-6 : f32
    %91 = vector.broadcast %cst_29 : f32 to vector<16x1xf32>
    %92 = arith.addf %88, %91 : vector<16x1xf32>
    %93 = math.rsqrt %92 : vector<16x1xf32>
    %94 = vector.broadcast %93 : vector<16x1xf32> to vector<16x32xf32>
    %95 = arith.mulf %90, %94 : vector<16x32xf32>
    %96 = vector.broadcast %75 : vector<1x32xf32> to vector<16x32xf32>
    %97 = arith.mulf %95, %96 : vector<16x32xf32>
    %98 = vector.broadcast %76 : vector<1x32xf32> to vector<16x32xf32>
    %99 = arith.addf %97, %98 : vector<16x32xf32>
    %c0_30 = arith.constant 0 : index
    %c0_31 = arith.constant 0 : index
    %100 = vector.load %arg7[%c0_30, %c0_31] : memref<32x64xbf16, #tpu.memory_space<vmem>>, vector<32x64xbf16>
    %c0_32 = arith.constant 0 : index
    %c0_33 = arith.constant 0 : index
    %101 = vector.load %arg8[%c0_32, %c0_33] : memref<1x64xf32, #tpu.memory_space<vmem>>, vector<1x64xf32>
    %c0_34 = arith.constant 0 : index
    %c0_35 = arith.constant 0 : index
    %102 = vector.load %arg9[%c0_34, %c0_35] : memref<64x32xbf16, #tpu.memory_space<vmem>>, vector<64x32xbf16>
    %c0_36 = arith.constant 0 : index
    %c0_37 = arith.constant 0 : index
    %103 = vector.load %arg10[%c0_36, %c0_37] : memref<1x32xf32, #tpu.memory_space<vmem>>, vector<1x32xf32>
    %104 = arith.truncf %99 : vector<16x32xf32> to vector<16x32xbf16>
    %cst_38 = arith.constant dense<0.000000e+00> : vector<16x64xf32>
    %105 = tpu.matmul %104, %100, %cst_38 {dimension_numbers = #tpu.dot_dimension_numbers<[1], [0], [0], [1], [0, 0, 1, 1], [], []>} : vector<16x32xbf16>, vector<32x64xbf16>, vector<16x64xf32> -> vector<16x64xf32>
    %106 = vector.broadcast %101 : vector<1x64xf32> to vector<16x64xf32>
    %107 = arith.addf %105, %106 : vector<16x64xf32>
    %cst_39 = arith.constant 0.000000e+00 : f32
    %108 = vector.broadcast %cst_39 : f32 to vector<16x64xf32>
    %109 = arith.maximumf %107, %108 : vector<16x64xf32>
    %110 = arith.truncf %109 : vector<16x64xf32> to vector<16x64xbf16>
    %cst_40 = arith.constant dense<0.000000e+00> : vector<16x32xf32>
    %111 = tpu.matmul %110, %102, %cst_40 {dimension_numbers = #tpu.dot_dimension_numbers<[1], [0], [0], [1], [0, 0, 1, 1], [], []>} : vector<16x64xbf16>, vector<64x32xbf16>, vector<16x32xf32> -> vector<16x32xf32>
    %112 = vector.broadcast %103 : vector<1x32xf32> to vector<16x32xf32>
    %113 = arith.addf %111, %112 : vector<16x32xf32>
    %c0_41 = arith.constant 0 : index
    %c0_42 = arith.constant 0 : index
    %114 = vector.load %arg11[%c0_41, %c0_42] : memref<1x32xf32, #tpu.memory_space<vmem>>, vector<1x32xf32>
    %c0_43 = arith.constant 0 : index
    %c0_44 = arith.constant 0 : index
    %115 = vector.load %arg12[%c0_43, %c0_44] : memref<1x32xf32, #tpu.memory_space<vmem>>, vector<1x32xf32>
    %116 = arith.addf %99, %113 : vector<16x32xf32>
    %cst_45 = arith.constant dense<0.000000e+00> : vector<16xf32>
    %117 = vector.multi_reduction <add>, %116, %cst_45 [1] : vector<16x32xf32> to vector<16xf32>
    %118 = vector.shape_cast %117 : vector<16xf32> to vector<16x1xf32>
    %cst_46 = arith.constant 3.200000e+01 : f32
    %119 = vector.broadcast %cst_46 : f32 to vector<16x1xf32>
    %120 = arith.divf %118, %119 : vector<16x1xf32>
    %121 = vector.broadcast %120 : vector<16x1xf32> to vector<16x32xf32>
    %122 = arith.subf %116, %121 : vector<16x32xf32>
    %123 = arith.mulf %122, %122 : vector<16x32xf32>
    %cst_47 = arith.constant dense<0.000000e+00> : vector<16xf32>
    %124 = vector.multi_reduction <add>, %123, %cst_47 [1] : vector<16x32xf32> to vector<16xf32>
    %125 = vector.shape_cast %124 : vector<16xf32> to vector<16x1xf32>
    %cst_48 = arith.constant 3.200000e+01 : f32
    %126 = vector.broadcast %cst_48 : f32 to vector<16x1xf32>
    %127 = arith.divf %125, %126 : vector<16x1xf32>
    %128 = vector.broadcast %120 : vector<16x1xf32> to vector<16x32xf32>
    %129 = arith.subf %116, %128 : vector<16x32xf32>
    %cst_49 = arith.constant 9.99999974E-6 : f32
    %130 = vector.broadcast %cst_49 : f32 to vector<16x1xf32>
    %131 = arith.addf %127, %130 : vector<16x1xf32>
    %132 = math.rsqrt %131 : vector<16x1xf32>
    %133 = vector.broadcast %132 : vector<16x1xf32> to vector<16x32xf32>
    %134 = arith.mulf %129, %133 : vector<16x32xf32>
    %135 = vector.broadcast %114 : vector<1x32xf32> to vector<16x32xf32>
    %136 = arith.mulf %134, %135 : vector<16x32xf32>
    %137 = vector.broadcast %115 : vector<1x32xf32> to vector<16x32xf32>
    %138 = arith.addf %136, %137 : vector<16x32xf32>
    %c0_50 = arith.constant 0 : index
    %c0_51 = arith.constant 0 : index
    %c0_52 = arith.constant 0 : index
    %139 = vector.load %arg13[%c0_50, %c0_51, %c0_52] : memref<1x16x32xf32, #tpu.memory_space<vmem>>, vector<1x16x32xf32>
    %140 = vector.shape_cast %139 : vector<1x16x32xf32> to vector<16x32xf32>
    %141 = vector.shape_cast %138 : vector<16x32xf32> to vector<1x16x32xf32>
    tpu.vector_store %arg13[%c0_50, %c0_51, %c0_52], %141 {strides = array<i32>} : memref<1x16x32xf32, #tpu.memory_space<vmem>>, vector<1x16x32xf32>,
    return
  }
  func.func @transform_0(%arg0: i32) -> (i32, i32, i32) {
    %c0_i32 = arith.constant 0 : i32
    %c0_i32_0 = arith.constant 0 : i32
    %c0_i32_1 = arith.constant 0 : i32
    return %arg0, %c0_i32, %c0_i32_0 : i32, i32, i32
  }
  func.func @transform_1(%arg0: i32) -> (i32, i32, i32, i32) {
    %c0_i32 = arith.constant 0 : i32
    %c0_i32_0 = arith.constant 0 : i32
    %c0_i32_1 = arith.constant 0 : i32
    %c0_i32_2 = arith.constant 0 : i32
    return %arg0, %c0_i32, %c0_i32_0, %c0_i32_1 : i32, i32, i32, i32
  }
  func.func @transform_2(%arg0: i32) -> (i32, i32) {
    %c0_i32 = arith.constant 0 : i32
    %c0_i32_0 = arith.constant 0 : i32
    %c0_i32_1 = arith.constant 0 : i32
    return %c0_i32, %c0_i32_0 : i32, i32
  }
  func.func @transform_3(%arg0: i32) -> (i32, i32) {
    %c0_i32 = arith.constant 0 : i32
    %c0_i32_0 = arith.constant 0 : i32
    %c0_i32_1 = arith.constant 0 : i32
    return %c0_i32, %c0_i32_0 : i32, i32
  }
  func.func @transform_4(%arg0: i32) -> (i32, i32) {
    %c0_i32 = arith.constant 0 : i32
    %c0_i32_0 = arith.constant 0 : i32
    %c0_i32_1 = arith.constant 0 : i32
    return %c0_i32, %c0_i32_0 : i32, i32
  }
  func.func @transform_5(%arg0: i32) -> (i32, i32) {
    %c0_i32 = arith.constant 0 : i32
    %c0_i32_0 = arith.constant 0 : i32
    %c0_i32_1 = arith.constant 0 : i32
    return %c0_i32, %c0_i32_0 : i32, i32
  }
  func.func @transform_6(%arg0: i32) -> (i32, i32) {
    %c0_i32 = arith.constant 0 : i32
    %c0_i32_0 = arith.constant 0 : i32
    %c0_i32_1 = arith.constant 0 : i32
    return %c0_i32, %c0_i32_0 : i32, i32
  }
  func.func @transform_7(%arg0: i32) -> (i32, i32) {
    %c0_i32 = arith.constant 0 : i32
    %c0_i32_0 = arith.constant 0 : i32
    %c0_i32_1 = arith.constant 0 : i32
    return %c0_i32, %c0_i32_0 : i32, i32
  }
  func.func @transform_8(%arg0: i32) -> (i32, i32) {
    %c0_i32 = arith.constant 0 : i32
    %c0_i32_0 = arith.constant 0 : i32
    %c0_i32_1 = arith.constant 0 : i32
    return %c0_i32, %c0_i32_0 : i32, i32
  }
  func.func @transform_9(%arg0: i32) -> (i32, i32) {
    %c0_i32 = arith.constant 0 : i32
    %c0_i32_0 = arith.constant 0 : i32
    %c0_i32_1 = arith.constant 0 : i32
    return %c0_i32, %c0_i32_0 : i32, i32
  }
  func.func @transform_10(%arg0: i32) -> (i32, i32) {
    %c0_i32 = arith.constant 0 : i32
    %c0_i32_0 = arith.constant 0 : i32
    %c0_i32_1 = arith.constant 0 : i32
    return %c0_i32, %c0_i32_0 : i32, i32
  }
  func.func @transform_11(%arg0: i32) -> (i32, i32) {
    %c0_i32 = arith.constant 0 : i32
    %c0_i32_0 = arith.constant 0 : i32
    %c0_i32_1 = arith.constant 0 : i32
    return %c0_i32, %c0_i32_0 : i32, i32
  }
  func.func @transform_12(%arg0: i32) -> (i32, i32, i32) {
    %c0_i32 = arith.constant 0 : i32
    %c0_i32_0 = arith.constant 0 : i32
    %c0_i32_1 = arith.constant 0 : i32
    return %arg0, %c0_i32, %c0_i32_0 : i32, i32, i32
  }
  func.func @transform_13(%arg0: i32) -> (i32, i32, i32, i32) {
    %c0_i32 = arith.constant 0 : i32
    %c0_i32_0 = arith.constant 0 : i32
    %c0_i32_1 = arith.constant 0 : i32
    %c0_i32_2 = arith.constant 0 : i32
    return %arg0, %c0_i32, %c0_i32_0, %c0_i32_1 : i32, i32, i32, i32
  }
}

module attributes {stable_mosaic.version = 11 : i64} {
  func.func @_decoder_layer_kernel(%arg0: i32, %arg1: memref<1x8x32xf32, #tpu.memory_space<vmem>>, %arg2: memref<1x16x32xf32, #tpu.memory_space<vmem>>, %arg3: memref<1x1x8x8xf32, #tpu.memory_space<vmem>>, %arg4: memref<1x1x8x16xf32, #tpu.memory_space<vmem>>, %arg5: memref<32x96xbf16, #tpu.memory_space<vmem>>, %arg6: memref<32x32xbf16, #tpu.memory_space<vmem>>, %arg7: memref<1x32xf32, #tpu.memory_space<vmem>>, %arg8: memref<1x32xf32, #tpu.memory_space<vmem>>, %arg9: memref<32x96xbf16, #tpu.memory_space<vmem>>, %arg10: memref<32x32xbf16, #tpu.memory_space<vmem>>, %arg11: memref<1x32xf32, #tpu.memory_space<vmem>>, %arg12: memref<1x32xf32, #tpu.memory_space<vmem>>, %arg13: memref<32x64xbf16, #tpu.memory_space<vmem>>, %arg14: memref<1x64xf32, #tpu.memory_space<vmem>>, %arg15: memref<64x32xbf16, #tpu.memory_space<vmem>>, %arg16: memref<1x32xf32, #tpu.memory_space<vmem>>, %arg17: memref<1x32xf32, #tpu.memory_space<vmem>>, %arg18: memref<1x32xf32, #tpu.memory_space<vmem>>, %arg19: memref<1x8x32xf32, #tpu.memory_space<vmem>>, %arg20: memref<1x4x8x8xf32, #tpu.memory_space<vmem>>, %arg21: memref<1x4x8x16xf32, #tpu.memory_space<vmem>>) attributes {dimension_semantics = [#tpu.dimension_semantics<parallel>], iteration_bounds = array<i64: 2>, scalar_prefetch = 0 : i64, scratch_operands = 0 : i64, tpu.core_type = #tpu.core_type<tc>, window_params = [{transform_indices = @transform_0, window_bounds = array<i64: 1, 8, 32>}, {transform_indices = @transform_1, window_bounds = array<i64: 1, 16, 32>}, {transform_indices = @transform_2, window_bounds = array<i64: 1, 1, 8, 8>}, {transform_indices = @transform_3, window_bounds = array<i64: 1, 1, 8, 16>}, {pipeline_mode = #tpu.pipeline_mode<synchronous>, transform_indices = @transform_4, window_bounds = array<i64: 32, 96>}, {pipeline_mode = #tpu.pipeline_mode<synchronous>, transform_indices = @transform_5, window_bounds = array<i64: 32, 32>}, {pipeline_mode = #tpu.pipeline_mode<synchronous>, transform_indices = @transform_6, window_bounds = array<i64: 1, 32>}, {pipeline_mode = #tpu.pipeline_mode<synchronous>, transform_indices = @transform_7, window_bounds = array<i64: 1, 32>}, {pipeline_mode = #tpu.pipeline_mode<synchronous>, transform_indices = @transform_8, window_bounds = array<i64: 32, 96>}, {pipeline_mode = #tpu.pipeline_mode<synchronous>, transform_indices = @transform_9, window_bounds = array<i64: 32, 32>}, {pipeline_mode = #tpu.pipeline_mode<synchronous>, transform_indices = @transform_10, window_bounds = array<i64: 1, 32>}, {pipeline_mode = #tpu.pipeline_mode<synchronous>, transform_indices = @transform_11, window_bounds = array<i64: 1, 32>}, {pipeline_mode = #tpu.pipeline_mode<synchronous>, transform_indices = @transform_12, window_bounds = array<i64: 32, 64>}, {pipeline_mode = #tpu.pipeline_mode<synchronous>, transform_indices = @transform_13, window_bounds = array<i64: 1, 64>}, {pipeline_mode = #tpu.pipeline_mode<synchronous>, transform_indices = @transform_14, window_bounds = array<i64: 64, 32>}, {pipeline_mode = #tpu.pipeline_mode<synchronous>, transform_indices = @transform_15, window_bounds = array<i64: 1, 32>}, {pipeline_mode = #tpu.pipeline_mode<synchronous>, transform_indices = @transform_16, window_bounds = array<i64: 1, 32>}, {pipeline_mode = #tpu.pipeline_mode<synchronous>, transform_indices = @transform_17, window_bounds = array<i64: 1, 32>}, {transform_indices = @transform_18, window_bounds = array<i64: 1, 8, 32>}, {transform_indices = @transform_19, window_bounds = array<i64: 1, 4, 8, 8>}, {transform_indices = @transform_20, window_bounds = array<i64: 1, 4, 8, 16>}]} {
    %c0 = arith.constant 0 : index
    %c0_0 = arith.constant 0 : index
    %c0_1 = arith.constant 0 : index
    %0 = vector.load %arg1[%c0, %c0_0, %c0_1] : memref<1x8x32xf32, #tpu.memory_space<vmem>>, vector<1x8x32xf32>
    %1 = vector.shape_cast %0 : vector<1x8x32xf32> to vector<8x32xf32>
    %c0_2 = arith.constant 0 : index
    %c0_3 = arith.constant 0 : index
    %c0_4 = arith.constant 0 : index
    %2 = vector.load %arg2[%c0_2, %c0_3, %c0_4] : memref<1x16x32xf32, #tpu.memory_space<vmem>>, vector<1x16x32xf32>
    %3 = vector.shape_cast %2 : vector<1x16x32xf32> to vector<16x32xf32>
    %c0_5 = arith.constant 0 : index
    %c0_6 = arith.constant 0 : index
    %c0_7 = arith.constant 0 : index
    %c0_8 = arith.constant 0 : index
    %4 = vector.load %arg3[%c0_5, %c0_6, %c0_7, %c0_8] : memref<1x1x8x8xf32, #tpu.memory_space<vmem>>, vector<1x1x8x8xf32>
    %5 = vector.shape_cast %4 : vector<1x1x8x8xf32> to vector<8x8xf32>
    %c0_9 = arith.constant 0 : index
    %c0_10 = arith.constant 0 : index
    %c0_11 = arith.constant 0 : index
    %c0_12 = arith.constant 0 : index
    %6 = vector.load %arg4[%c0_9, %c0_10, %c0_11, %c0_12] : memref<1x1x8x16xf32, #tpu.memory_space<vmem>>, vector<1x1x8x16xf32>
    %7 = vector.shape_cast %6 : vector<1x1x8x16xf32> to vector<8x16xf32>
    %c0_13 = arith.constant 0 : index
    %c0_14 = arith.constant 0 : index
    %8 = vector.load %arg5[%c0_13, %c0_14] : memref<32x96xbf16, #tpu.memory_space<vmem>>, vector<32x96xbf16>
    %c0_15 = arith.constant 0 : index
    %c0_16 = arith.constant 0 : index
    %9 = vector.load %arg6[%c0_15, %c0_16] : memref<32x32xbf16, #tpu.memory_space<vmem>>, vector<32x32xbf16>
    %10 = arith.truncf %1 : vector<8x32xf32> to vector<8x32xbf16>
    %cst = arith.constant dense<0.000000e+00> : vector<8x96xf32>
    %11 = tpu.matmul %10, %8, %cst {dimension_numbers = #tpu.dot_dimension_numbers<[1], [0], [0], [1], [0, 0, 1, 1], [], []>} : vector<8x32xbf16>, vector<32x96xbf16>, vector<8x96xf32> -> vector<8x96xf32>
    %12 = vector.extract_strided_slice %11 {offsets = [0, 0], sizes = [8, 32], strides = [1, 1]} : vector<8x96xf32> to vector<8x32xf32>
    %13 = vector.extract_strided_slice %11 {offsets = [0, 32], sizes = [8, 32], strides = [1, 1]} : vector<8x96xf32> to vector<8x32xf32>
    %14 = vector.extract_strided_slice %11 {offsets = [0, 64], sizes = [8, 32], strides = [1, 1]} : vector<8x96xf32> to vector<8x32xf32>
    %15 = vector.extract_strided_slice %12 {offsets = [0, 0], sizes = [8, 8], strides = [1, 1]} : vector<8x32xf32> to vector<8x8xf32>
    %16 = vector.extract_strided_slice %12 {offsets = [0, 8], sizes = [8, 8], strides = [1, 1]} : vector<8x32xf32> to vector<8x8xf32>
    %17 = vector.extract_strided_slice %12 {offsets = [0, 16], sizes = [8, 8], strides = [1, 1]} : vector<8x32xf32> to vector<8x8xf32>
    %18 = vector.extract_strided_slice %12 {offsets = [0, 24], sizes = [8, 8], strides = [1, 1]} : vector<8x32xf32> to vector<8x8xf32>
    %19 = vector.shape_cast %15 : vector<8x8xf32> to vector<1x8x8xf32>
    %20 = vector.shape_cast %16 : vector<8x8xf32> to vector<1x8x8xf32>
    %21 = vector.shape_cast %17 : vector<8x8xf32> to vector<1x8x8xf32>
    %22 = vector.shape_cast %18 : vector<8x8xf32> to vector<1x8x8xf32>
    %23 = tpu.concatenate %19, %20, %21, %22 in 0 : vector<1x8x8xf32>, vector<1x8x8xf32>, vector<1x8x8xf32>, vector<1x8x8xf32> -> vector<4x8x8xf32>
    %24 = arith.truncf %23 : vector<4x8x8xf32> to vector<4x8x8xbf16>
    %25 = vector.extract_strided_slice %13 {offsets = [0, 0], sizes = [8, 8], strides = [1, 1]} : vector<8x32xf32> to vector<8x8xf32>
    %26 = vector.extract_strided_slice %13 {offsets = [0, 8], sizes = [8, 8], strides = [1, 1]} : vector<8x32xf32> to vector<8x8xf32>
    %27 = vector.extract_strided_slice %13 {offsets = [0, 16], sizes = [8, 8], strides = [1, 1]} : vector<8x32xf32> to vector<8x8xf32>
    %28 = vector.extract_strided_slice %13 {offsets = [0, 24], sizes = [8, 8], strides = [1, 1]} : vector<8x32xf32> to vector<8x8xf32>
    %29 = vector.shape_cast %25 : vector<8x8xf32> to vector<1x8x8xf32>
    %30 = vector.shape_cast %26 : vector<8x8xf32> to vector<1x8x8xf32>
    %31 = vector.shape_cast %27 : vector<8x8xf32> to vector<1x8x8xf32>
    %32 = vector.shape_cast %28 : vector<8x8xf32> to vector<1x8x8xf32>
    %33 = tpu.concatenate %29, %30, %31, %32 in 0 : vector<1x8x8xf32>, vector<1x8x8xf32>, vector<1x8x8xf32>, vector<1x8x8xf32> -> vector<4x8x8xf32>
    %34 = arith.truncf %33 : vector<4x8x8xf32> to vector<4x8x8xbf16>
    %35 = vector.extract_strided_slice %14 {offsets = [0, 0], sizes = [8, 8], strides = [1, 1]} : vector<8x32xf32> to vector<8x8xf32>
    %36 = vector.extract_strided_slice %14 {offsets = [0, 8], sizes = [8, 8], strides = [1, 1]} : vector<8x32xf32> to vector<8x8xf32>
    %37 = vector.extract_strided_slice %14 {offsets = [0, 16], sizes = [8, 8], strides = [1, 1]} : vector<8x32xf32> to vector<8x8xf32>
    %38 = vector.extract_strided_slice %14 {offsets = [0, 24], sizes = [8, 8], strides = [1, 1]} : vector<8x32xf32> to vector<8x8xf32>
    %39 = vector.shape_cast %35 : vector<8x8xf32> to vector<1x8x8xf32>
    %40 = vector.shape_cast %36 : vector<8x8xf32> to vector<1x8x8xf32>
    %41 = vector.shape_cast %37 : vector<8x8xf32> to vector<1x8x8xf32>
    %42 = vector.shape_cast %38 : vector<8x8xf32> to vector<1x8x8xf32>
    %43 = tpu.concatenate %39, %40, %41, %42 in 0 : vector<1x8x8xf32>, vector<1x8x8xf32>, vector<1x8x8xf32>, vector<1x8x8xf32> -> vector<4x8x8xf32>
    %44 = arith.truncf %43 : vector<4x8x8xf32> to vector<4x8x8xbf16>
    "tpu.trace_start"() <{level = 10 : i32, message = "hqd,hkd->hqk"}> : () -> ()
    %cst_17 = arith.constant dense<0.000000e+00> : vector<4x8x8xf32>
    %45 = tpu.matmul %24, %34, %cst_17 {dimension_numbers = #tpu.dot_dimension_numbers<[2], [2], [1], [1], [0, 0, 0, 1, 1, 1], [0], [0]>} : vector<4x8x8xbf16>, vector<4x8x8xbf16>, vector<4x8x8xf32> -> vector<4x8x8xf32>
    "tpu.trace_stop"() : () -> ()
    %46 = vector.shape_cast %5 : vector<8x8xf32> to vector<1x8x8xf32>
    %cst_18 = arith.constant -1.000000e+09 : f32
    %47 = vector.broadcast %cst_18 : f32 to vector<1x8x8xf32>
    %48 = arith.mulf %46, %47 : vector<1x8x8xf32>
    %49 = vector.broadcast %48 : vector<1x8x8xf32> to vector<4x8x8xf32>
    %50 = arith.addf %45, %49 : vector<4x8x8xf32>
    %cst_19 = arith.constant 0.353553385 : f32
    %51 = vector.broadcast %cst_19 : f32 to vector<4x8x8xf32>
    %52 = arith.mulf %50, %51 : vector<4x8x8xf32>
    %cst_20 = arith.constant dense<0xFF800000> : vector<4x8xf32>
    %53 = vector.multi_reduction <maximumf>, %52, %cst_20 [2] : vector<4x8x8xf32> to vector<4x8xf32>
    %54 = vector.shape_cast %53 : vector<4x8xf32> to vector<4x8x1xf32>
    %55 = vector.broadcast %54 : vector<4x8x1xf32> to vector<4x8x8xf32>
    %56 = arith.subf %52, %55 : vector<4x8x8xf32>
    %57 = math.exp %56 : vector<4x8x8xf32>
    %cst_21 = arith.constant dense<0.000000e+00> : vector<4x8xf32>
    %58 = vector.multi_reduction <add>, %57, %cst_21 [2] : vector<4x8x8xf32> to vector<4x8xf32>
    %59 = vector.shape_cast %58 : vector<4x8xf32> to vector<4x8x1xf32>
    %60 = tpu.reciprocal %59 {approx = true} : vector<4x8x1xf32> -> vector<4x8x1xf32>
    %61 = vector.broadcast %60 : vector<4x8x1xf32> to vector<4x8x8xf32>
    %62 = arith.mulf %57, %61 : vector<4x8x8xf32>
    %63 = arith.truncf %62 : vector<4x8x8xf32> to vector<4x8x8xbf16>
    "tpu.trace_start"() <{level = 10 : i32, message = "hqk,hkd->hqd"}> : () -> ()
    %cst_22 = arith.constant dense<0.000000e+00> : vector<4x8x8xf32>
    %64 = tpu.matmul %63, %44, %cst_22 {dimension_numbers = #tpu.dot_dimension_numbers<[2], [1], [1], [2], [0, 0, 0, 1, 1, 2], [0], [0]>} : vector<4x8x8xbf16>, vector<4x8x8xbf16>, vector<4x8x8xf32> -> vector<4x8x8xf32>
    "tpu.trace_stop"() : () -> ()
    %65 = vector.extract_strided_slice %64 {offsets = [0, 0, 0], sizes = [1, 8, 8], strides = [1, 1, 1]} : vector<4x8x8xf32> to vector<1x8x8xf32>
    %66 = vector.shape_cast %65 : vector<1x8x8xf32> to vector<8x8xf32>
    %67 = vector.extract_strided_slice %64 {offsets = [1, 0, 0], sizes = [1, 8, 8], strides = [1, 1, 1]} : vector<4x8x8xf32> to vector<1x8x8xf32>
    %68 = vector.shape_cast %67 : vector<1x8x8xf32> to vector<8x8xf32>
    %69 = vector.extract_strided_slice %64 {offsets = [2, 0, 0], sizes = [1, 8, 8], strides = [1, 1, 1]} : vector<4x8x8xf32> to vector<1x8x8xf32>
    %70 = vector.shape_cast %69 : vector<1x8x8xf32> to vector<8x8xf32>
    %71 = vector.extract_strided_slice %64 {offsets = [3, 0, 0], sizes = [1, 8, 8], strides = [1, 1, 1]} : vector<4x8x8xf32> to vector<1x8x8xf32>
    %72 = vector.shape_cast %71 : vector<1x8x8xf32> to vector<8x8xf32>
    %73 = tpu.concatenate %66, %68, %70, %72 in 1 : vector<8x8xf32>, vector<8x8xf32>, vector<8x8xf32>, vector<8x8xf32> -> vector<8x32xf32>
    %74 = arith.truncf %73 : vector<8x32xf32> to vector<8x32xbf16>
    %cst_23 = arith.constant dense<0.000000e+00> : vector<8x32xf32>
    %75 = tpu.matmul %74, %9, %cst_23 {dimension_numbers = #tpu.dot_dimension_numbers<[1], [0], [0], [1], [0, 0, 1, 1], [], []>} : vector<8x32xbf16>, vector<32x32xbf16>, vector<8x32xf32> -> vector<8x32xf32>
    %c0_24 = arith.constant 0 : index
    %c0_25 = arith.constant 0 : index
    %c0_26 = arith.constant 0 : index
    %c0_27 = arith.constant 0 : index
    %76 = vector.load %arg20[%c0_24, %c0_25, %c0_26, %c0_27] : memref<1x4x8x8xf32, #tpu.memory_space<vmem>>, vector<1x4x8x8xf32>
    %77 = vector.shape_cast %76 : vector<1x4x8x8xf32> to vector<4x8x8xf32>
    %78 = vector.shape_cast %62 : vector<4x8x8xf32> to vector<1x4x8x8xf32>
    tpu.vector_store %arg20[%c0_24, %c0_25, %c0_26, %c0_27], %78 {strides = array<i32>} : memref<1x4x8x8xf32, #tpu.memory_space<vmem>>, vector<1x4x8x8xf32>,
    %c0_28 = arith.constant 0 : index
    %c0_29 = arith.constant 0 : index
    %79 = vector.load %arg7[%c0_28, %c0_29] : memref<1x32xf32, #tpu.memory_space<vmem>>, vector<1x32xf32>
    %c0_30 = arith.constant 0 : index
    %c0_31 = arith.constant 0 : index
    %80 = vector.load %arg8[%c0_30, %c0_31] : memref<1x32xf32, #tpu.memory_space<vmem>>, vector<1x32xf32>
    %81 = arith.addf %1, %75 : vector<8x32xf32>
    %cst_32 = arith.constant dense<0.000000e+00> : vector<8xf32>
    %82 = vector.multi_reduction <add>, %81, %cst_32 [1] : vector<8x32xf32> to vector<8xf32>
    %83 = vector.shape_cast %82 : vector<8xf32> to vector<8x1xf32>
    %cst_33 = arith.constant 3.200000e+01 : f32
    %84 = vector.broadcast %cst_33 : f32 to vector<8x1xf32>
    %85 = arith.divf %83, %84 : vector<8x1xf32>
    %86 = vector.broadcast %85 : vector<8x1xf32> to vector<8x32xf32>
    %87 = arith.subf %81, %86 : vector<8x32xf32>
    %88 = arith.mulf %87, %87 : vector<8x32xf32>
    %cst_34 = arith.constant dense<0.000000e+00> : vector<8xf32>
    %89 = vector.multi_reduction <add>, %88, %cst_34 [1] : vector<8x32xf32> to vector<8xf32>
    %90 = vector.shape_cast %89 : vector<8xf32> to vector<8x1xf32>
    %cst_35 = arith.constant 3.200000e+01 : f32
    %91 = vector.broadcast %cst_35 : f32 to vector<8x1xf32>
    %92 = arith.divf %90, %91 : vector<8x1xf32>
    %93 = vector.broadcast %85 : vector<8x1xf32> to vector<8x32xf32>
    %94 = arith.subf %81, %93 : vector<8x32xf32>
    %cst_36 = arith.constant 9.99999974E-6 : f32
    %95 = vector.broadcast %cst_36 : f32 to vector<8x1xf32>
    %96 = arith.addf %92, %95 : vector<8x1xf32>
    %97 = math.rsqrt %96 : vector<8x1xf32>
    %98 = vector.broadcast %97 : vector<8x1xf32> to vector<8x32xf32>
    %99 = arith.mulf %94, %98 : vector<8x32xf32>
    %100 = vector.broadcast %79 : vector<1x32xf32> to vector<8x32xf32>
    %101 = arith.mulf %99, %100 : vector<8x32xf32>
    %102 = vector.broadcast %80 : vector<1x32xf32> to vector<8x32xf32>
    %103 = arith.addf %101, %102 : vector<8x32xf32>
    %c0_37 = arith.constant 0 : index
    %c0_38 = arith.constant 0 : index
    %104 = vector.load %arg9[%c0_37, %c0_38] : memref<32x96xbf16, #tpu.memory_space<vmem>>, vector<32x96xbf16>
    %c0_39 = arith.constant 0 : index
    %c0_40 = arith.constant 0 : index
    %105 = vector.load %arg10[%c0_39, %c0_40] : memref<32x32xbf16, #tpu.memory_space<vmem>>, vector<32x32xbf16>
    %106 = arith.truncf %103 : vector<8x32xf32> to vector<8x32xbf16>
    %107 = vector.extract_strided_slice %104 {offsets = [0, 0], sizes = [32, 32], strides = [1, 1]} : vector<32x96xbf16> to vector<32x32xbf16>
    %cst_41 = arith.constant dense<0.000000e+00> : vector<8x32xf32>
    %108 = tpu.matmul %106, %107, %cst_41 {dimension_numbers = #tpu.dot_dimension_numbers<[1], [0], [0], [1], [0, 0, 1, 1], [], []>} : vector<8x32xbf16>, vector<32x32xbf16>, vector<8x32xf32> -> vector<8x32xf32>
    %109 = arith.truncf %3 : vector<16x32xf32> to vector<16x32xbf16>
    %110 = vector.extract_strided_slice %104 {offsets = [0, 32], sizes = [32, 64], strides = [1, 1]} : vector<32x96xbf16> to vector<32x64xbf16>
    %cst_42 = arith.constant dense<0.000000e+00> : vector<16x64xf32>
    %111 = tpu.matmul %109, %110, %cst_42 {dimension_numbers = #tpu.dot_dimension_numbers<[1], [0], [0], [1], [0, 0, 1, 1], [], []>} : vector<16x32xbf16>, vector<32x64xbf16>, vector<16x64xf32> -> vector<16x64xf32>
    %112 = vector.extract_strided_slice %111 {offsets = [0, 0], sizes = [16, 32], strides = [1, 1]} : vector<16x64xf32> to vector<16x32xf32>
    %113 = vector.extract_strided_slice %111 {offsets = [0, 32], sizes = [16, 32], strides = [1, 1]} : vector<16x64xf32> to vector<16x32xf32>
    %114 = vector.extract_strided_slice %108 {offsets = [0, 0], sizes = [8, 8], strides = [1, 1]} : vector<8x32xf32> to vector<8x8xf32>
    %115 = vector.extract_strided_slice %108 {offsets = [0, 8], sizes = [8, 8], strides = [1, 1]} : vector<8x32xf32> to vector<8x8xf32>
    %116 = vector.extract_strided_slice %108 {offsets = [0, 16], sizes = [8, 8], strides = [1, 1]} : vector<8x32xf32> to vector<8x8xf32>
    %117 = vector.extract_strided_slice %108 {offsets = [0, 24], sizes = [8, 8], strides = [1, 1]} : vector<8x32xf32> to vector<8x8xf32>
    %118 = vector.shape_cast %114 : vector<8x8xf32> to vector<1x8x8xf32>
    %119 = vector.shape_cast %115 : vector<8x8xf32> to vector<1x8x8xf32>
    %120 = vector.shape_cast %116 : vector<8x8xf32> to vector<1x8x8xf32>
    %121 = vector.shape_cast %117 : vector<8x8xf32> to vector<1x8x8xf32>
    %122 = tpu.concatenate %118, %119, %120, %121 in 0 : vector<1x8x8xf32>, vector<1x8x8xf32>, vector<1x8x8xf32>, vector<1x8x8xf32> -> vector<4x8x8xf32>
    %123 = arith.truncf %122 : vector<4x8x8xf32> to vector<4x8x8xbf16>
    %124 = vector.extract_strided_slice %112 {offsets = [0, 0], sizes = [16, 8], strides = [1, 1]} : vector<16x32xf32> to vector<16x8xf32>
    %125 = vector.extract_strided_slice %112 {offsets = [0, 8], sizes = [16, 8], strides = [1, 1]} : vector<16x32xf32> to vector<16x8xf32>
    %126 = vector.extract_strided_slice %112 {offsets = [0, 16], sizes = [16, 8], strides = [1, 1]} : vector<16x32xf32> to vector<16x8xf32>
    %127 = vector.extract_strided_slice %112 {offsets = [0, 24], sizes = [16, 8], strides = [1, 1]} : vector<16x32xf32> to vector<16x8xf32>
    %128 = vector.shape_cast %124 : vector<16x8xf32> to vector<1x16x8xf32>
    %129 = vector.shape_cast %125 : vector<16x8xf32> to vector<1x16x8xf32>
    %130 = vector.shape_cast %126 : vector<16x8xf32> to vector<1x16x8xf32>
    %131 = vector.shape_cast %127 : vector<16x8xf32> to vector<1x16x8xf32>
    %132 = tpu.concatenate %128, %129, %130, %131 in 0 : vector<1x16x8xf32>, vector<1x16x8xf32>, vector<1x16x8xf32>, vector<1x16x8xf32> -> vector<4x16x8xf32>
    %133 = arith.truncf %132 : vector<4x16x8xf32> to vector<4x16x8xbf16>
    %134 = vector.extract_strided_slice %113 {offsets = [0, 0], sizes = [16, 8], strides = [1, 1]} : vector<16x32xf32> to vector<16x8xf32>
    %135 = vector.extract_strided_slice %113 {offsets = [0, 8], sizes = [16, 8], strides = [1, 1]} : vector<16x32xf32> to vector<16x8xf32>
    %136 = vector.extract_strided_slice %113 {offsets = [0, 16], sizes = [16, 8], strides = [1, 1]} : vector<16x32xf32> to vector<16x8xf32>
    %137 = vector.extract_strided_slice %113 {offsets = [0, 24], sizes = [16, 8], strides = [1, 1]} : vector<16x32xf32> to vector<16x8xf32>
    %138 = vector.shape_cast %134 : vector<16x8xf32> to vector<1x16x8xf32>
    %139 = vector.shape_cast %135 : vector<16x8xf32> to vector<1x16x8xf32>
    %140 = vector.shape_cast %136 : vector<16x8xf32> to vector<1x16x8xf32>
    %141 = vector.shape_cast %137 : vector<16x8xf32> to vector<1x16x8xf32>
    %142 = tpu.concatenate %138, %139, %140, %141 in 0 : vector<1x16x8xf32>, vector<1x16x8xf32>, vector<1x16x8xf32>, vector<1x16x8xf32> -> vector<4x16x8xf32>
    %143 = arith.truncf %142 : vector<4x16x8xf32> to vector<4x16x8xbf16>
    "tpu.trace_start"() <{level = 10 : i32, message = "hqd,hkd->hqk"}> : () -> ()
    %cst_43 = arith.constant dense<0.000000e+00> : vector<4x8x16xf32>
    %144 = tpu.matmul %123, %133, %cst_43 {dimension_numbers = #tpu.dot_dimension_numbers<[2], [2], [1], [1], [0, 0, 0, 1, 1, 1], [0], [0]>} : vector<4x8x8xbf16>, vector<4x16x8xbf16>, vector<4x8x16xf32> -> vector<4x8x16xf32>
    "tpu.trace_stop"() : () -> ()
    %145 = vector.shape_cast %7 : vector<8x16xf32> to vector<1x8x16xf32>
    %cst_44 = arith.constant -1.000000e+09 : f32
    %146 = vector.broadcast %cst_44 : f32 to vector<1x8x16xf32>
    %147 = arith.mulf %145, %146 : vector<1x8x16xf32>
    %148 = vector.broadcast %147 : vector<1x8x16xf32> to vector<4x8x16xf32>
    %149 = arith.addf %144, %148 : vector<4x8x16xf32>
    %cst_45 = arith.constant 0.353553385 : f32
    %150 = vector.broadcast %cst_45 : f32 to vector<4x8x16xf32>
    %151 = arith.mulf %149, %150 : vector<4x8x16xf32>
    %cst_46 = arith.constant dense<0xFF800000> : vector<4x8xf32>
    %152 = vector.multi_reduction <maximumf>, %151, %cst_46 [2] : vector<4x8x16xf32> to vector<4x8xf32>
    %153 = vector.shape_cast %152 : vector<4x8xf32> to vector<4x8x1xf32>
    %154 = vector.broadcast %153 : vector<4x8x1xf32> to vector<4x8x16xf32>
    %155 = arith.subf %151, %154 : vector<4x8x16xf32>
    %156 = math.exp %155 : vector<4x8x16xf32>
    %cst_47 = arith.constant dense<0.000000e+00> : vector<4x8xf32>
    %157 = vector.multi_reduction <add>, %156, %cst_47 [2] : vector<4x8x16xf32> to vector<4x8xf32>
    %158 = vector.shape_cast %157 : vector<4x8xf32> to vector<4x8x1xf32>
    %159 = tpu.reciprocal %158 {approx = true} : vector<4x8x1xf32> -> vector<4x8x1xf32>
    %160 = vector.broadcast %159 : vector<4x8x1xf32> to vector<4x8x16xf32>
    %161 = arith.mulf %156, %160 : vector<4x8x16xf32>
    %162 = arith.truncf %161 : vector<4x8x16xf32> to vector<4x8x16xbf16>
    "tpu.trace_start"() <{level = 10 : i32, message = "hqk,hkd->hqd"}> : () -> ()
    %cst_48 = arith.constant dense<0.000000e+00> : vector<4x8x8xf32>
    %163 = tpu.matmul %162, %143, %cst_48 {dimension_numbers = #tpu.dot_dimension_numbers<[2], [1], [1], [2], [0, 0, 0, 1, 1, 2], [0], [0]>} : vector<4x8x16xbf16>, vector<4x16x8xbf16>, vector<4x8x8xf32> -> vector<4x8x8xf32>
    "tpu.trace_stop"() : () -> ()
    %164 = vector.extract_strided_slice %163 {offsets = [0, 0, 0], sizes = [1, 8, 8], strides = [1, 1, 1]} : vector<4x8x8xf32> to vector<1x8x8xf32>
    %165 = vector.shape_cast %164 : vector<1x8x8xf32> to vector<8x8xf32>
    %166 = vector.extract_strided_slice %163 {offsets = [1, 0, 0], sizes = [1, 8, 8], strides = [1, 1, 1]} : vector<4x8x8xf32> to vector<1x8x8xf32>
    %167 = vector.shape_cast %166 : vector<1x8x8xf32> to vector<8x8xf32>
    %168 = vector.extract_strided_slice %163 {offsets = [2, 0, 0], sizes = [1, 8, 8], strides = [1, 1, 1]} : vector<4x8x8xf32> to vector<1x8x8xf32>
    %169 = vector.shape_cast %168 : vector<1x8x8xf32> to vector<8x8xf32>
    %170 = vector.extract_strided_slice %163 {offsets = [3, 0, 0], sizes = [1, 8, 8], strides = [1, 1, 1]} : vector<4x8x8xf32> to vector<1x8x8xf32>
    %171 = vector.shape_cast %170 : vector<1x8x8xf32> to vector<8x8xf32>
    %172 = tpu.concatenate %165, %167, %169, %171 in 1 : vector<8x8xf32>, vector<8x8xf32>, vector<8x8xf32>, vector<8x8xf32> -> vector<8x32xf32>
    %173 = arith.truncf %172 : vector<8x32xf32> to vector<8x32xbf16>
    %cst_49 = arith.constant dense<0.000000e+00> : vector<8x32xf32>
    %174 = tpu.matmul %173, %105, %cst_49 {dimension_numbers = #tpu.dot_dimension_numbers<[1], [0], [0], [1], [0, 0, 1, 1], [], []>} : vector<8x32xbf16>, vector<32x32xbf16>, vector<8x32xf32> -> vector<8x32xf32>
    %c0_50 = arith.constant 0 : index
    %c0_51 = arith.constant 0 : index
    %c0_52 = arith.constant 0 : index
    %c0_53 = arith.constant 0 : index
    %175 = vector.load %arg21[%c0_50, %c0_51, %c0_52, %c0_53] : memref<1x4x8x16xf32, #tpu.memory_space<vmem>>, vector<1x4x8x16xf32>
    %176 = vector.shape_cast %175 : vector<1x4x8x16xf32> to vector<4x8x16xf32>
    %177 = vector.shape_cast %161 : vector<4x8x16xf32> to vector<1x4x8x16xf32>
    tpu.vector_store %arg21[%c0_50, %c0_51, %c0_52, %c0_53], %177 {strides = array<i32>} : memref<1x4x8x16xf32, #tpu.memory_space<vmem>>, vector<1x4x8x16xf32>,
    %c0_54 = arith.constant 0 : index
    %c0_55 = arith.constant 0 : index
    %178 = vector.load %arg11[%c0_54, %c0_55] : memref<1x32xf32, #tpu.memory_space<vmem>>, vector<1x32xf32>
    %c0_56 = arith.constant 0 : index
    %c0_57 = arith.constant 0 : index
    %179 = vector.load %arg12[%c0_56, %c0_57] : memref<1x32xf32, #tpu.memory_space<vmem>>, vector<1x32xf32>
    %180 = arith.addf %103, %174 : vector<8x32xf32>
    %cst_58 = arith.constant dense<0.000000e+00> : vector<8xf32>
    %181 = vector.multi_reduction <add>, %180, %cst_58 [1] : vector<8x32xf32> to vector<8xf32>
    %182 = vector.shape_cast %181 : vector<8xf32> to vector<8x1xf32>
    %cst_59 = arith.constant 3.200000e+01 : f32
    %183 = vector.broadcast %cst_59 : f32 to vector<8x1xf32>
    %184 = arith.divf %182, %183 : vector<8x1xf32>
    %185 = vector.broadcast %184 : vector<8x1xf32> to vector<8x32xf32>
    %186 = arith.subf %180, %185 : vector<8x32xf32>
    %187 = arith.mulf %186, %186 : vector<8x32xf32>
    %cst_60 = arith.constant dense<0.000000e+00> : vector<8xf32>
    %188 = vector.multi_reduction <add>, %187, %cst_60 [1] : vector<8x32xf32> to vector<8xf32>
    %189 = vector.shape_cast %188 : vector<8xf32> to vector<8x1xf32>
    %cst_61 = arith.constant 3.200000e+01 : f32
    %190 = vector.broadcast %cst_61 : f32 to vector<8x1xf32>
    %191 = arith.divf %189, %190 : vector<8x1xf32>
    %192 = vector.broadcast %184 : vector<8x1xf32> to vector<8x32xf32>
    %193 = arith.subf %180, %192 : vector<8x32xf32>
    %cst_62 = arith.constant 9.99999974E-6 : f32
    %194 = vector.broadcast %cst_62 : f32 to vector<8x1xf32>
    %195 = arith.addf %191, %194 : vector<8x1xf32>
    %196 = math.rsqrt %195 : vector<8x1xf32>
    %197 = vector.broadcast %196 : vector<8x1xf32> to vector<8x32xf32>
    %198 = arith.mulf %193, %197 : vector<8x32xf32>
    %199 = vector.broadcast %178 : vector<1x32xf32> to vector<8x32xf32>
    %200 = arith.mulf %198, %199 : vector<8x32xf32>
    %201 = vector.broadcast %179 : vector<1x32xf32> to vector<8x32xf32>
    %202 = arith.addf %200, %201 : vector<8x32xf32>
    %c0_63 = arith.constant 0 : index
    %c0_64 = arith.constant 0 : index
    %203 = vector.load %arg13[%c0_63, %c0_64] : memref<32x64xbf16, #tpu.memory_space<vmem>>, vector<32x64xbf16>
    %c0_65 = arith.constant 0 : index
    %c0_66 = arith.constant 0 : index
    %204 = vector.load %arg14[%c0_65, %c0_66] : memref<1x64xf32, #tpu.memory_space<vmem>>, vector<1x64xf32>
    %c0_67 = arith.constant 0 : index
    %c0_68 = arith.constant 0 : index
    %205 = vector.load %arg15[%c0_67, %c0_68] : memref<64x32xbf16, #tpu.memory_space<vmem>>, vector<64x32xbf16>
    %c0_69 = arith.constant 0 : index
    %c0_70 = arith.constant 0 : index
    %206 = vector.load %arg16[%c0_69, %c0_70] : memref<1x32xf32, #tpu.memory_space<vmem>>, vector<1x32xf32>
    %207 = arith.truncf %202 : vector<8x32xf32> to vector<8x32xbf16>
    %cst_71 = arith.constant dense<0.000000e+00> : vector<8x64xf32>
    %208 = tpu.matmul %207, %203, %cst_71 {dimension_numbers = #tpu.dot_dimension_numbers<[1], [0], [0], [1], [0, 0, 1, 1], [], []>} : vector<8x32xbf16>, vector<32x64xbf16>, vector<8x64xf32> -> vector<8x64xf32>
    %209 = vector.broadcast %204 : vector<1x64xf32> to vector<8x64xf32>
    %210 = arith.addf %208, %209 : vector<8x64xf32>
    %cst_72 = arith.constant 0.000000e+00 : f32
    %211 = vector.broadcast %cst_72 : f32 to vector<8x64xf32>
    %212 = arith.maximumf %210, %211 : vector<8x64xf32>
    %213 = arith.truncf %212 : vector<8x64xf32> to vector<8x64xbf16>
    %cst_73 = arith.constant dense<0.000000e+00> : vector<8x32xf32>
    %214 = tpu.matmul %213, %205, %cst_73 {dimension_numbers = #tpu.dot_dimension_numbers<[1], [0], [0], [1], [0, 0, 1, 1], [], []>} : vector<8x64xbf16>, vector<64x32xbf16>, vector<8x32xf32> -> vector<8x32xf32>
    %215 = vector.broadcast %206 : vector<1x32xf32> to vector<8x32xf32>
    %216 = arith.addf %214, %215 : vector<8x32xf32>
    %c0_74 = arith.constant 0 : index
    %c0_75 = arith.constant 0 : index
    %217 = vector.load %arg17[%c0_74, %c0_75] : memref<1x32xf32, #tpu.memory_space<vmem>>, vector<1x32xf32>
    %c0_76 = arith.constant 0 : index
    %c0_77 = arith.constant 0 : index
    %218 = vector.load %arg18[%c0_76, %c0_77] : memref<1x32xf32, #tpu.memory_space<vmem>>, vector<1x32xf32>
    %219 = arith.addf %202, %216 : vector<8x32xf32>
    %cst_78 = arith.constant dense<0.000000e+00> : vector<8xf32>
    %220 = vector.multi_reduction <add>, %219, %cst_78 [1] : vector<8x32xf32> to vector<8xf32>
    %221 = vector.shape_cast %220 : vector<8xf32> to vector<8x1xf32>
    %cst_79 = arith.constant 3.200000e+01 : f32
    %222 = vector.broadcast %cst_79 : f32 to vector<8x1xf32>
    %223 = arith.divf %221, %222 : vector<8x1xf32>
    %224 = vector.broadcast %223 : vector<8x1xf32> to vector<8x32xf32>
    %225 = arith.subf %219, %224 : vector<8x32xf32>
    %226 = arith.mulf %225, %225 : vector<8x32xf32>
    %cst_80 = arith.constant dense<0.000000e+00> : vector<8xf32>
    %227 = vector.multi_reduction <add>, %226, %cst_80 [1] : vector<8x32xf32> to vector<8xf32>
    %228 = vector.shape_cast %227 : vector<8xf32> to vector<8x1xf32>
    %cst_81 = arith.constant 3.200000e+01 : f32
    %229 = vector.broadcast %cst_81 : f32 to vector<8x1xf32>
    %230 = arith.divf %228, %229 : vector<8x1xf32>
    %231 = vector.broadcast %223 : vector<8x1xf32> to vector<8x32xf32>
    %232 = arith.subf %219, %231 : vector<8x32xf32>
    %cst_82 = arith.constant 9.99999974E-6 : f32
    %233 = vector.broadcast %cst_82 : f32 to vector<8x1xf32>
    %234 = arith.addf %230, %233 : vector<8x1xf32>
    %235 = math.rsqrt %234 : vector<8x1xf32>
    %236 = vector.broadcast %235 : vector<8x1xf32> to vector<8x32xf32>
    %237 = arith.mulf %232, %236 : vector<8x32xf32>
    %238 = vector.broadcast %217 : vector<1x32xf32> to vector<8x32xf32>
    %239 = arith.mulf %237, %238 : vector<8x32xf32>
    %240 = vector.broadcast %218 : vector<1x32xf32> to vector<8x32xf32>
    %241 = arith.addf %239, %240 : vector<8x32xf32>
    %c0_83 = arith.constant 0 : index
    %c0_84 = arith.constant 0 : index
    %c0_85 = arith.constant 0 : index
    %242 = vector.load %arg19[%c0_83, %c0_84, %c0_85] : memref<1x8x32xf32, #tpu.memory_space<vmem>>, vector<1x8x32xf32>
    %243 = vector.shape_cast %242 : vector<1x8x32xf32> to vector<8x32xf32>
    %244 = vector.shape_cast %241 : vector<8x32xf32> to vector<1x8x32xf32>
    tpu.vector_store %arg19[%c0_83, %c0_84, %c0_85], %244 {strides = array<i32>} : memref<1x8x32xf32, #tpu.memory_space<vmem>>, vector<1x8x32xf32>,
    return
  }
  func.func @transform_0(%arg0: i32) -> (i32, i32, i32) {
    %c0_i32 = arith.constant 0 : i32
    %c0_i32_0 = arith.constant 0 : i32
    %c0_i32_1 = arith.constant 0 : i32
    return %arg0, %c0_i32, %c0_i32_0 : i32, i32, i32
  }
  func.func @transform_1(%arg0: i32) -> (i32, i32, i32) {
    %c0_i32 = arith.constant 0 : i32
    %c0_i32_0 = arith.constant 0 : i32
    %c0_i32_1 = arith.constant 0 : i32
    return %arg0, %c0_i32, %c0_i32_0 : i32, i32, i32
  }
  func.func @transform_2(%arg0: i32) -> (i32, i32, i32, i32) {
    %c0_i32 = arith.constant 0 : i32
    %c0_i32_0 = arith.constant 0 : i32
    %c0_i32_1 = arith.constant 0 : i32
    %c0_i32_2 = arith.constant 0 : i32
    return %arg0, %c0_i32, %c0_i32_0, %c0_i32_1 : i32, i32, i32, i32
  }
  func.func @transform_3(%arg0: i32) -> (i32, i32, i32, i32) {
    %c0_i32 = arith.constant 0 : i32
    %c0_i32_0 = arith.constant 0 : i32
    %c0_i32_1 = arith.constant 0 : i32
    %c0_i32_2 = arith.constant 0 : i32
    return %arg0, %c0_i32, %c0_i32_0, %c0_i32_1 : i32, i32, i32, i32
  }
  func.func @transform_4(%arg0: i32) -> (i32, i32) {
    %c0_i32 = arith.constant 0 : i32
    %c0_i32_0 = arith.constant 0 : i32
    %c0_i32_1 = arith.constant 0 : i32
    return %c0_i32, %c0_i32_0 : i32, i32
  }
  func.func @transform_5(%arg0: i32) -> (i32, i32) {
    %c0_i32 = arith.constant 0 : i32
    %c0_i32_0 = arith.constant 0 : i32
    %c0_i32_1 = arith.constant 0 : i32
    return %c0_i32, %c0_i32_0 : i32, i32
  }
  func.func @transform_6(%arg0: i32) -> (i32, i32) {
    %c0_i32 = arith.constant 0 : i32
    %c0_i32_0 = arith.constant 0 : i32
    %c0_i32_1 = arith.constant 0 : i32
    return %c0_i32, %c0_i32_0 : i32, i32
  }
  func.func @transform_7(%arg0: i32) -> (i32, i32) {
    %c0_i32 = arith.constant 0 : i32
    %c0_i32_0 = arith.constant 0 : i32
    %c0_i32_1 = arith.constant 0 : i32
    return %c0_i32, %c0_i32_0 : i32, i32
  }
  func.func @transform_8(%arg0: i32) -> (i32, i32) {
    %c0_i32 = arith.constant 0 : i32
    %c0_i32_0 = arith.constant 0 : i32
    %c0_i32_1 = arith.constant 0 : i32
    return %c0_i32, %c0_i32_0 : i32, i32
  }
  func.func @transform_9(%arg0: i32) -> (i32, i32) {
    %c0_i32 = arith.constant 0 : i32
    %c0_i32_0 = arith.constant 0 : i32
    %c0_i32_1 = arith.constant 0 : i32
    return %c0_i32, %c0_i32_0 : i32, i32
  }
  func.func @transform_10(%arg0: i32) -> (i32, i32) {
    %c0_i32 = arith.constant 0 : i32
    %c0_i32_0 = arith.constant 0 : i32
    %c0_i32_1 = arith.constant 0 : i32
    return %c0_i32, %c0_i32_0 : i32, i32
  }
  func.func @transform_11(%arg0: i32) -> (i32, i32) {
    %c0_i32 = arith.constant 0 : i32
    %c0_i32_0 = arith.constant 0 : i32
    %c0_i32_1 = arith.constant 0 : i32
    return %c0_i32, %c0_i32_0 : i32, i32
  }
  func.func @transform_12(%arg0: i32) -> (i32, i32) {
    %c0_i32 = arith.constant 0 : i32
    %c0_i32_0 = arith.constant 0 : i32
    %c0_i32_1 = arith.constant 0 : i32
    return %c0_i32, %c0_i32_0 : i32, i32
  }
  func.func @transform_13(%arg0: i32) -> (i32, i32) {
    %c0_i32 = arith.constant 0 : i32
    %c0_i32_0 = arith.constant 0 : i32
    %c0_i32_1 = arith.constant 0 : i32
    return %c0_i32, %c0_i32_0 : i32, i32
  }
  func.func @transform_14(%arg0: i32) -> (i32, i32) {
    %c0_i32 = arith.constant 0 : i32
    %c0_i32_0 = arith.constant 0 : i32
    %c0_i32_1 = arith.constant 0 : i32
    return %c0_i32, %c0_i32_0 : i32, i32
  }
  func.func @transform_15(%arg0: i32) -> (i32, i32) {
    %c0_i32 = arith.constant 0 : i32
    %c0_i32_0 = arith.constant 0 : i32
    %c0_i32_1 = arith.constant 0 : i32
    return %c0_i32, %c0_i32_0 : i32, i32
  }
  func.func @transform_16(%arg0: i32) -> (i32, i32) {
    %c0_i32 = arith.constant 0 : i32
    %c0_i32_0 = arith.constant 0 : i32
    %c0_i32_1 = arith.constant 0 : i32
    return %c0_i32, %c0_i32_0 : i32, i32
  }
  func.func @transform_17(%arg0: i32) -> (i32, i32) {
    %c0_i32 = arith.constant 0 : i32
    %c0_i32_0 = arith.constant 0 : i32
    %c0_i32_1 = arith.constant 0 : i32
    return %c0_i32, %c0_i32_0 : i32, i32
  }
  func.func @transform_18(%arg0: i32) -> (i32, i32, i32) {
    %c0_i32 = arith.constant 0 : i32
    %c0_i32_0 = arith.constant 0 : i32
    %c0_i32_1 = arith.constant 0 : i32
    return %arg0, %c0_i32, %c0_i32_0 : i32, i32, i32
  }
  func.func @transform_19(%arg0: i32) -> (i32, i32, i32, i32) {
    %c0_i32 = arith.constant 0 : i32
    %c0_i32_0 = arith.constant 0 : i32
    %c0_i32_1 = arith.constant 0 : i32
    %c0_i32_2 = arith.constant 0 : i32
    return %arg0, %c0_i32, %c0_i32_0, %c0_i32_1 : i32, i32, i32, i32
  }
  func.func @transform_20(%arg0: i32) -> (i32, i32, i32, i32) {
    %c0_i32 = arith.constant 0 : i32
    %c0_i32_0 = arith.constant 0 : i32
    %c0_i32_1 = arith.constant 0 : i32
    %c0_i32_2 = arith.constant 0 : i32
    return %arg0, %c0_i32, %c0_i32_0, %c0_i32_1 : i32, i32, i32, i32
  }
}

</mosaic_0001>

<llo_original>
// kernel: _lambda_.9
$region0: #{_lambda_.9}
  #allocation0 [shape = 'u32[]', space=smem, size = 0x4, offset = 0x4, fixed_abs, tag = 'smem constant byte address 0x4 - core index']
  #allocation1 [shape = 'u32[144,128]{1,0:T(1,128)}', space=vmem, size = 0x12000, scoped, tag = 'internal scratch']
  %s0 = inlined_call_operand.vmem [shape: f32[16,32], index: 0, kind: input, shape index: {}]
  %s1 = inlined_call_operand.vmem [shape: bf16[32,64], index: 1, kind: input, shape index: {}]
  %s2 = inlined_call_operand.vmem [shape: f32[1,64], index: 2, kind: input, shape index: {}]
  %s3 = inlined_call_operand.hbm [shape: f32[16,64], index: 3, kind: output, shape index: {}]
  %s4 = sld [smem:[#allocation0]]
  $region22: #{_lambda_.9} parent=0
    _
  %s6 = ssub.s32 1, %s4
  %s7 = scalar_select 0, %s6, %s4
  $region1: #{_lambda_.9} parent=0
    #allocation2 [shape = 'u8[8192]{0}', space=vmem, size = 0x2000, scoped, tag = 'output window, operand 0, single buffered']
    #allocation3 [shape = 's32[1]{0}', space=sflag, size = 0x4, scoped, tag = 'scoped memory for _lambda_.9']
    %8 = vsyncpa [#allocation3], 0
    // Predicated region
    $region2: #{_lambda_.9} parent=1 // pred_check
      _
    $region3: #{_lambda_.9} parent=1 // pred_check_branch
      %10 = sbr.rel (0) target = $region5
    $region4: #{_lambda_.9} parent=1 // pred_region
      _
    $region5: #{_lambda_.9} parent=1 // pred_fallthru
      _
    // Predicated region
    $region6: #{_lambda_.9} parent=1 // pred_check
      _
    $region7: #{_lambda_.9} parent=1 // pred_check_branch
      %12 = sbr.rel (0) target = $region9
    $region8: #{_lambda_.9} parent=1 // pred_region
      _
    $region9: #{_lambda_.9} parent=1 // pred_fallthru
      _
    // Predicated region
    $region10: #{_lambda_.9} parent=1 // pred_check
      _
    $region11: #{_lambda_.9} parent=1 // pred_check_branch
      %14 = sbr.rel (0) target = $region13
    $region12: #{_lambda_.9} parent=1 // pred_region
      _
    $region13: #{_lambda_.9} parent=1 // pred_fallthru
      _
    %v16 = vld [vmem:[%s0] sm:$0xff]
    %v17 = vld [vmem:[%s0 + $0x8] sm:$0xff]
    %v18 = vpack.c.bf16 %v17, %v16
    %v19 = vld [vmem:[%s1] sm:$0xf]
    %v20 = vld [vmem:[%s1 + $0x4] sm:$0xf]
    %v21 = vld [vmem:[%s1 + $0x8] sm:$0xf]
    %v22 = vld [vmem:[%s1 + $0xc] sm:$0xf]
    %v23 = vld [vmem:[%s2] sm:$0x1]
    %v25 = vlaneseq
    %v26 = vshrl.u32 %v25, 7
    %v27 = vsub.s32 0, %v26
    %v28 = vrot.slane %v23, %v27
    %v34 = vunpack.c.l.b16 %v19
    %v35 = vunpack.c.l.b16 %v20
    %v36 = vunpack.c.l.b16 %v21
    %v37 = vunpack.c.l.b16 %v22
    %v38 = vpack.c.b16 %v35, %v34
    %v39 = vpack.c.b16 %v37, %v36
    %vm42 = vcmask 261120
    %v44 = vsel %vm42, %v18, 0
    %46 = vmatprep.subr.bf16.mxu0 0
    %47 = vmatpush1.bf16.msra.mxu0 0
    %48 = vmatprep.subr.bf16.mxu0 0
    %49 = vmatpush1.bf16.msra.mxu0 0
    %50 = vmatprep.subr.bf16.mxu0 0
    %51 = vmatpush1.bf16.msra.mxu0 0
    %52 = vmatprep.subr.bf16.mxu0 0
    %53 = vmatpush1.bf16.msra.mxu0 0
    %54 = vmatprep.subr.bf16.mxu0 0
    %55 = vmatpush1.bf16.msra.mxu0 0
    %56 = vmatprep.subr.bf16.mxu0 0
    %57 = vmatpush1.bf16.msra.mxu0 0
    %58 = vmatprep.subr.bf16.mxu0 0
    %59 = vmatpush1.bf16.msra.mxu0 %v39
    %60 = vmatprep.subr.bf16.mxu0 0
    %61 = vmatpush1.bf16.msra.mxu0 %v38
    %62 = vmatprep.subr.bf16.mxu0 0
    %63 = vmatpush2.bf16.msra.mxu0 0
    %64 = vmatprep.subr.bf16.mxu0 0
    %65 = vmatpush2.bf16.msra.mxu0 0
    %66 = vmatprep.subr.bf16.mxu0 0
    %67 = vmatpush2.bf16.msra.mxu0 0
    %68 = vmatprep.subr.bf16.mxu0 0
    %69 = vmatpush2.bf16.msra.mxu0 0
    %70 = vmatprep.subr.bf16.mxu0 0
    %71 = vmatpush2.bf16.msra.mxu0 0
    %72 = vmatprep.subr.bf16.mxu0 0
    %73 = vmatpush2.bf16.msra.mxu0 0
    %74 = vmatprep.subr.bf16.mxu0 0
    %75 = vmatpush2.bf16.msra.mxu0 0
    %76 = vmatprep.subr.bf16.mxu0 0
    %77 = vmatpush2.bf16.msra.mxu0 0
    %78 = vmatprep.mubr.bf16.mxu0 0
    %79 = vmatmul.mubr.bf16.gmra.mxu0 %v44
    %v80 = vpop.f32.mrf.mxu0
    %v81 = vadd.f32 %v28, %v80
    %v82 = vpop.f32.mrf.mxu0
    %v83 = vpop.f32.mrf.mxu0
    %v84 = vadd.f32 %v28, %v83
    %v85 = vpop.f32.mrf.mxu0
    %86 = vdwg.mxu0
    %vm87 = vcmask 523264
    %88 = vst.msk [vmem:[#allocation2] sm:$0xff] %vm87, %v81
    %89 = vst.msk [vmem:[#allocation2 + $0x8] sm:$0xff] %vm87, %v84
    // Predicated region
    $region14: #{_lambda_.9} parent=1 // pred_check
      _
    $region15: #{_lambda_.9} parent=1 // pred_check_branch
      %91 = sbr.rel (0) target = $region17
    $region16: #{_lambda_.9} parent=1 // pred_region
      %s93 = ssub.s32 256, 256
      %94 = vsyncadd [#allocation3], %s93
      %s95 = sshll.u32 [#allocation2], 4
      %s96 = int_to_ptr.vmem [resolvable:$true] %s95
      %101 = dma.vmem_to_hbm [thread:$0]  %s96, 256, %s3, [#allocation3], 128, 128, 8
    $region17: #{_lambda_.9} parent=1 // pred_fallthru
      _
    // Predicated region
    $region18: #{_lambda_.9} parent=1 // pred_check
      _
    $region19: #{_lambda_.9} parent=1 // pred_check_branch
      %103 = sbr.rel (0) target = $region21
    $region20: #{_lambda_.9} parent=1 // pred_region
      %104 = dma.done [#allocation3], 256
    $region21: #{_lambda_.9} parent=1 // pred_fallthru
      _
    %105 = vsyncpa [#allocation3], 1

// kernel: _lambda_.5
$region0: #{_lambda_.5}
  #allocation0 [shape = 'u32[]', space=smem, size = 0x4, offset = 0x4, fixed_abs, tag = 'smem constant byte address 0x4 - core index']
  #allocation1 [shape = 'u32[144,128]{1,0:T(1,128)}', space=vmem, size = 0x12000, scoped, tag = 'internal scratch']
  %s0 = inlined_call_operand.vmem [shape: f32[2,16,32], index: 0, kind: input, shape index: {}]
  %s1 = inlined_call_operand.vmem [shape: f32[2,1,16,16], index: 1, kind: input, shape index: {}]
  %s2 = inlined_call_operand.vmem [shape: bf16[32,96], index: 2, kind: input, shape index: {}]
  %s3 = inlined_call_operand.vmem [shape: bf16[32,32], index: 3, kind: input, shape index: {}]
  %s4 = inlined_call_operand.vmem [shape: f32[1,32], index: 4, kind: input, shape index: {}]
  %s5 = inlined_call_operand.vmem [shape: f32[1,32], index: 5, kind: input, shape index: {}]
  %s6 = inlined_call_operand.vmem [shape: bf16[32,64], index: 6, kind: input, shape index: {}]
  %s7 = inlined_call_operand.vmem [shape: f32[1,64], index: 7, kind: input, shape index: {}]
  %s8 = inlined_call_operand.vmem [shape: bf16[64,32], index: 8, kind: input, shape index: {}]
  %s9 = inlined_call_operand.vmem [shape: f32[1,32], index: 9, kind: input, shape index: {}]
  %s10 = inlined_call_operand.vmem [shape: f32[1,32], index: 10, kind: input, shape index: {}]
  %s11 = inlined_call_operand.vmem [shape: f32[1,32], index: 11, kind: input, shape index: {}]
  %s12 = inlined_call_operand.vmem [shape: f32[2,16,32], index: 12, kind: output, shape index: {0}]
  %s13 = inlined_call_operand.hbm [shape: f32[2,4,16,16], index: 13, kind: output, shape index: {1}]
  %14 = xla_tuple %s12, %s13
  %s15 = sld [smem:[#allocation0]]
  $region89: #{_lambda_.5} parent=0
    _
  %s17 = ssub.s32 1, %s15
  %s18 = scalar_select 0, %s17, %s15
  $region1: #{_lambda_.5} parent=0
    #allocation2 [shape = 'u8[65536]{0}', space=vmem, size = 0x10000, scoped, tag = 'output window, operand 1']
    #allocation3 [shape = 's32[2]{0}', space=sflag, size = 0x8, scoped, tag = 'scoped memory for _lambda_.5']
    %19 = vsyncpa [#allocation3], 0
    %s20 = scalar_lea.sflag [#allocation3], 1
    %21 = vsyncpa %s20, 0
    loop: start=0, step=1, limit=4
    $region2: #{_lambda_.5} parent=1 // loop_pre_header
      _
    $region3: #{_lambda_.5} parent=1 // loop_header
      %s23 = sphi 0, %s27
      %p24 = scmp.ge.s32.totalorder %s23, 4
      %s33 = sphi 0, %s35
      %s36 = sphi 0, %s33
      %s37 = sphi 0, %s36
      %s53 = sphi 0, %s37
      %s59 = sphi 0, %s61
      %s62 = sphi 0, %s59
      %s63 = sphi 0, %s62
      %s79 = sphi 0, %s63
      %s83 = sphi 0, %s83
      %s85 = sphi 0, %s83
      %s86 = sphi 0, %s85
      %s100 = sphi 0, %s86
      %s104 = sphi 0, %s104
      %s106 = sphi 0, %s104
      %s107 = sphi 0, %s106
      %s121 = sphi 0, %s107
      %s125 = sphi 0, %s125
      %s127 = sphi 0, %s125
      %s128 = sphi 0, %s127
      %s142 = sphi 0, %s128
      %s146 = sphi 0, %s146
      %s148 = sphi 0, %s146
      %s149 = sphi 0, %s148
      %s163 = sphi 0, %s149
      %s167 = sphi 0, %s167
      %s169 = sphi 0, %s167
      %s170 = sphi 0, %s169
      %s184 = sphi 0, %s170
      %s188 = sphi 0, %s188
      %s190 = sphi 0, %s188
      %s191 = sphi 0, %s190
      %s205 = sphi 0, %s191
      %s209 = sphi 0, %s209
      %s211 = sphi 0, %s209
      %s212 = sphi 0, %s211
      %s226 = sphi 0, %s212
      %s230 = sphi 0, %s230
      %s232 = sphi 0, %s230
      %s233 = sphi 0, %s232
      %s247 = sphi 0, %s233
      %s251 = sphi 0, %s251
      %s253 = sphi 0, %s251
      %s254 = sphi 0, %s253
      %s268 = sphi 0, %s254
      %s272 = sphi 0, %s272
      %s274 = sphi 0, %s272
      %s275 = sphi 0, %s274
      %s289 = sphi 0, %s275
      %s295 = sphi 0, %s297
      %s298 = sphi 0, %s295
      %s299 = sphi 0, %s298
      %s315 = sphi 0, %s299
      %s321 = sphi 0, %s323
      %s324 = sphi 0, %s321
      %s325 = sphi 0, %s324
      %s341 = sphi 0, %s325
    $region4: #{_lambda_.5} parent=1 // loop_header_branch
      %26 = sbr.rel (%p24) target = $region8
    $region5: #{_lambda_.5} parent=1 // loop_body
      %s28 = ssub.s32 %s23, 1
      %s29 = ssub.s32 %s23, 2
      %s30 = sadd.s32 %s23, 1
      %s31 = ssub.s32 %s23, %s30
      %p32 = scmp.eq.s32.totalorder %s31, 0
      %s34 = sadd.s32 %s33, 1
      %s35 = scalar_select %p32, %s33, %s34
      %p38 = pneg %p32
      %p39 = scmp.eq.s32.totalorder %s23, 1
      %p40 = por %p38, %p39
      %p41 = scmp.ne.s32.totalorder %s33, %s36
      %p42 = scmp.eq.s32.totalorder %s23, 0
      %p43 = por %p41, %p42
      %p44 = scmp.ne.s32.totalorder %s33, %s36
      %p45 = scmp.eq.s32.totalorder %s28, 1
      %p46 = por %p44, %p45
      %p47 = scmp.ne.s32.totalorder %s36, %s37
      %p48 = scmp.eq.s32.totalorder %s28, 0
      %p49 = por %p47, %p48
      %p50 = scmp.ne.s32.totalorder %s36, %s37
      %p51 = scmp.eq.s32.totalorder %s29, 1
      %p52 = por %p50, %p51
      %p54 = scmp.ne.s32.totalorder %s37, %s53
      %p55 = scmp.eq.s32.totalorder %s29, 0
      %p56 = por %p54, %p55
      %s57 = ssub.s32 %s23, %s30
      %p58 = scmp.eq.s32.totalorder %s57, 0
      %s60 = sadd.s32 %s59, 1
      %s61 = scalar_select %p58, %s59, %s60
      %p64 = pneg %p58
      %p65 = scmp.eq.s32.totalorder %s23, 1
      %p66 = por %p64, %p65
      %p67 = scmp.ne.s32.totalorder %s59, %s62
      %p68 = scmp.eq.s32.totalorder %s23, 0
      %p69 = por %p67, %p68
      %p70 = scmp.ne.s32.totalorder %s59, %s62
      %p71 = scmp.eq.s32.totalorder %s28, 1
      %p72 = por %p70, %p71
      %p73 = scmp.ne.s32.totalorder %s62, %s63
      %p74 = scmp.eq.s32.totalorder %s28, 0
      %p75 = por %p73, %p74
      %p76 = scmp.ne.s32.totalorder %s62, %s63
      %p77 = scmp.eq.s32.totalorder %s29, 1
      %p78 = por %p76, %p77
      %p80 = scmp.ne.s32.totalorder %s63, %s79
      %p81 = scmp.eq.s32.totalorder %s29, 0
      %p82 = por %p80, %p81
      %s84 = sadd.s32 %s83, 1
      %p87 = scmp.eq.s32.totalorder %s23, 1
      %p88 = scmp.ne.s32.totalorder %s83, %s85
      %p89 = scmp.eq.s32.totalorder %s23, 0
      %p90 = por %p88, %p89
      %p91 = scmp.ne.s32.totalorder %s83, %s85
      %p92 = scmp.eq.s32.totalorder %s28, 1
      %p93 = por %p91, %p92
      %p94 = scmp.ne.s32.totalorder %s85, %s86
      %p95 = scmp.eq.s32.totalorder %s28, 0
      %p96 = por %p94, %p95
      %p97 = scmp.ne.s32.totalorder %s85, %s86
      %p98 = scmp.eq.s32.totalorder %s29, 1
      %p99 = por %p97, %p98
      %p101 = scmp.ne.s32.totalorder %s86, %s100
      %p102 = scmp.eq.s32.totalorder %s29, 0
      %p103 = por %p101, %p102
      %s105 = sadd.s32 %s104, 1
      %p108 = scmp.eq.s32.totalorder %s23, 1
      %p109 = scmp.ne.s32.totalorder %s104, %s106
      %p110 = scmp.eq.s32.totalorder %s23, 0
      %p111 = por %p109, %p110
      %p112 = scmp.ne.s32.totalorder %s104, %s106
      %p113 = scmp.eq.s32.totalorder %s28, 1
      %p114 = por %p112, %p113
      %p115 = scmp.ne.s32.totalorder %s106, %s107
      %p116 = scmp.eq.s32.totalorder %s28, 0
      %p117 = por %p115, %p116
      %p118 = scmp.ne.s32.totalorder %s106, %s107
      %p119 = scmp.eq.s32.totalorder %s29, 1
      %p120 = por %p118, %p119
      %p122 = scmp.ne.s32.totalorder %s107, %s121
      %p123 = scmp.eq.s32.totalorder %s29, 0
      %p124 = por %p122, %p123
      %s126 = sadd.s32 %s125, 1
      %p129 = scmp.eq.s32.totalorder %s23, 1
      %p130 = scmp.ne.s32.totalorder %s125, %s127
      %p131 = scmp.eq.s32.totalorder %s23, 0
      %p132 = por %p130, %p131
      %p133 = scmp.ne.s32.totalorder %s125, %s127
      %p134 = scmp.eq.s32.totalorder %s28, 1
      %p135 = por %p133, %p134
      %p136 = scmp.ne.s32.totalorder %s127, %s128
      %p137 = scmp.eq.s32.totalorder %s28, 0
      %p138 = por %p136, %p137
      %p139 = scmp.ne.s32.totalorder %s127, %s128
      %p140 = scmp.eq.s32.totalorder %s29, 1
      %p141 = por %p139, %p140
      %p143 = scmp.ne.s32.totalorder %s128, %s142
      %p144 = scmp.eq.s32.totalorder %s29, 0
      %p145 = por %p143, %p144
      %s147 = sadd.s32 %s146, 1
      %p150 = scmp.eq.s32.totalorder %s23, 1
      %p151 = scmp.ne.s32.totalorder %s146, %s148
      %p152 = scmp.eq.s32.totalorder %s23, 0
      %p153 = por %p151, %p152
      %p154 = scmp.ne.s32.totalorder %s146, %s148
      %p155 = scmp.eq.s32.totalorder %s28, 1
      %p156 = por %p154, %p155
      %p157 = scmp.ne.s32.totalorder %s148, %s149
      %p158 = scmp.eq.s32.totalorder %s28, 0
      %p159 = por %p157, %p158
      %p160 = scmp.ne.s32.totalorder %s148, %s149
      %p161 = scmp.eq.s32.totalorder %s29, 1
      %p162 = por %p160, %p161
      %p164 = scmp.ne.s32.totalorder %s149, %s163
      %p165 = scmp.eq.s32.totalorder %s29, 0
      %p166 = por %p164, %p165
      %s168 = sadd.s32 %s167, 1
      %p171 = scmp.eq.s32.totalorder %s23, 1
      %p172 = scmp.ne.s32.totalorder %s167, %s169
      %p173 = scmp.eq.s32.totalorder %s23, 0
      %p174 = por %p172, %p173
      %p175 = scmp.ne.s32.totalorder %s167, %s169
      %p176 = scmp.eq.s32.totalorder %s28, 1
      %p177 = por %p175, %p176
      %p178 = scmp.ne.s32.totalorder %s169, %s170
      %p179 = scmp.eq.s32.totalorder %s28, 0
      %p180 = por %p178, %p179
      %p181 = scmp.ne.s32.totalorder %s169, %s170
      %p182 = scmp.eq.s32.totalorder %s29, 1
      %p183 = por %p181, %p182
      %p185 = scmp.ne.s32.totalorder %s170, %s184
      %p186 = scmp.eq.s32.totalorder %s29, 0
      %p187 = por %p185, %p186
      %s189 = sadd.s32 %s188, 1
      %p192 = scmp.eq.s32.totalorder %s23, 1
      %p193 = scmp.ne.s32.totalorder %s188, %s190
      %p194 = scmp.eq.s32.totalorder %s23, 0
      %p195 = por %p193, %p194
      %p196 = scmp.ne.s32.totalorder %s188, %s190
      %p197 = scmp.eq.s32.totalorder %s28, 1
      %p198 = por %p196, %p197
      %p199 = scmp.ne.s32.totalorder %s190, %s191
      %p200 = scmp.eq.s32.totalorder %s28, 0
      %p201 = por %p199, %p200
      %p202 = scmp.ne.s32.totalorder %s190, %s191
      %p203 = scmp.eq.s32.totalorder %s29, 1
      %p204 = por %p202, %p203
      %p206 = scmp.ne.s32.totalorder %s191, %s205
      %p207 = scmp.eq.s32.totalorder %s29, 0
      %p208 = por %p206, %p207
      %s210 = sadd.s32 %s209, 1
      %p213 = scmp.eq.s32.totalorder %s23, 1
      %p214 = scmp.ne.s32.totalorder %s209, %s211
      %p215 = scmp.eq.s32.totalorder %s23, 0
      %p216 = por %p214, %p215
      %p217 = scmp.ne.s32.totalorder %s209, %s211
      %p218 = scmp.eq.s32.totalorder %s28, 1
      %p219 = por %p217, %p218
      %p220 = scmp.ne.s32.totalorder %s211, %s212
      %p221 = scmp.eq.s32.totalorder %s28, 0
      %p222 = por %p220, %p221
      %p223 = scmp.ne.s32.totalorder %s211, %s212
      %p224 = scmp.eq.s32.totalorder %s29, 1
      %p225 = por %p223, %p224
      %p227 = scmp.ne.s32.totalorder %s212, %s226
      %p228 = scmp.eq.s32.totalorder %s29, 0
      %p229 = por %p227, %p228
      %s231 = sadd.s32 %s230, 1
      %p234 = scmp.eq.s32.totalorder %s23, 1
      %p235 = scmp.ne.s32.totalorder %s230, %s232
      %p236 = scmp.eq.s32.totalorder %s23, 0
      %p237 = por %p235, %p236
      %p238 = scmp.ne.s32.totalorder %s230, %s232
      %p239 = scmp.eq.s32.totalorder %s28, 1
      %p240 = por %p238, %p239
      %p241 = scmp.ne.s32.totalorder %s232, %s233
      %p242 = scmp.eq.s32.totalorder %s28, 0
      %p243 = por %p241, %p242
      %p244 = scmp.ne.s32.totalorder %s232, %s233
      %p245 = scmp.eq.s32.totalorder %s29, 1
      %p246 = por %p244, %p245
      %p248 = scmp.ne.s32.totalorder %s233, %s247
      %p249 = scmp.eq.s32.totalorder %s29, 0
      %p250 = por %p248, %p249
      %s252 = sadd.s32 %s251, 1
      %p255 = scmp.eq.s32.totalorder %s23, 1
      %p256 = scmp.ne.s32.totalorder %s251, %s253
      %p257 = scmp.eq.s32.totalorder %s23, 0
      %p258 = por %p256, %p257
      %p259 = scmp.ne.s32.totalorder %s251, %s253
      %p260 = scmp.eq.s32.totalorder %s28, 1
      %p261 = por %p259, %p260
      %p262 = scmp.ne.s32.totalorder %s253, %s254
      %p263 = scmp.eq.s32.totalorder %s28, 0
      %p264 = por %p262, %p263
      %p265 = scmp.ne.s32.totalorder %s253, %s254
      %p266 = scmp.eq.s32.totalorder %s29, 1
      %p267 = por %p265, %p266
      %p269 = scmp.ne.s32.totalorder %s254, %s268
      %p270 = scmp.eq.s32.totalorder %s29, 0
      %p271 = por %p269, %p270
      %s273 = sadd.s32 %s272, 1
      %p276 = scmp.eq.s32.totalorder %s23, 1
      %p277 = scmp.ne.s32.totalorder %s272, %s274
      %p278 = scmp.eq.s32.totalorder %s23, 0
      %p279 = por %p277, %p278
      %p280 = scmp.ne.s32.totalorder %s272, %s274
      %p281 = scmp.eq.s32.totalorder %s28, 1
      %p282 = por %p280, %p281
      %p283 = scmp.ne.s32.totalorder %s274, %s275
      %p284 = scmp.eq.s32.totalorder %s28, 0
      %p285 = por %p283, %p284
      %p286 = scmp.ne.s32.totalorder %s274, %s275
      %p287 = scmp.eq.s32.totalorder %s29, 1
      %p288 = por %p286, %p287
      %p290 = scmp.ne.s32.totalorder %s275, %s289
      %p291 = scmp.eq.s32.totalorder %s29, 0
      %p292 = por %p290, %p291
      %s293 = ssub.s32 %s23, %s30
      %p294 = scmp.eq.s32.totalorder %s293, 0
      %s296 = sadd.s32 %s295, 1
      %s297 = scalar_select %p294, %s295, %s296
      %p300 = pneg %p294
      %p301 = scmp.eq.s32.totalorder %s23, 1
      %p302 = por %p300, %p301
      %p303 = scmp.ne.s32.totalorder %s295, %s298
      %p304 = scmp.eq.s32.totalorder %s23, 0
      %p305 = por %p303, %p304
      %p306 = scmp.ne.s32.totalorder %s295, %s298
      %p307 = scmp.eq.s32.totalorder %s28, 1
      %p308 = por %p306, %p307
      %p309 = scmp.ne.s32.totalorder %s298, %s299
      %p310 = scmp.eq.s32.totalorder %s28, 0
      %p311 = por %p309, %p310
      %p312 = scmp.ne.s32.totalorder %s298, %s299
      %p313 = scmp.eq.s32.totalorder %s29, 1
      %p314 = por %p312, %p313
      %p316 = scmp.ne.s32.totalorder %s299, %s315
      %p317 = scmp.eq.s32.totalorder %s29, 0
      %p318 = por %p316, %p317
      %s319 = ssub.s32 %s23, %s30
      %p320 = scmp.eq.s32.totalorder %s319, 0
      %s322 = sadd.s32 %s321, 1
      %s323 = scalar_select %p320, %s321, %s322
      %p326 = pneg %p320
      %p327 = scmp.eq.s32.totalorder %s23, 1
      %p328 = por %p326, %p327
      %p329 = scmp.ne.s32.totalorder %s321, %s324
      %p330 = scmp.eq.s32.totalorder %s23, 0
      %p331 = por %p329, %p330
      %p332 = scmp.ne.s32.totalorder %s321, %s324
      %p333 = scmp.eq.s32.totalorder %s28, 1
      %p334 = por %p332, %p333
      %p335 = scmp.ne.s32.totalorder %s324, %s325
      %p336 = scmp.eq.s32.totalorder %s28, 0
      %p337 = por %p335, %p336
      %p338 = scmp.ne.s32.totalorder %s324, %s325
      %p339 = scmp.eq.s32.totalorder %s29, 1
      %p340 = por %p338, %p339
      %p342 = scmp.ne.s32.totalorder %s325, %s341
      %p343 = scmp.eq.s32.totalorder %s29, 0
      %p344 = por %p342, %p343
      %p345 = scmp.le.s32.totalorder 1, %s23
      %p346 = scmp.lt.s32.totalorder %s23, 3
      %p347 = pnand %p345, %p346
      %p348 = pneg %p347
      // Predicated region
      $region9: #{_lambda_.5} parent=5 // pred_check
        _
      $region10: #{_lambda_.5} parent=5 // pred_check_branch
        %350 = sbr.rel (%p347) target = $region12
      $region11: #{_lambda_.5} parent=5 // pred_region
        %s351 = ssub.s32 %s23, 1
        // Predicated region
        $region13: #{_lambda_.5} parent=11 // pred_check
          %p352 = pneg %p96
        $region14: #{_lambda_.5} parent=11 // pred_check_branch
          %354 = sbr.rel (%p352) target = $region16
        $region15: #{_lambda_.5} parent=11 // pred_region
          _
        $region16: #{_lambda_.5} parent=11 // pred_fallthru
          _
        // Predicated region
        $region17: #{_lambda_.5} parent=11 // pred_check
          %p355 = pneg %p117
        $region18: #{_lambda_.5} parent=11 // pred_check_branch
          %357 = sbr.rel (%p355) target = $region20
        $region19: #{_lambda_.5} parent=11 // pred_region
          _
        $region20: #{_lambda_.5} parent=11 // pred_fallthru
          _
        // Predicated region
        $region21: #{_lambda_.5} parent=11 // pred_check
          %p358 = pneg %p138
        $region22: #{_lambda_.5} parent=11 // pred_check_branch
          %360 = sbr.rel (%p358) target = $region24
        $region23: #{_lambda_.5} parent=11 // pred_region
          _
        $region24: #{_lambda_.5} parent=11 // pred_fallthru
          _
        // Predicated region
        $region25: #{_lambda_.5} parent=11 // pred_check
          %p361 = pneg %p159
        $region26: #{_lambda_.5} parent=11 // pred_check_branch
          %363 = sbr.rel (%p361) target = $region28
        $region27: #{_lambda_.5} parent=11 // pred_region
          _
        $region28: #{_lambda_.5} parent=11 // pred_fallthru
          _
        // Predicated region
        $region29: #{_lambda_.5} parent=11 // pred_check
          %p364 = pneg %p180
        $region30: #{_lambda_.5} parent=11 // pred_check_branch
          %366 = sbr.rel (%p364) target = $region32
        $region31: #{_lambda_.5} parent=11 // pred_region
          _
        $region32: #{_lambda_.5} parent=11 // pred_fallthru
          _
        // Predicated region
        $region33: #{_lambda_.5} parent=11 // pred_check
          %p367 = pneg %p201
        $region34: #{_lambda_.5} parent=11 // pred_check_branch
          %369 = sbr.rel (%p367) target = $region36
        $region35: #{_lambda_.5} parent=11 // pred_region
          _
        $region36: #{_lambda_.5} parent=11 // pred_fallthru
          _
        // Predicated region
        $region37: #{_lambda_.5} parent=11 // pred_check
          %p370 = pneg %p222
        $region38: #{_lambda_.5} parent=11 // pred_check_branch
          %372 = sbr.rel (%p370) target = $region40
        $region39: #{_lambda_.5} parent=11 // pred_region
          _
        $region40: #{_lambda_.5} parent=11 // pred_fallthru
          _
        // Predicated region
        $region41: #{_lambda_.5} parent=11 // pred_check
          %p373 = pneg %p243
        $region42: #{_lambda_.5} parent=11 // pred_check_branch
          %375 = sbr.rel (%p373) target = $region44
        $region43: #{_lambda_.5} parent=11 // pred_region
          _
        $region44: #{_lambda_.5} parent=11 // pred_fallthru
          _
        // Predicated region
        $region45: #{_lambda_.5} parent=11 // pred_check
          %p376 = pneg %p264
        $region46: #{_lambda_.5} parent=11 // pred_check_branch
          %378 = sbr.rel (%p376) target = $region48
        $region47: #{_lambda_.5} parent=11 // pred_region
          _
        $region48: #{_lambda_.5} parent=11 // pred_fallthru
          _
        // Predicated region
        $region49: #{_lambda_.5} parent=11 // pred_check
          %p379 = pneg %p285
        $region50: #{_lambda_.5} parent=11 // pred_check_branch
          %381 = sbr.rel (%p379) target = $region52
        $region51: #{_lambda_.5} parent=11 // pred_region
          _
        $region52: #{_lambda_.5} parent=11 // pred_fallthru
          _
      $region12: #{_lambda_.5} parent=5 // pred_fallthru
        _
      %p382 = scmp.lt.s32.totalorder %s23, 2
      // Predicated region
      $region53: #{_lambda_.5} parent=5 // pred_check
        %p383 = pneg %p382
      $region54: #{_lambda_.5} parent=5 // pred_check_branch
        %385 = sbr.rel (%p383) target = $region56
      $region55: #{_lambda_.5} parent=5 // pred_region
        // Predicated region
        $region57: #{_lambda_.5} parent=55 // pred_check
          %p386 = pneg %p43
        $region58: #{_lambda_.5} parent=55 // pred_check_branch
          %388 = sbr.rel (%p386) target = $region60
        $region59: #{_lambda_.5} parent=55 // pred_region
          %p389 = scmp.lt.s32.totalorder %s23, 1
          %s390 = scalar_select %p389, %s23, 1
          %s391 = smul.addr %s390, 2
          %s392 = smul.addr %s391, 8
          %s393 = scalar_lea.vmem %s0, %s392
        $region60: #{_lambda_.5} parent=55 // pred_fallthru
          _
        // Predicated region
        $region61: #{_lambda_.5} parent=55 // pred_check
          %p394 = pneg %p69
        $region62: #{_lambda_.5} parent=55 // pred_check_branch
          %396 = sbr.rel (%p394) target = $region64
        $region63: #{_lambda_.5} parent=55 // pred_region
          %p397 = scmp.lt.s32.totalorder %s23, 1
          %s398 = scalar_select %p397, %s23, 1
          %s399 = smul.addr %s398, 2
          %s400 = smul.addr %s399, 8
          %s401 = scalar_lea.vmem %s1, %s400
        $region64: #{_lambda_.5} parent=55 // pred_fallthru
          _
      $region56: #{_lambda_.5} parent=5 // pred_fallthru
        _
      %p402 = scmp.le.s32.totalorder 1, %s23
      %p403 = scmp.lt.s32.totalorder %s23, 3
      %p404 = pnand %p402, %p403
      %p405 = pneg %p404
      // Predicated region
      $region65: #{_lambda_.5} parent=5 // pred_check
        _
      $region66: #{_lambda_.5} parent=5 // pred_check_branch
        %407 = sbr.rel (%p404) target = $region68
      $region67: #{_lambda_.5} parent=5 // pred_region
        %s408 = ssub.s32 %s23, 1
        %p409 = scmp.lt.s32.totalorder %s28, 1
        %s410 = scalar_select %p409, %s28, 1
        %s411 = smul.addr %s410, 2
        %s412 = smul.addr %s411, 8
        %s413 = scalar_lea.vmem %s0, %s412
        %p414 = pneg %p49
        %p415 = pneg %p46
        %p416 = scmp.lt.s32.totalorder %s28, 1
        %s417 = scalar_select %p416, %s28, 1
        %s418 = smul.addr %s417, 2
        %s419 = smul.addr %s418, 8
        %s420 = scalar_lea.vmem %s1, %s419
        %p421 = pneg %p75
        %p422 = pneg %p72
        %p423 = pneg %p96
        %p424 = pneg %p93
        %p425 = pneg %p117
        %p426 = pneg %p114
        %p427 = pneg %p138
        %p428 = pneg %p135
        %p429 = pneg %p159
        %p430 = pneg %p156
        %p431 = pneg %p180
        %p432 = pneg %p177
        %p433 = pneg %p201
        %p434 = pneg %p198
        %p435 = pneg %p222
        %p436 = pneg %p219
        %p437 = pneg %p243
        %p438 = pneg %p240
        %p439 = pneg %p264
        %p440 = pneg %p261
        %p441 = pneg %p285
        %p442 = pneg %p282
        %p443 = pneg %p311
        %p444 = pneg %p308
        %p445 = scmp.lt.s32.totalorder %s28, 1
        %s446 = scalar_select %p445, %s28, 1
        %s447 = smul.addr %s446, 2
        %s448 = smul.addr %s447, 8
        %s449 = scalar_lea.vmem %s12, %s448
        %p450 = pneg %p337
        %p451 = pneg %p334
        %s452 = sand.u32 %s324, 1
        %s453 = scalar_lea.sflag [#allocation3], %s452
        %s454 = sand.u32 %s324, 1
        %s455 = smul.addr %s454, 64
        %s456 = scalar_lea.vmem [#allocation2], %s455
        %p457 = scmp.lt.s32.totalorder %s28, 1
        %s458 = scalar_select %p457, %s28, 1
        %s459 = smul.addr %s458, 2
        %s460 = smul.addr %s459, 8
        %s461 = scalar_lea.vmem %s0, %s460
        %p462 = scmp.lt.s32.totalorder %s28, 1
        %s463 = scalar_select %p462, %s28, 1
        %s464 = smul.addr %s463, 2
        %s465 = smul.addr %s464, 8
        %s466 = scalar_lea.vmem %s1, %s465
        %p467 = scmp.lt.s32.totalorder %s28, 1
        %s468 = scalar_select %p467, %s28, 1
        %s469 = smul.addr %s468, 2
        %s470 = smul.addr %s469, 8
        %s471 = scalar_lea.vmem %s12, %s470
        %v473 = vld [vmem:[%s461] sm:$0xff]
        %v474 = vld [vmem:[%s461 + $0x8] sm:$0xff]
        %v475 = vld [vmem:[%s466] sm:$0xff]
        %v476 = vld [vmem:[%s466 + $0x8] sm:$0xff]
        %v477 = vld [vmem:[%s2] sm:$0xf]
        %v478 = vld [vmem:[%s2 + $0x4] sm:$0xf]
        %v479 = vld [vmem:[%s2 + $0x8] sm:$0xf]
        %v480 = vld [vmem:[%s2 + $0xc] sm:$0xf]
        %v481 = vld [vmem:[%s3] sm:$0xf]
        %v482 = vld [vmem:[%s3 + $0x4] sm:$0xf]
        %v483 = vld [vmem:[%s3 + $0x8] sm:$0xf]
        %v484 = vld [vmem:[%s3 + $0xc] sm:$0xf]
        %v485 = vpack.c.bf16 %v474, %v473
        %v490 = vunpack.c.l.b16 %v477
        %v491 = vunpack.c.l.b16 %v478
        %v492 = vunpack.c.l.b16 %v479
        %v493 = vunpack.c.l.b16 %v480
        %v494 = vpack.c.b16 %v491, %v490
        %v495 = vpack.c.b16 %v493, %v492
        %vm498 = vcmask 261120
        %v500 = vsel %vm498, %v485, 0
        %502 = vmatprep.subr.bf16.mxu0 0
        %503 = vmatpush1.bf16.msra.mxu0 0
        %504 = vmatprep.subr.bf16.mxu0 0
        %505 = vmatpush1.bf16.msra.mxu0 0
        %506 = vmatprep.subr.bf16.mxu0 0
        %507 = vmatpush1.bf16.msra.mxu0 0
        %508 = vmatprep.subr.bf16.mxu0 0
        %509 = vmatpush1.bf16.msra.mxu0 0
        %510 = vmatprep.subr.bf16.mxu0 0
        %511 = vmatpush1.bf16.msra.mxu0 0
        %512 = vmatprep.subr.bf16.mxu0 0
        %513 = vmatpush1.bf16.msra.mxu0 0
        %514 = vmatprep.subr.bf16.mxu0 0
        %515 = vmatpush1.bf16.msra.mxu0 %v495
        %516 = vmatprep.subr.bf16.mxu0 0
        %517 = vmatpush1.bf16.msra.mxu0 %v494
        %518 = vmatprep.subr.bf16.mxu0 0
        %519 = vmatpush2.bf16.msra.mxu0 0
        %520 = vmatprep.subr.bf16.mxu0 0
        %521 = vmatpush2.bf16.msra.mxu0 0
        %522 = vmatprep.subr.bf16.mxu0 0
        %523 = vmatpush2.bf16.msra.mxu0 0
        %524 = vmatprep.subr.bf16.mxu0 0
        %525 = vmatpush2.bf16.msra.mxu0 0
        %526 = vmatprep.subr.bf16.mxu0 0
        %527 = vmatpush2.bf16.msra.mxu0 0
        %528 = vmatprep.subr.bf16.mxu0 0
        %529 = vmatpush2.bf16.msra.mxu0 0
        %530 = vmatprep.subr.bf16.mxu0 0
        %531 = vmatpush2.bf16.msra.mxu0 0
        %532 = vmatprep.subr.bf16.mxu0 0
        %533 = vmatpush2.bf16.msra.mxu0 0
        %534 = vmatprep.mubr.bf16.mxu0 0
        %535 = vmatmul.mubr.bf16.gmra.mxu0 %v500
        %v536 = vpop.f32.mrf.mxu0
        %v537 = vadd.f32 0.0, %v536
        %v538 = vpop.f32.mrf.mxu0
        %v539 = vpop.f32.mrf.mxu0
        %v540 = vadd.f32 0.0, %v539
        %v541 = vpop.f32.mrf.mxu0
        %542 = vdwg.mxu0
        %545 = vrot.lane.b32.xlu0 %v537, 120
        %v546 = vpop.permute.xlu0 %545
        %547 = vrot.lane.b32.xlu0 %v540, 120
        %v548 = vpop.permute.xlu0 %547
        %551 = vrot.lane.b32.xlu0 %v537, 112
        %v552 = vpop.permute.xlu0 %551
        %553 = vrot.lane.b32.xlu0 %v540, 112
        %v554 = vpop.permute.xlu0 %553
        %557 = vrot.lane.b32.xlu0 %v537, 104
        %v558 = vpop.permute.xlu0 %557
        %559 = vrot.lane.b32.xlu0 %v540, 104
        %v560 = vpop.permute.xlu0 %559
        %v563 = vpack.c.bf16 %v540, %v537
        %v564 = vpack.c.bf16 %v548, %v546
        %v565 = vpack.c.bf16 %v554, %v552
        %v566 = vpack.c.bf16 %v560, %v558
        %v567 = vmul.f32 %v475, -1e+09
        %v568 = vmul.f32 %v476, -1e+09
        %570 = vrot.lane.b32.xlu0 %v563, 96
        %v571 = vpop.permute.xlu0 %570
        %vm572 = vcmask 64512
        %v574 = vsel %vm572, %v563, 0
        %v577 = vsel %vm572, %v571, 0
        %579 = vmatprep.subr.bf16.mxu0 0
        %580 = vmatpush1.bf16.xpose.msra.mxu0 0
        %581 = vmatprep.subr.bf16.mxu0 0
        %582 = vmatpush1.bf16.xpose.msra.mxu0 0
        %583 = vmatprep.subr.bf16.mxu0 0
        %584 = vmatpush1.bf16.xpose.msra.mxu0 0
        %585 = vmatprep.subr.bf16.mxu0 0
        %586 = vmatpush1.bf16.xpose.msra.mxu0 0
        %587 = vmatprep.subr.bf16.mxu0 0
        %588 = vmatpush1.bf16.xpose.msra.mxu0 0
        %589 = vmatprep.subr.bf16.mxu0 0
        %590 = vmatpush1.bf16.xpose.msra.mxu0 0
        %591 = vmatprep.subr.bf16.mxu0 0
        %592 = vmatpush1.bf16.xpose.msra.mxu0 0
        %593 = vmatprep.subr.bf16.mxu0 0
        %594 = vmatpush1.bf16.xpose.msra.mxu0 %v577
        %595 = vmatprep.subr.bf16.mxu0 0
        %596 = vmatpush2.bf16.xpose.msra.mxu0 0
        %597 = vmatprep.subr.bf16.mxu0 0
        %598 = vmatpush2.bf16.xpose.msra.mxu0 0
        %599 = vmatprep.subr.bf16.mxu0 0
        %600 = vmatpush2.bf16.xpose.msra.mxu0 0
        %601 = vmatprep.subr.bf16.mxu0 0
        %602 = vmatpush2.bf16.xpose.msra.mxu0 0
        %603 = vmatprep.subr.bf16.mxu0 0
        %604 = vmatpush2.bf16.xpose.msra.mxu0 0
        %605 = vmatprep.subr.bf16.mxu0 0
        %606 = vmatpush2.bf16.xpose.msra.mxu0 0
        %607 = vmatprep.subr.bf16.mxu0 0
        %608 = vmatpush2.bf16.xpose.msra.mxu0 0
        %609 = vmatprep.subr.bf16.mxu0 0
        %610 = vmatpush2.bf16.xpose.msra.mxu0 0
        %611 = vmatprep.mubr.bf16.mxu0 0
        %612 = vmatmul.mubr.bf16.gmra.mxu0 %v574
        %v613 = vpop.f32.mrf.mxu0
        %v614 = vadd.f32 %v567, %v613
        %v615 = vpop.f32.mrf.mxu0
        %v616 = vpop.f32.mrf.mxu0
        %v617 = vadd.f32 %v568, %v616
        %v618 = vpop.f32.mrf.mxu0
        %619 = vdwg.mxu0
        %621 = vrot.lane.b32.xlu0 %v564, 96
        %v622 = vpop.permute.xlu0 %621
        %v624 = vsel %vm572, %v564, 0
        %v627 = vsel %vm572, %v622, 0
        %629 = vmatprep.subr.bf16.mxu0 0
        %630 = vmatpush1.bf16.xpose.msra.mxu0 0
        %631 = vmatprep.subr.bf16.mxu0 0
        %632 = vmatpush1.bf16.xpose.msra.mxu0 0
        %633 = vmatprep.subr.bf16.mxu0 0
        %634 = vmatpush1.bf16.xpose.msra.mxu0 0
        %635 = vmatprep.subr.bf16.mxu0 0
        %636 = vmatpush1.bf16.xpose.msra.mxu0 0
        %637 = vmatprep.subr.bf16.mxu0 0
        %638 = vmatpush1.bf16.xpose.msra.mxu0 0
        %639 = vmatprep.subr.bf16.mxu0 0
        %640 = vmatpush1.bf16.xpose.msra.mxu0 0
        %641 = vmatprep.subr.bf16.mxu0 0
        %642 = vmatpush1.bf16.xpose.msra.mxu0 0
        %643 = vmatprep.subr.bf16.mxu0 0
        %644 = vmatpush1.bf16.xpose.msra.mxu0 %v627
        %645 = vmatprep.subr.bf16.mxu0 0
        %646 = vmatpush2.bf16.xpose.msra.mxu0 0
        %647 = vmatprep.subr.bf16.mxu0 0
        %648 = vmatpush2.bf16.xpose.msra.mxu0 0
        %649 = vmatprep.subr.bf16.mxu0 0
        %650 = vmatpush2.bf16.xpose.msra.mxu0 0
        %651 = vmatprep.subr.bf16.mxu0 0
        %652 = vmatpush2.bf16.xpose.msra.mxu0 0
        %653 = vmatprep.subr.bf16.mxu0 0
        %654 = vmatpush2.bf16.xpose.msra.mxu0 0
        %655 = vmatprep.subr.bf16.mxu0 0
        %656 = vmatpush2.bf16.xpose.msra.mxu0 0
        %657 = vmatprep.subr.bf16.mxu0 0
        %658 = vmatpush2.bf16.xpose.msra.mxu0 0
        %659 = vmatprep.subr.bf16.mxu0 0
        %660 = vmatpush2.bf16.xpose.msra.mxu0 0
        %661 = vmatprep.mubr.bf16.mxu0 0
        %662 = vmatmul.mubr.bf16.gmra.mxu0 %v624
        %v663 = vpop.f32.mrf.mxu0
        %v664 = vadd.f32 %v567, %v663
        %v665 = vpop.f32.mrf.mxu0
        %v666 = vpop.f32.mrf.mxu0
        %v667 = vadd.f32 %v568, %v666
        %v668 = vpop.f32.mrf.mxu0
        %669 = vdwg.mxu0
        %671 = vrot.lane.b32.xlu0 %v565, 96
        %v672 = vpop.permute.xlu0 %671
        %v674 = vsel %vm572, %v565, 0
        %v677 = vsel %vm572, %v672, 0
        %679 = vmatprep.subr.bf16.mxu0 0
        %680 = vmatpush1.bf16.xpose.msra.mxu0 0
        %681 = vmatprep.subr.bf16.mxu0 0
        %682 = vmatpush1.bf16.xpose.msra.mxu0 0
        %683 = vmatprep.subr.bf16.mxu0 0
        %684 = vmatpush1.bf16.xpose.msra.mxu0 0
        %685 = vmatprep.subr.bf16.mxu0 0
        %686 = vmatpush1.bf16.xpose.msra.mxu0 0
        %687 = vmatprep.subr.bf16.mxu0 0
        %688 = vmatpush1.bf16.xpose.msra.mxu0 0
        %689 = vmatprep.subr.bf16.mxu0 0
        %690 = vmatpush1.bf16.xpose.msra.mxu0 0
        %691 = vmatprep.subr.bf16.mxu0 0
        %692 = vmatpush1.bf16.xpose.msra.mxu0 0
        %693 = vmatprep.subr.bf16.mxu0 0
        %694 = vmatpush1.bf16.xpose.msra.mxu0 %v677
        %695 = vmatprep.subr.bf16.mxu0 0
        %696 = vmatpush2.bf16.xpose.msra.mxu0 0
        %697 = vmatprep.subr.bf16.mxu0 0
        %698 = vmatpush2.bf16.xpose.msra.mxu0 0
        %699 = vmatprep.subr.bf16.mxu0 0
        %700 = vmatpush2.bf16.xpose.msra.mxu0 0
        %701 = vmatprep.subr.bf16.mxu0 0
        %702 = vmatpush2.bf16.xpose.msra.mxu0 0
        %703 = vmatprep.subr.bf16.mxu0 0
        %704 = vmatpush2.bf16.xpose.msra.mxu0 0
        %705 = vmatprep.subr.bf16.mxu0 0
        %706 = vmatpush2.bf16.xpose.msra.mxu0 0
        %707 = vmatprep.subr.bf16.mxu0 0
        %708 = vmatpush2.bf16.xpose.msra.mxu0 0
        %709 = vmatprep.subr.bf16.mxu0 0
        %710 = vmatpush2.bf16.xpose.msra.mxu0 0
        %711 = vmatprep.mubr.bf16.mxu0 0
        %712 = vmatmul.mubr.bf16.gmra.mxu0 %v674
        %v713 = vpop.f32.mrf.mxu0
        %v714 = vadd.f32 %v567, %v713
        %v715 = vpop.f32.mrf.mxu0
        %v716 = vpop.f32.mrf.mxu0
        %v717 = vadd.f32 %v568, %v716
        %v718 = vpop.f32.mrf.mxu0
        %719 = vdwg.mxu0
        %721 = vrot.lane.b32.xlu0 %v566, 96
        %v722 = vpop.permute.xlu0 %721
        %v724 = vsel %vm572, %v566, 0
        %v727 = vsel %vm572, %v722, 0
        %729 = vmatprep.subr.bf16.mxu0 0
        %730 = vmatpush1.bf16.xpose.msra.mxu0 0
        %731 = vmatprep.subr.bf16.mxu0 0
        %732 = vmatpush1.bf16.xpose.msra.mxu0 0
        %733 = vmatprep.subr.bf16.mxu0 0
        %734 = vmatpush1.bf16.xpose.msra.mxu0 0
        %735 = vmatprep.subr.bf16.mxu0 0
        %736 = vmatpush1.bf16.xpose.msra.mxu0 0
        %737 = vmatprep.subr.bf16.mxu0 0
        %738 = vmatpush1.bf16.xpose.msra.mxu0 0
        %739 = vmatprep.subr.bf16.mxu0 0
        %740 = vmatpush1.bf16.xpose.msra.mxu0 0
        %741 = vmatprep.subr.bf16.mxu0 0
        %742 = vmatpush1.bf16.xpose.msra.mxu0 0
        %743 = vmatprep.subr.bf16.mxu0 0
        %744 = vmatpush1.bf16.xpose.msra.mxu0 %v727
        %745 = vmatprep.subr.bf16.mxu0 0
        %746 = vmatpush2.bf16.xpose.msra.mxu0 0
        %747 = vmatprep.subr.bf16.mxu0 0
        %748 = vmatpush2.bf16.xpose.msra.mxu0 0
        %749 = vmatprep.subr.bf16.mxu0 0
        %750 = vmatpush2.bf16.xpose.msra.mxu0 0
        %751 = vmatprep.subr.bf16.mxu0 0
        %752 = vmatpush2.bf16.xpose.msra.mxu0 0
        %753 = vmatprep.subr.bf16.mxu0 0
        %754 = vmatpush2.bf16.xpose.msra.mxu0 0
        %755 = vmatprep.subr.bf16.mxu0 0
        %756 = vmatpush2.bf16.xpose.msra.mxu0 0
        %757 = vmatprep.subr.bf16.mxu0 0
        %758 = vmatpush2.bf16.xpose.msra.mxu0 0
        %759 = vmatprep.subr.bf16.mxu0 0
        %760 = vmatpush2.bf16.xpose.msra.mxu0 0
        %761 = vmatprep.mubr.bf16.mxu0 0
        %762 = vmatmul.mubr.bf16.gmra.mxu0 %v724
        %v763 = vpop.f32.mrf.mxu0
        %v764 = vadd.f32 %v567, %v763
        %v765 = vpop.f32.mrf.mxu0
        %v766 = vpop.f32.mrf.mxu0
        %v767 = vadd.f32 %v568, %v766
        %v768 = vpop.f32.mrf.mxu0
        %769 = vdwg.mxu0
        %v770 = vmul.f32 %v614, 0.35355338
        %v771 = vmul.f32 %v617, 0.35355338
        %v772 = vmul.f32 %v664, 0.35355338
        %v773 = vmul.f32 %v667, 0.35355338
        %v774 = vmul.f32 %v714, 0.35355338
        %v775 = vmul.f32 %v717, 0.35355338
        %v776 = vmul.f32 %v764, 0.35355338
        %v777 = vmul.f32 %v767, 0.35355338
        %vm778 = vcmask 130048
        %v779 = vsel %vm778, %v770, -inf
        %780 = vmax.xlane.f32.xlu0 %v779
        %v781 = vpop.xlane.xlu0 %780
        %v782 = vsel %vm778, %v771, -inf
        %783 = vmax.xlane.f32.xlu0 %v782
        %v784 = vpop.xlane.xlu0 %783
        %v785 = vsel %vm778, %v772, -inf
        %786 = vmax.xlane.f32.xlu0 %v785
        %v787 = vpop.xlane.xlu0 %786
        %v788 = vsel %vm778, %v773, -inf
        %789 = vmax.xlane.f32.xlu0 %v788
        %v790 = vpop.xlane.xlu0 %789
        %v791 = vsel %vm778, %v774, -inf
        %792 = vmax.xlane.f32.xlu0 %v791
        %v793 = vpop.xlane.xlu0 %792
        %v794 = vsel %vm778, %v775, -inf
        %795 = vmax.xlane.f32.xlu0 %v794
        %v796 = vpop.xlane.xlu0 %795
        %v797 = vsel %vm778, %v776, -inf
        %798 = vmax.xlane.f32.xlu0 %v797
        %v799 = vpop.xlane.xlu0 %798
        %v800 = vsel %vm778, %v777, -inf
        %801 = vmax.xlane.f32.xlu0 %v800
        %v802 = vpop.xlane.xlu0 %801
        %v803 = vsub.f32 %v770, %v781
        %v804 = vsub.f32 %v771, %v784
        %v805 = vsub.f32 %v772, %v787
        %v806 = vsub.f32 %v773, %v790
        %v807 = vsub.f32 %v774, %v793
        %v808 = vsub.f32 %v775, %v796
        %v809 = vsub.f32 %v776, %v799
        %v810 = vsub.f32 %v777, %v802
        %v811 = vmul.f32 %v803, 1.442695
        %v812 = vpow.pop %v811
        %v813 = vmul.f32 %v804, 1.442695
        %v814 = vpow.pop %v813
        %v815 = vmul.f32 %v805, 1.442695
        %v816 = vpow.pop %v815
        %v817 = vmul.f32 %v806, 1.442695
        %v818 = vpow.pop %v817
        %v819 = vmul.f32 %v807, 1.442695
        %v820 = vpow.pop %v819
        %v821 = vmul.f32 %v808, 1.442695
        %v822 = vpow.pop %v821
        %v823 = vmul.f32 %v809, 1.442695
        %v824 = vpow.pop %v823
        %v825 = vmul.f32 %v810, 1.442695
        %v826 = vpow.pop %v825
        %v827 = vsel %vm778, %v812, 0.0
        %828 = vadd.xlane.f32.xlu0 %v827
        %v829 = vpop.xlane.xlu0 %828
        %v830 = vsel %vm778, %v814, 0.0
        %831 = vadd.xlane.f32.xlu0 %v830
        %v832 = vpop.xlane.xlu0 %831
        %v833 = vsel %vm778, %v816, 0.0
        %834 = vadd.xlane.f32.xlu0 %v833
        %v835 = vpop.xlane.xlu0 %834
        %v836 = vsel %vm778, %v818, 0.0
        %837 = vadd.xlane.f32.xlu0 %v836
        %v838 = vpop.xlane.xlu0 %837
        %v839 = vsel %vm778, %v820, 0.0
        %840 = vadd.xlane.f32.xlu0 %v839
        %v841 = vpop.xlane.xlu0 %840
        %v842 = vsel %vm778, %v822, 0.0
        %843 = vadd.xlane.f32.xlu0 %v842
        %v844 = vpop.xlane.xlu0 %843
        %v845 = vsel %vm778, %v824, 0.0
        %846 = vadd.xlane.f32.xlu0 %v845
        %v847 = vpop.xlane.xlu0 %846
        %v848 = vsel %vm778, %v826, 0.0
        %849 = vadd.xlane.f32.xlu0 %v848
        %v850 = vpop.xlane.xlu0 %849
        %v851 = vrcp.pop %v829
        %v852 = vrcp.pop %v832
        %v853 = vrcp.pop %v835
        %v854 = vrcp.pop %v838
        %v855 = vrcp.pop %v841
        %v856 = vrcp.pop %v844
        %v857 = vrcp.pop %v847
        %v858 = vrcp.pop %v850
        %v859 = vmul.f32 %v812, %v851
        %v860 = vmul.f32 %v814, %v852
        %v861 = vmul.f32 %v816, %v853
        %v862 = vmul.f32 %v818, %v854
        %v863 = vmul.f32 %v820, %v855
        %v864 = vmul.f32 %v822, %v856
        %v865 = vmul.f32 %v824, %v857
        %v866 = vmul.f32 %v826, %v858
        %v867 = vpack.c.bf16 %v860, %v859
        %v868 = vpack.c.bf16 %v862, %v861
        %v869 = vpack.c.bf16 %v864, %v863
        %v870 = vpack.c.bf16 %v866, %v865
        %871 = vrot.lane.b32.xlu0 %v563, 64
        %v872 = vpop.permute.xlu0 %871
        %v875 = vsel %vm778, %v867, 0
        %877 = vmatprep.subr.bf16.mxu0 0
        %878 = vmatpush1.bf16.msra.mxu0 0
        %879 = vmatprep.subr.bf16.mxu0 0
        %880 = vmatpush1.bf16.msra.mxu0 0
        %881 = vmatprep.subr.bf16.mxu0 0
        %882 = vmatpush1.bf16.msra.mxu0 0
        %883 = vmatprep.subr.bf16.mxu0 0
        %884 = vmatpush1.bf16.msra.mxu0 0
        %885 = vmatprep.subr.bf16.mxu0 0
        %886 = vmatpush1.bf16.msra.mxu0 0
        %887 = vmatprep.subr.bf16.mxu0 0
        %888 = vmatpush1.bf16.msra.mxu0 0
        %889 = vmatprep.subr.bf16.mxu0 0
        %890 = vmatpush1.bf16.msra.mxu0 0
        %891 = vmatprep.subr.bf16.mxu0 0
        %892 = vmatpush1.bf16.msra.mxu0 %v872
        %893 = vmatprep.subr.bf16.mxu0 0
        %894 = vmatpush2.bf16.msra.mxu0 0
        %895 = vmatprep.subr.bf16.mxu0 0
        %896 = vmatpush2.bf16.msra.mxu0 0
        %897 = vmatprep.subr.bf16.mxu0 0
        %898 = vmatpush2.bf16.msra.mxu0 0
        %899 = vmatprep.subr.bf16.mxu0 0
        %900 = vmatpush2.bf16.msra.mxu0 0
        %901 = vmatprep.subr.bf16.mxu0 0
        %902 = vmatpush2.bf16.msra.mxu0 0
        %903 = vmatprep.subr.bf16.mxu0 0
        %904 = vmatpush2.bf16.msra.mxu0 0
        %905 = vmatprep.subr.bf16.mxu0 0
        %906 = vmatpush2.bf16.msra.mxu0 0
        %907 = vmatprep.subr.bf16.mxu0 0
        %908 = vmatpush2.bf16.msra.mxu0 0
        %909 = vmatprep.mubr.bf16.mxu0 0
        %910 = vmatmul.mubr.bf16.gmra.mxu0 %v875
        %v911 = vpop.f32.mrf.mxu0
        %v912 = vadd.f32 0.0, %v911
        %v913 = vpop.f32.mrf.mxu0
        %v914 = vpop.f32.mrf.mxu0
        %v915 = vadd.f32 0.0, %v914
        %v916 = vpop.f32.mrf.mxu0
        %917 = vdwg.mxu0
        %918 = vrot.lane.b32.xlu0 %v564, 64
        %v919 = vpop.permute.xlu0 %918
        %v922 = vsel %vm778, %v868, 0
        %924 = vmatprep.subr.bf16.mxu0 0
        %925 = vmatpush1.bf16.msra.mxu0 0
        %926 = vmatprep.subr.bf16.mxu0 0
        %927 = vmatpush1.bf16.msra.mxu0 0
        %928 = vmatprep.subr.bf16.mxu0 0
        %929 = vmatpush1.bf16.msra.mxu0 0
        %930 = vmatprep.subr.bf16.mxu0 0
        %931 = vmatpush1.bf16.msra.mxu0 0
        %932 = vmatprep.subr.bf16.mxu0 0
        %933 = vmatpush1.bf16.msra.mxu0 0
        %934 = vmatprep.subr.bf16.mxu0 0
        %935 = vmatpush1.bf16.msra.mxu0 0
        %936 = vmatprep.subr.bf16.mxu0 0
        %937 = vmatpush1.bf16.msra.mxu0 0
        %938 = vmatprep.subr.bf16.mxu0 0
        %939 = vmatpush1.bf16.msra.mxu0 %v919
        %940 = vmatprep.subr.bf16.mxu0 0
        %941 = vmatpush2.bf16.msra.mxu0 0
        %942 = vmatprep.subr.bf16.mxu0 0
        %943 = vmatpush2.bf16.msra.mxu0 0
        %944 = vmatprep.subr.bf16.mxu0 0
        %945 = vmatpush2.bf16.msra.mxu0 0
        %946 = vmatprep.subr.bf16.mxu0 0
        %947 = vmatpush2.bf16.msra.mxu0 0
        %948 = vmatprep.subr.bf16.mxu0 0
        %949 = vmatpush2.bf16.msra.mxu0 0
        %950 = vmatprep.subr.bf16.mxu0 0
        %951 = vmatpush2.bf16.msra.mxu0 0
        %952 = vmatprep.subr.bf16.mxu0 0
        %953 = vmatpush2.bf16.msra.mxu0 0
        %954 = vmatprep.subr.bf16.mxu0 0
        %955 = vmatpush2.bf16.msra.mxu0 0
        %956 = vmatprep.mubr.bf16.mxu0 0
        %957 = vmatmul.mubr.bf16.gmra.mxu0 %v922
        %v958 = vpop.f32.mrf.mxu0
        %v959 = vadd.f32 0.0, %v958
        %v960 = vpop.f32.mrf.mxu0
        %v961 = vpop.f32.mrf.mxu0
        %v962 = vadd.f32 0.0, %v961
        %v963 = vpop.f32.mrf.mxu0
        %964 = vdwg.mxu0
        %965 = vrot.lane.b32.xlu0 %v565, 64
        %v966 = vpop.permute.xlu0 %965
        %v969 = vsel %vm778, %v869, 0
        %971 = vmatprep.subr.bf16.mxu0 0
        %972 = vmatpush1.bf16.msra.mxu0 0
        %973 = vmatprep.subr.bf16.mxu0 0
        %974 = vmatpush1.bf16.msra.mxu0 0
        %975 = vmatprep.subr.bf16.mxu0 0
        %976 = vmatpush1.bf16.msra.mxu0 0
        %977 = vmatprep.subr.bf16.mxu0 0
        %978 = vmatpush1.bf16.msra.mxu0 0
        %979 = vmatprep.subr.bf16.mxu0 0
        %980 = vmatpush1.bf16.msra.mxu0 0
        %981 = vmatprep.subr.bf16.mxu0 0
        %982 = vmatpush1.bf16.msra.mxu0 0
        %983 = vmatprep.subr.bf16.mxu0 0
        %984 = vmatpush1.bf16.msra.mxu0 0
        %985 = vmatprep.subr.bf16.mxu0 0
        %986 = vmatpush1.bf16.msra.mxu0 %v966
        %987 = vmatprep.subr.bf16.mxu0 0
        %988 = vmatpush2.bf16.msra.mxu0 0
        %989 = vmatprep.subr.bf16.mxu0 0
        %990 = vmatpush2.bf16.msra.mxu0 0
        %991 = vmatprep.subr.bf16.mxu0 0
        %992 = vmatpush2.bf16.msra.mxu0 0
        %993 = vmatprep.subr.bf16.mxu0 0
        %994 = vmatpush2.bf16.msra.mxu0 0
        %995 = vmatprep.subr.bf16.mxu0 0
        %996 = vmatpush2.bf16.msra.mxu0 0
        %997 = vmatprep.subr.bf16.mxu0 0
        %998 = vmatpush2.bf16.msra.mxu0 0
        %999 = vmatprep.subr.bf16.mxu0 0
        %1000 = vmatpush2.bf16.msra.mxu0 0
        %1001 = vmatprep.subr.bf16.mxu0 0
        %1002 = vmatpush2.bf16.msra.mxu0 0
        %1003 = vmatprep.mubr.bf16.mxu0 0
        %1004 = vmatmul.mubr.bf16.gmra.mxu0 %v969
        %v1005 = vpop.f32.mrf.mxu0
        %v1006 = vadd.f32 0.0, %v1005
        %v1007 = vpop.f32.mrf.mxu0
        %v1008 = vpop.f32.mrf.mxu0
        %v1009 = vadd.f32 0.0, %v1008
        %v1010 = vpop.f32.mrf.mxu0
        %1011 = vdwg.mxu0
        %1012 = vrot.lane.b32.xlu0 %v566, 64
        %v1013 = vpop.permute.xlu0 %1012
        %v1016 = vsel %vm778, %v870, 0
        %1018 = vmatprep.subr.bf16.mxu0 0
        %1019 = vmatpush1.bf16.msra.mxu0 0
        %1020 = vmatprep.subr.bf16.mxu0 0
        %1021 = vmatpush1.bf16.msra.mxu0 0
        %1022 = vmatprep.subr.bf16.mxu0 0
        %1023 = vmatpush1.bf16.msra.mxu0 0
        %1024 = vmatprep.subr.bf16.mxu0 0
        %1025 = vmatpush1.bf16.msra.mxu0 0
        %1026 = vmatprep.subr.bf16.mxu0 0
        %1027 = vmatpush1.bf16.msra.mxu0 0
        %1028 = vmatprep.subr.bf16.mxu0 0
        %1029 = vmatpush1.bf16.msra.mxu0 0
        %1030 = vmatprep.subr.bf16.mxu0 0
        %1031 = vmatpush1.bf16.msra.mxu0 0
        %1032 = vmatprep.subr.bf16.mxu0 0
        %1033 = vmatpush1.bf16.msra.mxu0 %v1013
        %1034 = vmatprep.subr.bf16.mxu0 0
        %1035 = vmatpush2.bf16.msra.mxu0 0
        %1036 = vmatprep.subr.bf16.mxu0 0
        %1037 = vmatpush2.bf16.msra.mxu0 0
        %1038 = vmatprep.subr.bf16.mxu0 0
        %1039 = vmatpush2.bf16.msra.mxu0 0
        %1040 = vmatprep.subr.bf16.mxu0 0
        %1041 = vmatpush2.bf16.msra.mxu0 0
        %1042 = vmatprep.subr.bf16.mxu0 0
        %1043 = vmatpush2.bf16.msra.mxu0 0
        %1044 = vmatprep.subr.bf16.mxu0 0
        %1045 = vmatpush2.bf16.msra.mxu0 0
        %1046 = vmatprep.subr.bf16.mxu0 0
        %1047 = vmatpush2.bf16.msra.mxu0 0
        %1048 = vmatprep.subr.bf16.mxu0 0
        %1049 = vmatpush2.bf16.msra.mxu0 0
        %1050 = vmatprep.mubr.bf16.mxu0 0
        %1051 = vmatmul.mubr.bf16.gmra.mxu0 %v1016
        %v1052 = vpop.f32.mrf.mxu0
        %v1053 = vadd.f32 0.0, %v1052
        %v1054 = vpop.f32.mrf.mxu0
        %v1055 = vpop.f32.mrf.mxu0
        %v1056 = vadd.f32 0.0, %v1055
        %v1057 = vpop.f32.mrf.mxu0
        %1058 = vdwg.mxu0
        %1061 = vrot.lane.b32.xlu0 %v959, 8
        %v1062 = vpop.permute.xlu0 %1061
        %1063 = vrot.lane.b32.xlu0 %v962, 8
        %v1064 = vpop.permute.xlu0 %1063
        %1069 = vrot.lane.b32.xlu0 %v1006, 16
        %v1070 = vpop.permute.xlu0 %1069
        %1071 = vrot.lane.b32.xlu0 %v1009, 16
        %v1072 = vpop.permute.xlu0 %1071
        %1077 = vrot.lane.b32.xlu0 %v1053, 24
        %v1078 = vpop.permute.xlu0 %1077
        %1079 = vrot.lane.b32.xlu0 %v1056, 24
        %v1080 = vpop.permute.xlu0 %1079
        %v1083 = vsel %vm572, %v912, %v1062
        %v1084 = vsel %vm572, %v915, %v1064
        %v1085 = vsel %vm778, %v1083, %v1070
        %v1086 = vsel %vm778, %v1084, %v1072
        %vm1087 = vcmask 195584
        %v1088 = vsel %vm1087, %v1085, %v1078
        %v1089 = vsel %vm1087, %v1086, %v1080
        %v1090 = vpack.c.bf16 %v1089, %v1088
        %v1095 = vunpack.c.l.b16 %v481
        %v1096 = vunpack.c.l.b16 %v482
        %v1097 = vunpack.c.l.b16 %v483
        %v1098 = vunpack.c.l.b16 %v484
        %v1099 = vpack.c.b16 %v1096, %v1095
        %v1100 = vpack.c.b16 %v1098, %v1097
        %v1104 = vsel %vm498, %v1090, 0
        %1106 = vmatprep.subr.bf16.mxu0 0
        %1107 = vmatpush1.bf16.msra.mxu0 0
        %1108 = vmatprep.subr.bf16.mxu0 0
        %1109 = vmatpush1.bf16.msra.mxu0 0
        %1110 = vmatprep.subr.bf16.mxu0 0
        %1111 = vmatpush1.bf16.msra.mxu0 0
        %1112 = vmatprep.subr.bf16.mxu0 0
        %1113 = vmatpush1.bf16.msra.mxu0 0
        %1114 = vmatprep.subr.bf16.mxu0 0
        %1115 = vmatpush1.bf16.msra.mxu0 0
        %1116 = vmatprep.subr.bf16.mxu0 0
        %1117 = vmatpush1.bf16.msra.mxu0 0
        %1118 = vmatprep.subr.bf16.mxu0 0
        %1119 = vmatpush1.bf16.msra.mxu0 %v1100
        %1120 = vmatprep.subr.bf16.mxu0 0
        %1121 = vmatpush1.bf16.msra.mxu0 %v1099
        %1122 = vmatprep.subr.bf16.mxu0 0
        %1123 = vmatpush2.bf16.msra.mxu0 0
        %1124 = vmatprep.subr.bf16.mxu0 0
        %1125 = vmatpush2.bf16.msra.mxu0 0
        %1126 = vmatprep.subr.bf16.mxu0 0
        %1127 = vmatpush2.bf16.msra.mxu0 0
        %1128 = vmatprep.subr.bf16.mxu0 0
        %1129 = vmatpush2.bf16.msra.mxu0 0
        %1130 = vmatprep.subr.bf16.mxu0 0
        %1131 = vmatpush2.bf16.msra.mxu0 0
        %1132 = vmatprep.subr.bf16.mxu0 0
        %1133 = vmatpush2.bf16.msra.mxu0 0
        %1134 = vmatprep.subr.bf16.mxu0 0
        %1135 = vmatpush2.bf16.msra.mxu0 0
        %1136 = vmatprep.subr.bf16.mxu0 0
        %1137 = vmatpush2.bf16.msra.mxu0 0
        %1138 = vmatprep.mubr.bf16.mxu0 0
        %1139 = vmatmul.mubr.bf16.gmra.mxu0 %v1104
        %v1140 = vpop.f32.mrf.mxu0
        %v1141 = vadd.f32 0.0, %v1140
        %v1142 = vpop.f32.mrf.mxu0
        %v1143 = vpop.f32.mrf.mxu0
        %v1144 = vadd.f32 0.0, %v1143
        %v1145 = vpop.f32.mrf.mxu0
        %1146 = vdwg.mxu0
        %1147 = vst.msk [vmem:[%s456] sm:$0xff] %vm778, %v859
        %1148 = vst.msk [vmem:[%s456 + $0x8] sm:$0xff] %vm778, %v860
        %1149 = vst.msk [vmem:[%s456 + $0x10] sm:$0xff] %vm778, %v861
        %1150 = vst.msk [vmem:[%s456 + $0x18] sm:$0xff] %vm778, %v862
        %1151 = vst.msk [vmem:[%s456 + $0x20] sm:$0xff] %vm778, %v863
        %1152 = vst.msk [vmem:[%s456 + $0x28] sm:$0xff] %vm778, %v864
        %1153 = vst.msk [vmem:[%s456 + $0x30] sm:$0xff] %vm778, %v865
        %1154 = vst.msk [vmem:[%s456 + $0x38] sm:$0xff] %vm778, %v866
        %v1155 = vld [vmem:[%s4] sm:$0x1]
        %v1156 = vld [vmem:[%s5] sm:$0x1]
        %v1157 = vadd.f32 %v473, %v1141
        %v1158 = vadd.f32 %v474, %v1144
        %v1159 = vsel %vm498, %v1157, 0.0
        %1160 = vadd.xlane.f32.xlu0 %v1159
        %v1161 = vpop.xlane.xlu0 %1160
        %v1162 = vsel %vm498, %v1158, 0.0
        %1163 = vadd.xlane.f32.xlu0 %v1162
        %v1164 = vpop.xlane.xlu0 %1163
        %v1165 = vrcp.pop 32.0
        %v1166 = vmul.f32 %v1161, %v1165
        %v1167 = vmul.f32 %v1164, %v1165
        %v1168 = vsub.f32 %v1157, %v1166
        %v1169 = vsub.f32 %v1158, %v1167
        %v1170 = vmul.f32 %v1168, %v1168
        %v1171 = vmul.f32 %v1169, %v1169
        %v1172 = vsel %vm498, %v1170, 0.0
        %1173 = vadd.xlane.f32.xlu0 %v1172
        %v1174 = vpop.xlane.xlu0 %1173
        %v1175 = vsel %vm498, %v1171, 0.0
        %1176 = vadd.xlane.f32.xlu0 %v1175
        %v1177 = vpop.xlane.xlu0 %1176
        %v1178 = vmul.f32 %v1174, %v1165
        %v1179 = vmul.f32 %v1177, %v1165
        %v1180 = vadd.f32 %v1178, 1e-05
        %v1181 = vadd.f32 %v1179, 1e-05
        %v1182 = vrsqrt.pop %v1180
        %v1183 = vrsqrt.pop %v1181
        %v1184 = vmul.f32 %v1168, %v1182
        %v1185 = vmul.f32 %v1169, %v1183
        %v1187 = vlaneseq
        %v1188 = vshrl.u32 %v1187, 7
        %v1189 = vsub.s32 0, %v1188
        %v1190 = vrot.slane %v1155, %v1189
        %v1192 = vmul.f32 %v1184, %v1190
        %v1193 = vmul.f32 %v1185, %v1190
        %v1195 = vlaneseq
        %v1196 = vshrl.u32 %v1195, 7
        %v1197 = vsub.s32 0, %v1196
        %v1198 = vrot.slane %v1156, %v1197
        %v1200 = vadd.f32 %v1192, %v1198
        %v1201 = vadd.f32 %v1193, %v1198
        %v1202 = vld [vmem:[%s6] sm:$0xf]
        %v1203 = vld [vmem:[%s6 + $0x4] sm:$0xf]
        %v1204 = vld [vmem:[%s6 + $0x8] sm:$0xf]
        %v1205 = vld [vmem:[%s6 + $0xc] sm:$0xf]
        %v1206 = vld [vmem:[%s7] sm:$0x1]
        %v1207 = vld [vmem:[%s8] sm:$0xf]
        %v1208 = vld [vmem:[%s8 + $0x4] sm:$0xf]
        %v1209 = vld [vmem:[%s8 + $0x8] sm:$0xf]
        %v1210 = vld [vmem:[%s8 + $0xc] sm:$0xf]
        %v1211 = vld [vmem:[%s8 + $0x10] sm:$0xf]
        %v1212 = vld [vmem:[%s8 + $0x14] sm:$0xf]
        %v1213 = vld [vmem:[%s8 + $0x18] sm:$0xf]
        %v1214 = vld [vmem:[%s8 + $0x1c] sm:$0xf]
        %v1215 = vld [vmem:[%s9] sm:$0x1]
        %v1216 = vpack.c.bf16 %v1201, %v1200
        %v1218 = vlaneseq
        %v1219 = vshrl.u32 %v1218, 7
        %v1220 = vsub.s32 0, %v1219
        %v1221 = vrot.slane %v1206, %v1220
        %v1227 = vunpack.c.l.b16 %v1202
        %v1228 = vunpack.c.l.b16 %v1203
        %v1229 = vunpack.c.l.b16 %v1204
        %v1230 = vunpack.c.l.b16 %v1205
        %v1231 = vpack.c.b16 %v1228, %v1227
        %v1232 = vpack.c.b16 %v1230, %v1229
        %v1236 = vsel %vm498, %v1216, 0
        %1238 = vmatprep.subr.bf16.mxu0 0
        %1239 = vmatpush1.bf16.msra.mxu0 0
        %1240 = vmatprep.subr.bf16.mxu0 0
        %1241 = vmatpush1.bf16.msra.mxu0 0
        %1242 = vmatprep.subr.bf16.mxu0 0
        %1243 = vmatpush1.bf16.msra.mxu0 0
        %1244 = vmatprep.subr.bf16.mxu0 0
        %1245 = vmatpush1.bf16.msra.mxu0 0
        %1246 = vmatprep.subr.bf16.mxu0 0
        %1247 = vmatpush1.bf16.msra.mxu0 0
        %1248 = vmatprep.subr.bf16.mxu0 0
        %1249 = vmatpush1.bf16.msra.mxu0 0
        %1250 = vmatprep.subr.bf16.mxu0 0
        %1251 = vmatpush1.bf16.msra.mxu0 %v1232
        %1252 = vmatprep.subr.bf16.mxu0 0
        %1253 = vmatpush1.bf16.msra.mxu0 %v1231
        %1254 = vmatprep.subr.bf16.mxu0 0
        %1255 = vmatpush2.bf16.msra.mxu0 0
        %1256 = vmatprep.subr.bf16.mxu0 0
        %1257 = vmatpush2.bf16.msra.mxu0 0
        %1258 = vmatprep.subr.bf16.mxu0 0
        %1259 = vmatpush2.bf16.msra.mxu0 0
        %1260 = vmatprep.subr.bf16.mxu0 0
        %1261 = vmatpush2.bf16.msra.mxu0 0
        %1262 = vmatprep.subr.bf16.mxu0 0
        %1263 = vmatpush2.bf16.msra.mxu0 0
        %1264 = vmatprep.subr.bf16.mxu0 0
        %1265 = vmatpush2.bf16.msra.mxu0 0
        %1266 = vmatprep.subr.bf16.mxu0 0
        %1267 = vmatpush2.bf16.msra.mxu0 0
        %1268 = vmatprep.subr.bf16.mxu0 0
        %1269 = vmatpush2.bf16.msra.mxu0 0
        %1270 = vmatprep.mubr.bf16.mxu0 0
        %1271 = vmatmul.mubr.bf16.gmra.mxu0 %v1236
        %v1272 = vpop.f32.mrf.mxu0
        %v1273 = vadd.f32 %v1221, %v1272
        %v1274 = vpop.f32.mrf.mxu0
        %v1275 = vpop.f32.mrf.mxu0
        %v1276 = vadd.f32 %v1221, %v1275
        %v1277 = vpop.f32.mrf.mxu0
        %1278 = vdwg.mxu0
        %v1279 = vmax.f32 %v1273, 0.0
        %v1280 = vmax.f32 %v1276, 0.0
        %v1281 = vpack.c.bf16 %v1280, %v1279
        %v1283 = vlaneseq
        %v1284 = vshrl.u32 %v1283, 7
        %v1285 = vsub.s32 0, %v1284
        %v1286 = vrot.slane %v1215, %v1285
        %v1296 = vunpack.c.l.b16 %v1207
        %v1297 = vunpack.c.l.b16 %v1208
        %v1298 = vunpack.c.l.b16 %v1209
        %v1299 = vunpack.c.l.b16 %v1210
        %v1300 = vunpack.c.l.b16 %v1211
        %v1301 = vunpack.c.l.b16 %v1212
        %v1302 = vunpack.c.l.b16 %v1213
        %v1303 = vunpack.c.l.b16 %v1214
        %v1304 = vpack.c.b16 %v1297, %v1296
        %v1305 = vpack.c.b16 %v1299, %v1298
        %v1306 = vpack.c.b16 %v1301, %v1300
        %v1307 = vpack.c.b16 %v1303, %v1302
        %vm1312 = vcmask 523264
        %v1314 = vsel %vm1312, %v1281, 0
        %1316 = vmatprep.subr.bf16.mxu0 0
        %1317 = vmatpush1.bf16.msra.mxu0 0
        %1318 = vmatprep.subr.bf16.mxu0 0
        %1319 = vmatpush1.bf16.msra.mxu0 0
        %1320 = vmatprep.subr.bf16.mxu0 0
        %1321 = vmatpush1.bf16.msra.mxu0 0
        %1322 = vmatprep.subr.bf16.mxu0 0
        %1323 = vmatpush1.bf16.msra.mxu0 0
        %1324 = vmatprep.subr.bf16.mxu0 0
        %1325 = vmatpush1.bf16.msra.mxu0 %v1307
        %1326 = vmatprep.subr.bf16.mxu0 0
        %1327 = vmatpush1.bf16.msra.mxu0 %v1306
        %1328 = vmatprep.subr.bf16.mxu0 0
        %1329 = vmatpush1.bf16.msra.mxu0 %v1305
        %1330 = vmatprep.subr.bf16.mxu0 0
        %1331 = vmatpush1.bf16.msra.mxu0 %v1304
        %1332 = vmatprep.subr.bf16.mxu0 0
        %1333 = vmatpush2.bf16.msra.mxu0 0
        %1334 = vmatprep.subr.bf16.mxu0 0
        %1335 = vmatpush2.bf16.msra.mxu0 0
        %1336 = vmatprep.subr.bf16.mxu0 0
        %1337 = vmatpush2.bf16.msra.mxu0 0
        %1338 = vmatprep.subr.bf16.mxu0 0
        %1339 = vmatpush2.bf16.msra.mxu0 0
        %1340 = vmatprep.subr.bf16.mxu0 0
        %1341 = vmatpush2.bf16.msra.mxu0 0
        %1342 = vmatprep.subr.bf16.mxu0 0
        %1343 = vmatpush2.bf16.msra.mxu0 0
        %1344 = vmatprep.subr.bf16.mxu0 0
        %1345 = vmatpush2.bf16.msra.mxu0 0
        %1346 = vmatprep.subr.bf16.mxu0 0
        %1347 = vmatpush2.bf16.msra.mxu0 0
        %1348 = vmatprep.mubr.bf16.mxu0 0
        %1349 = vmatmul.mubr.bf16.gmra.mxu0 %v1314
        %v1350 = vpop.f32.mrf.mxu0
        %v1351 = vadd.f32 %v1286, %v1350
        %v1352 = vpop.f32.mrf.mxu0
        %v1353 = vpop.f32.mrf.mxu0
        %v1354 = vadd.f32 %v1286, %v1353
        %v1355 = vpop.f32.mrf.mxu0
        %1356 = vdwg.mxu0
        %v1357 = vld [vmem:[%s10] sm:$0x1]
        %v1358 = vld [vmem:[%s11] sm:$0x1]
        %v1359 = vadd.f32 %v1200, %v1351
        %v1360 = vadd.f32 %v1201, %v1354
        %v1361 = vsel %vm498, %v1359, 0.0
        %1362 = vadd.xlane.f32.xlu0 %v1361
        %v1363 = vpop.xlane.xlu0 %1362
        %v1364 = vsel %vm498, %v1360, 0.0
        %1365 = vadd.xlane.f32.xlu0 %v1364
        %v1366 = vpop.xlane.xlu0 %1365
        %v1367 = vmul.f32 %v1363, %v1165
        %v1368 = vmul.f32 %v1366, %v1165
        %v1369 = vsub.f32 %v1359, %v1367
        %v1370 = vsub.f32 %v1360, %v1368
        %v1371 = vmul.f32 %v1369, %v1369
        %v1372 = vmul.f32 %v1370, %v1370
        %v1373 = vsel %vm498, %v1371, 0.0
        %1374 = vadd.xlane.f32.xlu0 %v1373
        %v1375 = vpop.xlane.xlu0 %1374
        %v1376 = vsel %vm498, %v1372, 0.0
        %1377 = vadd.xlane.f32.xlu0 %v1376
        %v1378 = vpop.xlane.xlu0 %1377
        %v1379 = vmul.f32 %v1375, %v1165
        %v1380 = vmul.f32 %v1378, %v1165
        %v1381 = vadd.f32 %v1379, 1e-05
        %v1382 = vadd.f32 %v1380, 1e-05
        %v1383 = vrsqrt.pop %v1381
        %v1384 = vrsqrt.pop %v1382
        %v1385 = vmul.f32 %v1369, %v1383
        %v1386 = vmul.f32 %v1370, %v1384
        %v1388 = vlaneseq
        %v1389 = vshrl.u32 %v1388, 7
        %v1390 = vsub.s32 0, %v1389
        %v1391 = vrot.slane %v1357, %v1390
        %v1393 = vmul.f32 %v1385, %v1391
        %v1394 = vmul.f32 %v1386, %v1391
        %v1396 = vlaneseq
        %v1397 = vshrl.u32 %v1396, 7
        %v1398 = vsub.s32 0, %v1397
        %v1399 = vrot.slane %v1358, %v1398
        %v1401 = vadd.f32 %v1393, %v1399
        %v1402 = vadd.f32 %v1394, %v1399
        %1403 = vst.msk [vmem:[%s471] sm:$0xff] %vm498, %v1401
        %1404 = vst.msk [vmem:[%s471 + $0x8] sm:$0xff] %vm498, %v1402
        %p1405 = scmp.lt.s32.totalorder %s28, 1
        %s1406 = scalar_select %p1405, %s28, 1
        %s1407 = smul.addr %s1406, 2
        %s1408 = smul.addr %s1407, 8
        %s1409 = scalar_lea.vmem %s12, %s1408
        %s1410 = sand.u32 %s324, 1
        %s1411 = scalar_lea.sflag [#allocation3], %s1410
        %s1412 = sand.u32 %s324, 1
        %s1413 = smul.addr %s1412, 64
        %s1414 = scalar_lea.vmem [#allocation2], %s1413
        // Predicated region
        $region69: #{_lambda_.5} parent=67 // pred_check
          %p1415 = pneg %p308
        $region70: #{_lambda_.5} parent=67 // pred_check_branch
          %1417 = sbr.rel (%p1415) target = $region72
        $region71: #{_lambda_.5} parent=67 // pred_region
          _
        $region72: #{_lambda_.5} parent=67 // pred_fallthru
          _
        // Predicated region
        $region73: #{_lambda_.5} parent=67 // pred_check
          %p1418 = pneg %p334
        $region74: #{_lambda_.5} parent=67 // pred_check_branch
          %1420 = sbr.rel (%p1418) target = $region76
        $region75: #{_lambda_.5} parent=67 // pred_region
          %s1422 = ssub.s32 1024, 1024
          %1423 = vsyncadd %s1411, %s1422
          %s1424 = smul.addr %s28, 8
          %s1425 = smul.addr %s1424, 128
          %s1426 = scalar_lea.hbm %s13, %s1425
          %s1427 = sshll.u32 %s1414, 4
          %s1428 = int_to_ptr.vmem [resolvable:$true] %s1427
          %1433 = dma.vmem_to_hbm [thread:$0]  %s1428, 1024, %s1426, %s1411, 128, 128, 8
        $region76: #{_lambda_.5} parent=67 // pred_fallthru
          _
      $region68: #{_lambda_.5} parent=5 // pred_fallthru
        _
      %p1434 = scmp.le.s32.totalorder 2, %s23
      // Predicated region
      $region77: #{_lambda_.5} parent=5 // pred_check
        %p1435 = pneg %p1434
      $region78: #{_lambda_.5} parent=5 // pred_check_branch
        %1437 = sbr.rel (%p1435) target = $region80
      $region79: #{_lambda_.5} parent=5 // pred_region
        %s1438 = ssub.s32 %s23, 2
        // Predicated region
        $region81: #{_lambda_.5} parent=79 // pred_check
          %p1439 = pneg %p314
        $region82: #{_lambda_.5} parent=79 // pred_check_branch
          %1441 = sbr.rel (%p1439) target = $region84
        $region83: #{_lambda_.5} parent=79 // pred_region
          %p1442 = scmp.lt.s32.totalorder %s29, 1
          %s1443 = scalar_select %p1442, %s29, 1
          %s1444 = smul.addr %s1443, 2
          %s1445 = smul.addr %s1444, 8
          %s1446 = scalar_lea.vmem %s12, %s1445
        $region84: #{_lambda_.5} parent=79 // pred_fallthru
          _
        // Predicated region
        $region85: #{_lambda_.5} parent=79 // pred_check
          %p1447 = pneg %p340
        $region86: #{_lambda_.5} parent=79 // pred_check_branch
          %1449 = sbr.rel (%p1447) target = $region88
        $region87: #{_lambda_.5} parent=79 // pred_region
          %s1450 = sand.u32 %s325, 1
          %s1451 = scalar_lea.sflag [#allocation3], %s1450
          %s1452 = sand.u32 %s325, 1
          %s1453 = smul.addr %s1452, 64
          %s1454 = scalar_lea.vmem [#allocation2], %s1453
          %1455 = dma.done %s1451, 1024
        $region88: #{_lambda_.5} parent=79 // pred_fallthru
          _
      $region80: #{_lambda_.5} parent=5 // pred_fallthru
        _
    $region6: #{_lambda_.5} parent=1 // loop_footer
      %s27 = sadd.s32 1, %s23
    $region7: #{_lambda_.5} parent=1 // loop_footer_branch
      %22 = sbr.rel target = $region3
    $region8: #{_lambda_.5} parent=1 // loop_exit
      _
    %1456 = vsyncpa [#allocation3], 1
    %s1457 = scalar_lea.sflag [#allocation3], 1
    %1458 = vsyncpa %s1457, 1

// kernel: _lambda_.7
$region0: #{_lambda_.7}
  #allocation0 [shape = 'u32[]', space=smem, size = 0x4, offset = 0x4, fixed_abs, tag = 'smem constant byte address 0x4 - core index']
  #allocation1 [shape = 'u32[144,128]{1,0:T(1,128)}', space=vmem, size = 0x12000, scoped, tag = 'internal scratch']
  %s0 = inlined_call_operand.vmem [shape: f32[2,8,32], index: 0, kind: input, shape index: {}]
  %s1 = inlined_call_operand.vmem [shape: f32[2,16,32], index: 1, kind: input, shape index: {}]
  %s2 = inlined_call_operand.vmem [shape: f32[2,1,8,8], index: 2, kind: input, shape index: {}]
  %s3 = inlined_call_operand.vmem [shape: f32[2,1,8,16], index: 3, kind: input, shape index: {}]
  %s4 = inlined_call_operand.vmem [shape: bf16[32,96], index: 4, kind: input, shape index: {}]
  %s5 = inlined_call_operand.vmem [shape: bf16[32,32], index: 5, kind: input, shape index: {}]
  %s6 = inlined_call_operand.vmem [shape: f32[1,32], index: 6, kind: input, shape index: {}]
  %s7 = inlined_call_operand.vmem [shape: f32[1,32], index: 7, kind: input, shape index: {}]
  %s8 = inlined_call_operand.vmem [shape: bf16[32,96], index: 8, kind: input, shape index: {}]
  %s9 = inlined_call_operand.vmem [shape: bf16[32,32], index: 9, kind: input, shape index: {}]
  %s10 = inlined_call_operand.vmem [shape: f32[1,32], index: 10, kind: input, shape index: {}]
  %s11 = inlined_call_operand.vmem [shape: f32[1,32], index: 11, kind: input, shape index: {}]
  %s12 = inlined_call_operand.vmem [shape: bf16[32,64], index: 12, kind: input, shape index: {}]
  %s13 = inlined_call_operand.vmem [shape: f32[1,64], index: 13, kind: input, shape index: {}]
  %s14 = inlined_call_operand.vmem [shape: bf16[64,32], index: 14, kind: input, shape index: {}]
  %s15 = inlined_call_operand.vmem [shape: f32[1,32], index: 15, kind: input, shape index: {}]
  %s16 = inlined_call_operand.vmem [shape: f32[1,32], index: 16, kind: input, shape index: {}]
  %s17 = inlined_call_operand.vmem [shape: f32[1,32], index: 17, kind: input, shape index: {}]
  %s18 = inlined_call_operand.vmem [shape: f32[2,8,32], index: 18, kind: output, shape index: {0}]
  %s19 = inlined_call_operand.hbm [shape: f32[2,4,8,8], index: 19, kind: output, shape index: {1}]
  %s20 = inlined_call_operand.hbm [shape: f32[2,4,8,16], index: 20, kind: output, shape index: {2}]
  %21 = xla_tuple %s18, %s19, %s20
  %s22 = sld [smem:[#allocation0]]
  $region121: #{_lambda_.7} parent=0
    _
  %s24 = ssub.s32 1, %s22
  %s25 = scalar_select 0, %s24, %s22
  $region1: #{_lambda_.7} parent=0
    #allocation2 [shape = 'u8[32768]{0}', space=vmem, size = 0x8000, scoped, tag = 'output window, operand 1']
    #allocation3 [shape = 's32[2]{0}', space=sflag, size = 0x8, scoped, tag = 'scoped memory for _lambda_.7']
    #allocation4 [shape = 'u8[32768]{0}', space=vmem, size = 0x8000, scoped, tag = 'output window, operand 2']
    #allocation5 [shape = 's32[2]{0}', space=sflag, size = 0x8, scoped, tag = 'scoped memory for _lambda_.7']
    %26 = vsyncpa [#allocation3], 0
    %s27 = scalar_lea.sflag [#allocation3], 1
    %28 = vsyncpa %s27, 0
    %29 = vsyncpa [#allocation5], 0
    %s30 = scalar_lea.sflag [#allocation5], 1
    %31 = vsyncpa %s30, 0
    loop: start=0, step=1, limit=4
    $region2: #{_lambda_.7} parent=1 // loop_pre_header
      _
    $region3: #{_lambda_.7} parent=1 // loop_header
      %s33 = sphi 0, %s37
      %p34 = scmp.ge.s32.totalorder %s33, 4
      %s43 = sphi 0, %s45
      %s46 = sphi 0, %s43
      %s47 = sphi 0, %s46
      %s63 = sphi 0, %s47
      %s69 = sphi 0, %s71
      %s72 = sphi 0, %s69
      %s73 = sphi 0, %s72
      %s89 = sphi 0, %s73
      %s95 = sphi 0, %s97
      %s98 = sphi 0, %s95
      %s99 = sphi 0, %s98
      %s115 = sphi 0, %s99
      %s121 = sphi 0, %s123
      %s124 = sphi 0, %s121
      %s125 = sphi 0, %s124
      %s141 = sphi 0, %s125
      %s145 = sphi 0, %s145
      %s147 = sphi 0, %s145
      %s148 = sphi 0, %s147
      %s162 = sphi 0, %s148
      %s166 = sphi 0, %s166
      %s168 = sphi 0, %s166
      %s169 = sphi 0, %s168
      %s183 = sphi 0, %s169
      %s187 = sphi 0, %s187
      %s189 = sphi 0, %s187
      %s190 = sphi 0, %s189
      %s204 = sphi 0, %s190
      %s208 = sphi 0, %s208
      %s210 = sphi 0, %s208
      %s211 = sphi 0, %s210
      %s225 = sphi 0, %s211
      %s229 = sphi 0, %s229
      %s231 = sphi 0, %s229
      %s232 = sphi 0, %s231
      %s246 = sphi 0, %s232
      %s250 = sphi 0, %s250
      %s252 = sphi 0, %s250
      %s253 = sphi 0, %s252
      %s267 = sphi 0, %s253
      %s271 = sphi 0, %s271
      %s273 = sphi 0, %s271
      %s274 = sphi 0, %s273
      %s288 = sphi 0, %s274
      %s292 = sphi 0, %s292
      %s294 = sphi 0, %s292
      %s295 = sphi 0, %s294
      %s309 = sphi 0, %s295
      %s313 = sphi 0, %s313
      %s315 = sphi 0, %s313
      %s316 = sphi 0, %s315
      %s330 = sphi 0, %s316
      %s334 = sphi 0, %s334
      %s336 = sphi 0, %s334
      %s337 = sphi 0, %s336
      %s351 = sphi 0, %s337
      %s355 = sphi 0, %s355
      %s357 = sphi 0, %s355
      %s358 = sphi 0, %s357
      %s372 = sphi 0, %s358
      %s376 = sphi 0, %s376
      %s378 = sphi 0, %s376
      %s379 = sphi 0, %s378
      %s393 = sphi 0, %s379
      %s397 = sphi 0, %s397
      %s399 = sphi 0, %s397
      %s400 = sphi 0, %s399
      %s414 = sphi 0, %s400
      %s418 = sphi 0, %s418
      %s420 = sphi 0, %s418
      %s421 = sphi 0, %s420
      %s435 = sphi 0, %s421
      %s441 = sphi 0, %s443
      %s444 = sphi 0, %s441
      %s445 = sphi 0, %s444
      %s461 = sphi 0, %s445
      %s467 = sphi 0, %s469
      %s470 = sphi 0, %s467
      %s471 = sphi 0, %s470
      %s487 = sphi 0, %s471
      %s493 = sphi 0, %s495
      %s496 = sphi 0, %s493
      %s497 = sphi 0, %s496
      %s513 = sphi 0, %s497
    $region4: #{_lambda_.7} parent=1 // loop_header_branch
      %36 = sbr.rel (%p34) target = $region8
    $region5: #{_lambda_.7} parent=1 // loop_body
      %s38 = ssub.s32 %s33, 1
      %s39 = ssub.s32 %s33, 2
      %s40 = sadd.s32 %s33, 1
      %s41 = ssub.s32 %s33, %s40
      %p42 = scmp.eq.s32.totalorder %s41, 0
      %s44 = sadd.s32 %s43, 1
      %s45 = scalar_select %p42, %s43, %s44
      %p48 = pneg %p42
      %p49 = scmp.eq.s32.totalorder %s33, 1
      %p50 = por %p48, %p49
      %p51 = scmp.ne.s32.totalorder %s43, %s46
      %p52 = scmp.eq.s32.totalorder %s33, 0
      %p53 = por %p51, %p52
      %p54 = scmp.ne.s32.totalorder %s43, %s46
      %p55 = scmp.eq.s32.totalorder %s38, 1
      %p56 = por %p54, %p55
      %p57 = scmp.ne.s32.totalorder %s46, %s47
      %p58 = scmp.eq.s32.totalorder %s38, 0
      %p59 = por %p57, %p58
      %p60 = scmp.ne.s32.totalorder %s46, %s47
      %p61 = scmp.eq.s32.totalorder %s39, 1
      %p62 = por %p60, %p61
      %p64 = scmp.ne.s32.totalorder %s47, %s63
      %p65 = scmp.eq.s32.totalorder %s39, 0
      %p66 = por %p64, %p65
      %s67 = ssub.s32 %s33, %s40
      %p68 = scmp.eq.s32.totalorder %s67, 0
      %s70 = sadd.s32 %s69, 1
      %s71 = scalar_select %p68, %s69, %s70
      %p74 = pneg %p68
      %p75 = scmp.eq.s32.totalorder %s33, 1
      %p76 = por %p74, %p75
      %p77 = scmp.ne.s32.totalorder %s69, %s72
      %p78 = scmp.eq.s32.totalorder %s33, 0
      %p79 = por %p77, %p78
      %p80 = scmp.ne.s32.totalorder %s69, %s72
      %p81 = scmp.eq.s32.totalorder %s38, 1
      %p82 = por %p80, %p81
      %p83 = scmp.ne.s32.totalorder %s72, %s73
      %p84 = scmp.eq.s32.totalorder %s38, 0
      %p85 = por %p83, %p84
      %p86 = scmp.ne.s32.totalorder %s72, %s73
      %p87 = scmp.eq.s32.totalorder %s39, 1
      %p88 = por %p86, %p87
      %p90 = scmp.ne.s32.totalorder %s73, %s89
      %p91 = scmp.eq.s32.totalorder %s39, 0
      %p92 = por %p90, %p91
      %s93 = ssub.s32 %s33, %s40
      %p94 = scmp.eq.s32.totalorder %s93, 0
      %s96 = sadd.s32 %s95, 1
      %s97 = scalar_select %p94, %s95, %s96
      %p100 = pneg %p94
      %p101 = scmp.eq.s32.totalorder %s33, 1
      %p102 = por %p100, %p101
      %p103 = scmp.ne.s32.totalorder %s95, %s98
      %p104 = scmp.eq.s32.totalorder %s33, 0
      %p105 = por %p103, %p104
      %p106 = scmp.ne.s32.totalorder %s95, %s98
      %p107 = scmp.eq.s32.totalorder %s38, 1
      %p108 = por %p106, %p107
      %p109 = scmp.ne.s32.totalorder %s98, %s99
      %p110 = scmp.eq.s32.totalorder %s38, 0
      %p111 = por %p109, %p110
      %p112 = scmp.ne.s32.totalorder %s98, %s99
      %p113 = scmp.eq.s32.totalorder %s39, 1
      %p114 = por %p112, %p113
      %p116 = scmp.ne.s32.totalorder %s99, %s115
      %p117 = scmp.eq.s32.totalorder %s39, 0
      %p118 = por %p116, %p117
      %s119 = ssub.s32 %s33, %s40
      %p120 = scmp.eq.s32.totalorder %s119, 0
      %s122 = sadd.s32 %s121, 1
      %s123 = scalar_select %p120, %s121, %s122
      %p126 = pneg %p120
      %p127 = scmp.eq.s32.totalorder %s33, 1
      %p128 = por %p126, %p127
      %p129 = scmp.ne.s32.totalorder %s121, %s124
      %p130 = scmp.eq.s32.totalorder %s33, 0
      %p131 = por %p129, %p130
      %p132 = scmp.ne.s32.totalorder %s121, %s124
      %p133 = scmp.eq.s32.totalorder %s38, 1
      %p134 = por %p132, %p133
      %p135 = scmp.ne.s32.totalorder %s124, %s125
      %p136 = scmp.eq.s32.totalorder %s38, 0
      %p137 = por %p135, %p136
      %p138 = scmp.ne.s32.totalorder %s124, %s125
      %p139 = scmp.eq.s32.totalorder %s39, 1
      %p140 = por %p138, %p139
      %p142 = scmp.ne.s32.totalorder %s125, %s141
      %p143 = scmp.eq.s32.totalorder %s39, 0
      %p144 = por %p142, %p143
      %s146 = sadd.s32 %s145, 1
      %p149 = scmp.eq.s32.totalorder %s33, 1
      %p150 = scmp.ne.s32.totalorder %s145, %s147
      %p151 = scmp.eq.s32.totalorder %s33, 0
      %p152 = por %p150, %p151
      %p153 = scmp.ne.s32.totalorder %s145, %s147
      %p154 = scmp.eq.s32.totalorder %s38, 1
      %p155 = por %p153, %p154
      %p156 = scmp.ne.s32.totalorder %s147, %s148
      %p157 = scmp.eq.s32.totalorder %s38, 0
      %p158 = por %p156, %p157
      %p159 = scmp.ne.s32.totalorder %s147, %s148
      %p160 = scmp.eq.s32.totalorder %s39, 1
      %p161 = por %p159, %p160
      %p163 = scmp.ne.s32.totalorder %s148, %s162
      %p164 = scmp.eq.s32.totalorder %s39, 0
      %p165 = por %p163, %p164
      %s167 = sadd.s32 %s166, 1
      %p170 = scmp.eq.s32.totalorder %s33, 1
      %p171 = scmp.ne.s32.totalorder %s166, %s168
      %p172 = scmp.eq.s32.totalorder %s33, 0
      %p173 = por %p171, %p172
      %p174 = scmp.ne.s32.totalorder %s166, %s168
      %p175 = scmp.eq.s32.totalorder %s38, 1
      %p176 = por %p174, %p175
      %p177 = scmp.ne.s32.totalorder %s168, %s169
      %p178 = scmp.eq.s32.totalorder %s38, 0
      %p179 = por %p177, %p178
      %p180 = scmp.ne.s32.totalorder %s168, %s169
      %p181 = scmp.eq.s32.totalorder %s39, 1
      %p182 = por %p180, %p181
      %p184 = scmp.ne.s32.totalorder %s169, %s183
      %p185 = scmp.eq.s32.totalorder %s39, 0
      %p186 = por %p184, %p185
      %s188 = sadd.s32 %s187, 1
      %p191 = scmp.eq.s32.totalorder %s33, 1
      %p192 = scmp.ne.s32.totalorder %s187, %s189
      %p193 = scmp.eq.s32.totalorder %s33, 0
      %p194 = por %p192, %p193
      %p195 = scmp.ne.s32.totalorder %s187, %s189
      %p196 = scmp.eq.s32.totalorder %s38, 1
      %p197 = por %p195, %p196
      %p198 = scmp.ne.s32.totalorder %s189, %s190
      %p199 = scmp.eq.s32.totalorder %s38, 0
      %p200 = por %p198, %p199
      %p201 = scmp.ne.s32.totalorder %s189, %s190
      %p202 = scmp.eq.s32.totalorder %s39, 1
      %p203 = por %p201, %p202
      %p205 = scmp.ne.s32.totalorder %s190, %s204
      %p206 = scmp.eq.s32.totalorder %s39, 0
      %p207 = por %p205, %p206
      %s209 = sadd.s32 %s208, 1
      %p212 = scmp.eq.s32.totalorder %s33, 1
      %p213 = scmp.ne.s32.totalorder %s208, %s210
      %p214 = scmp.eq.s32.totalorder %s33, 0
      %p215 = por %p213, %p214
      %p216 = scmp.ne.s32.totalorder %s208, %s210
      %p217 = scmp.eq.s32.totalorder %s38, 1
      %p218 = por %p216, %p217
      %p219 = scmp.ne.s32.totalorder %s210, %s211
      %p220 = scmp.eq.s32.totalorder %s38, 0
      %p221 = por %p219, %p220
      %p222 = scmp.ne.s32.totalorder %s210, %s211
      %p223 = scmp.eq.s32.totalorder %s39, 1
      %p224 = por %p222, %p223
      %p226 = scmp.ne.s32.totalorder %s211, %s225
      %p227 = scmp.eq.s32.totalorder %s39, 0
      %p228 = por %p226, %p227
      %s230 = sadd.s32 %s229, 1
      %p233 = scmp.eq.s32.totalorder %s33, 1
      %p234 = scmp.ne.s32.totalorder %s229, %s231
      %p235 = scmp.eq.s32.totalorder %s33, 0
      %p236 = por %p234, %p235
      %p237 = scmp.ne.s32.totalorder %s229, %s231
      %p238 = scmp.eq.s32.totalorder %s38, 1
      %p239 = por %p237, %p238
      %p240 = scmp.ne.s32.totalorder %s231, %s232
      %p241 = scmp.eq.s32.totalorder %s38, 0
      %p242 = por %p240, %p241
      %p243 = scmp.ne.s32.totalorder %s231, %s232
      %p244 = scmp.eq.s32.totalorder %s39, 1
      %p245 = por %p243, %p244
      %p247 = scmp.ne.s32.totalorder %s232, %s246
      %p248 = scmp.eq.s32.totalorder %s39, 0
      %p249 = por %p247, %p248
      %s251 = sadd.s32 %s250, 1
      %p254 = scmp.eq.s32.totalorder %s33, 1
      %p255 = scmp.ne.s32.totalorder %s250, %s252
      %p256 = scmp.eq.s32.totalorder %s33, 0
      %p257 = por %p255, %p256
      %p258 = scmp.ne.s32.totalorder %s250, %s252
      %p259 = scmp.eq.s32.totalorder %s38, 1
      %p260 = por %p258, %p259
      %p261 = scmp.ne.s32.totalorder %s252, %s253
      %p262 = scmp.eq.s32.totalorder %s38, 0
      %p263 = por %p261, %p262
      %p264 = scmp.ne.s32.totalorder %s252, %s253
      %p265 = scmp.eq.s32.totalorder %s39, 1
      %p266 = por %p264, %p265
      %p268 = scmp.ne.s32.totalorder %s253, %s267
      %p269 = scmp.eq.s32.totalorder %s39, 0
      %p270 = por %p268, %p269
      %s272 = sadd.s32 %s271, 1
      %p275 = scmp.eq.s32.totalorder %s33, 1
      %p276 = scmp.ne.s32.totalorder %s271, %s273
      %p277 = scmp.eq.s32.totalorder %s33, 0
      %p278 = por %p276, %p277
      %p279 = scmp.ne.s32.totalorder %s271, %s273
      %p280 = scmp.eq.s32.totalorder %s38, 1
      %p281 = por %p279, %p280
      %p282 = scmp.ne.s32.totalorder %s273, %s274
      %p283 = scmp.eq.s32.totalorder %s38, 0
      %p284 = por %p282, %p283
      %p285 = scmp.ne.s32.totalorder %s273, %s274
      %p286 = scmp.eq.s32.totalorder %s39, 1
      %p287 = por %p285, %p286
      %p289 = scmp.ne.s32.totalorder %s274, %s288
      %p290 = scmp.eq.s32.totalorder %s39, 0
      %p291 = por %p289, %p290
      %s293 = sadd.s32 %s292, 1
      %p296 = scmp.eq.s32.totalorder %s33, 1
      %p297 = scmp.ne.s32.totalorder %s292, %s294
      %p298 = scmp.eq.s32.totalorder %s33, 0
      %p299 = por %p297, %p298
      %p300 = scmp.ne.s32.totalorder %s292, %s294
      %p301 = scmp.eq.s32.totalorder %s38, 1
      %p302 = por %p300, %p301
      %p303 = scmp.ne.s32.totalorder %s294, %s295
      %p304 = scmp.eq.s32.totalorder %s38, 0
      %p305 = por %p303, %p304
      %p306 = scmp.ne.s32.totalorder %s294, %s295
      %p307 = scmp.eq.s32.totalorder %s39, 1
      %p308 = por %p306, %p307
      %p310 = scmp.ne.s32.totalorder %s295, %s309
      %p311 = scmp.eq.s32.totalorder %s39, 0
      %p312 = por %p310, %p311
      %s314 = sadd.s32 %s313, 1
      %p317 = scmp.eq.s32.totalorder %s33, 1
      %p318 = scmp.ne.s32.totalorder %s313, %s315
      %p319 = scmp.eq.s32.totalorder %s33, 0
      %p320 = por %p318, %p319
      %p321 = scmp.ne.s32.totalorder %s313, %s315
      %p322 = scmp.eq.s32.totalorder %s38, 1
      %p323 = por %p321, %p322
      %p324 = scmp.ne.s32.totalorder %s315, %s316
      %p325 = scmp.eq.s32.totalorder %s38, 0
      %p326 = por %p324, %p325
      %p327 = scmp.ne.s32.totalorder %s315, %s316
      %p328 = scmp.eq.s32.totalorder %s39, 1
      %p329 = por %p327, %p328
      %p331 = scmp.ne.s32.totalorder %s316, %s330
      %p332 = scmp.eq.s32.totalorder %s39, 0
      %p333 = por %p331, %p332
      %s335 = sadd.s32 %s334, 1
      %p338 = scmp.eq.s32.totalorder %s33, 1
      %p339 = scmp.ne.s32.totalorder %s334, %s336
      %p340 = scmp.eq.s32.totalorder %s33, 0
      %p341 = por %p339, %p340
      %p342 = scmp.ne.s32.totalorder %s334, %s336
      %p343 = scmp.eq.s32.totalorder %s38, 1
      %p344 = por %p342, %p343
      %p345 = scmp.ne.s32.totalorder %s336, %s337
      %p346 = scmp.eq.s32.totalorder %s38, 0
      %p347 = por %p345, %p346
      %p348 = scmp.ne.s32.totalorder %s336, %s337
      %p349 = scmp.eq.s32.totalorder %s39, 1
      %p350 = por %p348, %p349
      %p352 = scmp.ne.s32.totalorder %s337, %s351
      %p353 = scmp.eq.s32.totalorder %s39, 0
      %p354 = por %p352, %p353
      %s356 = sadd.s32 %s355, 1
      %p359 = scmp.eq.s32.totalorder %s33, 1
      %p360 = scmp.ne.s32.totalorder %s355, %s357
      %p361 = scmp.eq.s32.totalorder %s33, 0
      %p362 = por %p360, %p361
      %p363 = scmp.ne.s32.totalorder %s355, %s357
      %p364 = scmp.eq.s32.totalorder %s38, 1
      %p365 = por %p363, %p364
      %p366 = scmp.ne.s32.totalorder %s357, %s358
      %p367 = scmp.eq.s32.totalorder %s38, 0
      %p368 = por %p366, %p367
      %p369 = scmp.ne.s32.totalorder %s357, %s358
      %p370 = scmp.eq.s32.totalorder %s39, 1
      %p371 = por %p369, %p370
      %p373 = scmp.ne.s32.totalorder %s358, %s372
      %p374 = scmp.eq.s32.totalorder %s39, 0
      %p375 = por %p373, %p374
      %s377 = sadd.s32 %s376, 1
      %p380 = scmp.eq.s32.totalorder %s33, 1
      %p381 = scmp.ne.s32.totalorder %s376, %s378
      %p382 = scmp.eq.s32.totalorder %s33, 0
      %p383 = por %p381, %p382
      %p384 = scmp.ne.s32.totalorder %s376, %s378
      %p385 = scmp.eq.s32.totalorder %s38, 1
      %p386 = por %p384, %p385
      %p387 = scmp.ne.s32.totalorder %s378, %s379
      %p388 = scmp.eq.s32.totalorder %s38, 0
      %p389 = por %p387, %p388
      %p390 = scmp.ne.s32.totalorder %s378, %s379
      %p391 = scmp.eq.s32.totalorder %s39, 1
      %p392 = por %p390, %p391
      %p394 = scmp.ne.s32.totalorder %s379, %s393
      %p395 = scmp.eq.s32.totalorder %s39, 0
      %p396 = por %p394, %p395
      %s398 = sadd.s32 %s397, 1
      %p401 = scmp.eq.s32.totalorder %s33, 1
      %p402 = scmp.ne.s32.totalorder %s397, %s399
      %p403 = scmp.eq.s32.totalorder %s33, 0
      %p404 = por %p402, %p403
      %p405 = scmp.ne.s32.totalorder %s397, %s399
      %p406 = scmp.eq.s32.totalorder %s38, 1
      %p407 = por %p405, %p406
      %p408 = scmp.ne.s32.totalorder %s399, %s400
      %p409 = scmp.eq.s32.totalorder %s38, 0
      %p410 = por %p408, %p409
      %p411 = scmp.ne.s32.totalorder %s399, %s400
      %p412 = scmp.eq.s32.totalorder %s39, 1
      %p413 = por %p411, %p412
      %p415 = scmp.ne.s32.totalorder %s400, %s414
      %p416 = scmp.eq.s32.totalorder %s39, 0
      %p417 = por %p415, %p416
      %s419 = sadd.s32 %s418, 1
      %p422 = scmp.eq.s32.totalorder %s33, 1
      %p423 = scmp.ne.s32.totalorder %s418, %s420
      %p424 = scmp.eq.s32.totalorder %s33, 0
      %p425 = por %p423, %p424
      %p426 = scmp.ne.s32.totalorder %s418, %s420
      %p427 = scmp.eq.s32.totalorder %s38, 1
      %p428 = por %p426, %p427
      %p429 = scmp.ne.s32.totalorder %s420, %s421
      %p430 = scmp.eq.s32.totalorder %s38, 0
      %p431 = por %p429, %p430
      %p432 = scmp.ne.s32.totalorder %s420, %s421
      %p433 = scmp.eq.s32.totalorder %s39, 1
      %p434 = por %p432, %p433
      %p436 = scmp.ne.s32.totalorder %s421, %s435
      %p437 = scmp.eq.s32.totalorder %s39, 0
      %p438 = por %p436, %p437
      %s439 = ssub.s32 %s33, %s40
      %p440 = scmp.eq.s32.totalorder %s439, 0
      %s442 = sadd.s32 %s441, 1
      %s443 = scalar_select %p440, %s441, %s442
      %p446 = pneg %p440
      %p447 = scmp.eq.s32.totalorder %s33, 1
      %p448 = por %p446, %p447
      %p449 = scmp.ne.s32.totalorder %s441, %s444
      %p450 = scmp.eq.s32.totalorder %s33, 0
      %p451 = por %p449, %p450
      %p452 = scmp.ne.s32.totalorder %s441, %s444
      %p453 = scmp.eq.s32.totalorder %s38, 1
      %p454 = por %p452, %p453
      %p455 = scmp.ne.s32.totalorder %s444, %s445
      %p456 = scmp.eq.s32.totalorder %s38, 0
      %p457 = por %p455, %p456
      %p458 = scmp.ne.s32.totalorder %s444, %s445
      %p459 = scmp.eq.s32.totalorder %s39, 1
      %p460 = por %p458, %p459
      %p462 = scmp.ne.s32.totalorder %s445, %s461
      %p463 = scmp.eq.s32.totalorder %s39, 0
      %p464 = por %p462, %p463
      %s465 = ssub.s32 %s33, %s40
      %p466 = scmp.eq.s32.totalorder %s465, 0
      %s468 = sadd.s32 %s467, 1
      %s469 = scalar_select %p466, %s467, %s468
      %p472 = pneg %p466
      %p473 = scmp.eq.s32.totalorder %s33, 1
      %p474 = por %p472, %p473
      %p475 = scmp.ne.s32.totalorder %s467, %s470
      %p476 = scmp.eq.s32.totalorder %s33, 0
      %p477 = por %p475, %p476
      %p478 = scmp.ne.s32.totalorder %s467, %s470
      %p479 = scmp.eq.s32.totalorder %s38, 1
      %p480 = por %p478, %p479
      %p481 = scmp.ne.s32.totalorder %s470, %s471
      %p482 = scmp.eq.s32.totalorder %s38, 0
      %p483 = por %p481, %p482
      %p484 = scmp.ne.s32.totalorder %s470, %s471
      %p485 = scmp.eq.s32.totalorder %s39, 1
      %p486 = por %p484, %p485
      %p488 = scmp.ne.s32.totalorder %s471, %s487
      %p489 = scmp.eq.s32.totalorder %s39, 0
      %p490 = por %p488, %p489
      %s491 = ssub.s32 %s33, %s40
      %p492 = scmp.eq.s32.totalorder %s491, 0
      %s494 = sadd.s32 %s493, 1
      %s495 = scalar_select %p492, %s493, %s494
      %p498 = pneg %p492
      %p499 = scmp.eq.s32.totalorder %s33, 1
      %p500 = por %p498, %p499
      %p501 = scmp.ne.s32.totalorder %s493, %s496
      %p502 = scmp.eq.s32.totalorder %s33, 0
      %p503 = por %p501, %p502
      %p504 = scmp.ne.s32.totalorder %s493, %s496
      %p505 = scmp.eq.s32.totalorder %s38, 1
      %p506 = por %p504, %p505
      %p507 = scmp.ne.s32.totalorder %s496, %s497
      %p508 = scmp.eq.s32.totalorder %s38, 0
      %p509 = por %p507, %p508
      %p510 = scmp.ne.s32.totalorder %s496, %s497
      %p511 = scmp.eq.s32.totalorder %s39, 1
      %p512 = por %p510, %p511
      %p514 = scmp.ne.s32.totalorder %s497, %s513
      %p515 = scmp.eq.s32.totalorder %s39, 0
      %p516 = por %p514, %p515
      %p517 = scmp.le.s32.totalorder 1, %s33
      %p518 = scmp.lt.s32.totalorder %s33, 3
      %p519 = pnand %p517, %p518
      %p520 = pneg %p519
      // Predicated region
      $region9: #{_lambda_.7} parent=5 // pred_check
        _
      $region10: #{_lambda_.7} parent=5 // pred_check_branch
        %522 = sbr.rel (%p519) target = $region12
      $region11: #{_lambda_.7} parent=5 // pred_region
        %s523 = ssub.s32 %s33, 1
        // Predicated region
        $region13: #{_lambda_.7} parent=11 // pred_check
          %p524 = pneg %p158
        $region14: #{_lambda_.7} parent=11 // pred_check_branch
          %526 = sbr.rel (%p524) target = $region16
        $region15: #{_lambda_.7} parent=11 // pred_region
          _
        $region16: #{_lambda_.7} parent=11 // pred_fallthru
          _
        // Predicated region
        $region17: #{_lambda_.7} parent=11 // pred_check
          %p527 = pneg %p179
        $region18: #{_lambda_.7} parent=11 // pred_check_branch
          %529 = sbr.rel (%p527) target = $region20
        $region19: #{_lambda_.7} parent=11 // pred_region
          _
        $region20: #{_lambda_.7} parent=11 // pred_fallthru
          _
        // Predicated region
        $region21: #{_lambda_.7} parent=11 // pred_check
          %p530 = pneg %p200
        $region22: #{_lambda_.7} parent=11 // pred_check_branch
          %532 = sbr.rel (%p530) target = $region24
        $region23: #{_lambda_.7} parent=11 // pred_region
          _
        $region24: #{_lambda_.7} parent=11 // pred_fallthru
          _
        // Predicated region
        $region25: #{_lambda_.7} parent=11 // pred_check
          %p533 = pneg %p221
        $region26: #{_lambda_.7} parent=11 // pred_check_branch
          %535 = sbr.rel (%p533) target = $region28
        $region27: #{_lambda_.7} parent=11 // pred_region
          _
        $region28: #{_lambda_.7} parent=11 // pred_fallthru
          _
        // Predicated region
        $region29: #{_lambda_.7} parent=11 // pred_check
          %p536 = pneg %p242
        $region30: #{_lambda_.7} parent=11 // pred_check_branch
          %538 = sbr.rel (%p536) target = $region32
        $region31: #{_lambda_.7} parent=11 // pred_region
          _
        $region32: #{_lambda_.7} parent=11 // pred_fallthru
          _
        // Predicated region
        $region33: #{_lambda_.7} parent=11 // pred_check
          %p539 = pneg %p263
        $region34: #{_lambda_.7} parent=11 // pred_check_branch
          %541 = sbr.rel (%p539) target = $region36
        $region35: #{_lambda_.7} parent=11 // pred_region
          _
        $region36: #{_lambda_.7} parent=11 // pred_fallthru
          _
        // Predicated region
        $region37: #{_lambda_.7} parent=11 // pred_check
          %p542 = pneg %p284
        $region38: #{_lambda_.7} parent=11 // pred_check_branch
          %544 = sbr.rel (%p542) target = $region40
        $region39: #{_lambda_.7} parent=11 // pred_region
          _
        $region40: #{_lambda_.7} parent=11 // pred_fallthru
          _
        // Predicated region
        $region41: #{_lambda_.7} parent=11 // pred_check
          %p545 = pneg %p305
        $region42: #{_lambda_.7} parent=11 // pred_check_branch
          %547 = sbr.rel (%p545) target = $region44
        $region43: #{_lambda_.7} parent=11 // pred_region
          _
        $region44: #{_lambda_.7} parent=11 // pred_fallthru
          _
        // Predicated region
        $region45: #{_lambda_.7} parent=11 // pred_check
          %p548 = pneg %p326
        $region46: #{_lambda_.7} parent=11 // pred_check_branch
          %550 = sbr.rel (%p548) target = $region48
        $region47: #{_lambda_.7} parent=11 // pred_region
          _
        $region48: #{_lambda_.7} parent=11 // pred_fallthru
          _
        // Predicated region
        $region49: #{_lambda_.7} parent=11 // pred_check
          %p551 = pneg %p347
        $region50: #{_lambda_.7} parent=11 // pred_check_branch
          %553 = sbr.rel (%p551) target = $region52
        $region51: #{_lambda_.7} parent=11 // pred_region
          _
        $region52: #{_lambda_.7} parent=11 // pred_fallthru
          _
        // Predicated region
        $region53: #{_lambda_.7} parent=11 // pred_check
          %p554 = pneg %p368
        $region54: #{_lambda_.7} parent=11 // pred_check_branch
          %556 = sbr.rel (%p554) target = $region56
        $region55: #{_lambda_.7} parent=11 // pred_region
          _
        $region56: #{_lambda_.7} parent=11 // pred_fallthru
          _
        // Predicated region
        $region57: #{_lambda_.7} parent=11 // pred_check
          %p557 = pneg %p389
        $region58: #{_lambda_.7} parent=11 // pred_check_branch
          %559 = sbr.rel (%p557) target = $region60
        $region59: #{_lambda_.7} parent=11 // pred_region
          _
        $region60: #{_lambda_.7} parent=11 // pred_fallthru
          _
        // Predicated region
        $region61: #{_lambda_.7} parent=11 // pred_check
          %p560 = pneg %p410
        $region62: #{_lambda_.7} parent=11 // pred_check_branch
          %562 = sbr.rel (%p560) target = $region64
        $region63: #{_lambda_.7} parent=11 // pred_region
          _
        $region64: #{_lambda_.7} parent=11 // pred_fallthru
          _
        // Predicated region
        $region65: #{_lambda_.7} parent=11 // pred_check
          %p563 = pneg %p431
        $region66: #{_lambda_.7} parent=11 // pred_check_branch
          %565 = sbr.rel (%p563) target = $region68
        $region67: #{_lambda_.7} parent=11 // pred_region
          _
        $region68: #{_lambda_.7} parent=11 // pred_fallthru
          _
      $region12: #{_lambda_.7} parent=5 // pred_fallthru
        _
      %p566 = scmp.lt.s32.totalorder %s33, 2
      // Predicated region
      $region69: #{_lambda_.7} parent=5 // pred_check
        %p567 = pneg %p566
      $region70: #{_lambda_.7} parent=5 // pred_check_branch
        %569 = sbr.rel (%p567) target = $region72
      $region71: #{_lambda_.7} parent=5 // pred_region
        // Predicated region
        $region73: #{_lambda_.7} parent=71 // pred_check
          %p570 = pneg %p53
        $region74: #{_lambda_.7} parent=71 // pred_check_branch
          %572 = sbr.rel (%p570) target = $region76
        $region75: #{_lambda_.7} parent=71 // pred_region
          %p573 = scmp.lt.s32.totalorder %s33, 1
          %s574 = scalar_select %p573, %s33, 1
          %s575 = smul.addr %s574, 8
          %s576 = scalar_lea.vmem %s0, %s575
        $region76: #{_lambda_.7} parent=71 // pred_fallthru
          _
        // Predicated region
        $region77: #{_lambda_.7} parent=71 // pred_check
          %p577 = pneg %p79
        $region78: #{_lambda_.7} parent=71 // pred_check_branch
          %579 = sbr.rel (%p577) target = $region80
        $region79: #{_lambda_.7} parent=71 // pred_region
          %p580 = scmp.lt.s32.totalorder %s33, 1
          %s581 = scalar_select %p580, %s33, 1
          %s582 = smul.addr %s581, 2
          %s583 = smul.addr %s582, 8
          %s584 = scalar_lea.vmem %s1, %s583
        $region80: #{_lambda_.7} parent=71 // pred_fallthru
          _
        // Predicated region
        $region81: #{_lambda_.7} parent=71 // pred_check
          %p585 = pneg %p105
        $region82: #{_lambda_.7} parent=71 // pred_check_branch
          %587 = sbr.rel (%p585) target = $region84
        $region83: #{_lambda_.7} parent=71 // pred_region
          %p588 = scmp.lt.s32.totalorder %s33, 1
          %s589 = scalar_select %p588, %s33, 1
          %s590 = smul.addr %s589, 8
          %s591 = scalar_lea.vmem %s2, %s590
        $region84: #{_lambda_.7} parent=71 // pred_fallthru
          _
        // Predicated region
        $region85: #{_lambda_.7} parent=71 // pred_check
          %p592 = pneg %p131
        $region86: #{_lambda_.7} parent=71 // pred_check_branch
          %594 = sbr.rel (%p592) target = $region88
        $region87: #{_lambda_.7} parent=71 // pred_region
          %p595 = scmp.lt.s32.totalorder %s33, 1
          %s596 = scalar_select %p595, %s33, 1
          %s597 = smul.addr %s596, 8
          %s598 = scalar_lea.vmem %s3, %s597
        $region88: #{_lambda_.7} parent=71 // pred_fallthru
          _
      $region72: #{_lambda_.7} parent=5 // pred_fallthru
        _
      %p599 = scmp.le.s32.totalorder 1, %s33
      %p600 = scmp.lt.s32.totalorder %s33, 3
      %p601 = pnand %p599, %p600
      %p602 = pneg %p601
      // Predicated region
      $region89: #{_lambda_.7} parent=5 // pred_check
        _
      $region90: #{_lambda_.7} parent=5 // pred_check_branch
        %604 = sbr.rel (%p601) target = $region92
      $region91: #{_lambda_.7} parent=5 // pred_region
        %s605 = ssub.s32 %s33, 1
        %p606 = scmp.lt.s32.totalorder %s38, 1
        %s607 = scalar_select %p606, %s38, 1
        %s608 = smul.addr %s607, 8
        %s609 = scalar_lea.vmem %s0, %s608
        %p610 = pneg %p59
        %p611 = pneg %p56
        %p612 = scmp.lt.s32.totalorder %s38, 1
        %s613 = scalar_select %p612, %s38, 1
        %s614 = smul.addr %s613, 2
        %s615 = smul.addr %s614, 8
        %s616 = scalar_lea.vmem %s1, %s615
        %p617 = pneg %p85
        %p618 = pneg %p82
        %p619 = scmp.lt.s32.totalorder %s38, 1
        %s620 = scalar_select %p619, %s38, 1
        %s621 = smul.addr %s620, 8
        %s622 = scalar_lea.vmem %s2, %s621
        %p623 = pneg %p111
        %p624 = pneg %p108
        %p625 = scmp.lt.s32.totalorder %s38, 1
        %s626 = scalar_select %p625, %s38, 1
        %s627 = smul.addr %s626, 8
        %s628 = scalar_lea.vmem %s3, %s627
        %p629 = pneg %p137
        %p630 = pneg %p134
        %p631 = pneg %p158
        %p632 = pneg %p155
        %p633 = pneg %p179
        %p634 = pneg %p176
        %p635 = pneg %p200
        %p636 = pneg %p197
        %p637 = pneg %p221
        %p638 = pneg %p218
        %p639 = pneg %p242
        %p640 = pneg %p239
        %p641 = pneg %p263
        %p642 = pneg %p260
        %p643 = pneg %p284
        %p644 = pneg %p281
        %p645 = pneg %p305
        %p646 = pneg %p302
        %p647 = pneg %p326
        %p648 = pneg %p323
        %p649 = pneg %p347
        %p650 = pneg %p344
        %p651 = pneg %p368
        %p652 = pneg %p365
        %p653 = pneg %p389
        %p654 = pneg %p386
        %p655 = pneg %p410
        %p656 = pneg %p407
        %p657 = pneg %p431
        %p658 = pneg %p428
        %p659 = pneg %p457
        %p660 = pneg %p454
        %p661 = scmp.lt.s32.totalorder %s38, 1
        %s662 = scalar_select %p661, %s38, 1
        %s663 = smul.addr %s662, 8
        %s664 = scalar_lea.vmem %s18, %s663
        %p665 = pneg %p483
        %p666 = pneg %p480
        %s667 = sand.u32 %s470, 1
        %s668 = scalar_lea.sflag [#allocation3], %s667
        %s669 = sand.u32 %s470, 1
        %s670 = smul.addr %s669, 32
        %s671 = scalar_lea.vmem [#allocation2], %s670
        %p672 = pneg %p509
        %p673 = pneg %p506
        %s674 = sand.u32 %s496, 1
        %s675 = scalar_lea.sflag [#allocation5], %s674
        %s676 = sand.u32 %s496, 1
        %s677 = smul.addr %s676, 32
        %s678 = scalar_lea.vmem [#allocation4], %s677
        %p679 = scmp.lt.s32.totalorder %s38, 1
        %s680 = scalar_select %p679, %s38, 1
        %s681 = smul.addr %s680, 8
        %s682 = scalar_lea.vmem %s0, %s681
        %p683 = scmp.lt.s32.totalorder %s38, 1
        %s684 = scalar_select %p683, %s38, 1
        %s685 = smul.addr %s684, 2
        %s686 = smul.addr %s685, 8
        %s687 = scalar_lea.vmem %s1, %s686
        %p688 = scmp.lt.s32.totalorder %s38, 1
        %s689 = scalar_select %p688, %s38, 1
        %s690 = smul.addr %s689, 8
        %s691 = scalar_lea.vmem %s2, %s690
        %p692 = scmp.lt.s32.totalorder %s38, 1
        %s693 = scalar_select %p692, %s38, 1
        %s694 = smul.addr %s693, 8
        %s695 = scalar_lea.vmem %s3, %s694
        %p696 = scmp.lt.s32.totalorder %s38, 1
        %s697 = scalar_select %p696, %s38, 1
        %s698 = smul.addr %s697, 8
        %s699 = scalar_lea.vmem %s18, %s698
        %v701 = vld [vmem:[%s682] sm:$0xff]
        %v702 = vld [vmem:[%s687] sm:$0xff]
        %v703 = vld [vmem:[%s687 + $0x8] sm:$0xff]
        %v704 = vld [vmem:[%s691] sm:$0xff]
        %v705 = vld [vmem:[%s695] sm:$0xff]
        %v706 = vld [vmem:[%s4] sm:$0xf]
        %v707 = vld [vmem:[%s4 + $0x4] sm:$0xf]
        %v708 = vld [vmem:[%s4 + $0x8] sm:$0xf]
        %v709 = vld [vmem:[%s4 + $0xc] sm:$0xf]
        %v710 = vld [vmem:[%s5] sm:$0xf]
        %v711 = vld [vmem:[%s5 + $0x4] sm:$0xf]
        %v712 = vld [vmem:[%s5 + $0x8] sm:$0xf]
        %v713 = vld [vmem:[%s5 + $0xc] sm:$0xf]
        %v714 = vpack.c.bf16 %v701, %v701
        %v719 = vunpack.c.l.b16 %v706
        %v720 = vunpack.c.l.b16 %v707
        %v721 = vunpack.c.l.b16 %v708
        %v722 = vunpack.c.l.b16 %v709
        %v723 = vpack.c.b16 %v720, %v719
        %v724 = vpack.c.b16 %v722, %v721
        %vm727 = vcmask 261120
        %v729 = vsel %vm727, %v714, 0
        %731 = vmatprep.subr.bf16.mxu0 0
        %732 = vmatpush1.bf16.msra.mxu0 0
        %733 = vmatprep.subr.bf16.mxu0 0
        %734 = vmatpush1.bf16.msra.mxu0 0
        %735 = vmatprep.subr.bf16.mxu0 0
        %736 = vmatpush1.bf16.msra.mxu0 0
        %737 = vmatprep.subr.bf16.mxu0 0
        %738 = vmatpush1.bf16.msra.mxu0 0
        %739 = vmatprep.subr.bf16.mxu0 0
        %740 = vmatpush1.bf16.msra.mxu0 0
        %741 = vmatprep.subr.bf16.mxu0 0
        %742 = vmatpush1.bf16.msra.mxu0 0
        %743 = vmatprep.subr.bf16.mxu0 0
        %744 = vmatpush1.bf16.msra.mxu0 %v724
        %745 = vmatprep.subr.bf16.mxu0 0
        %746 = vmatpush1.bf16.msra.mxu0 %v723
        %747 = vmatprep.subr.bf16.mxu0 0
        %748 = vmatpush2.bf16.msra.mxu0 0
        %749 = vmatprep.subr.bf16.mxu0 0
        %750 = vmatpush2.bf16.msra.mxu0 0
        %751 = vmatprep.subr.bf16.mxu0 0
        %752 = vmatpush2.bf16.msra.mxu0 0
        %753 = vmatprep.subr.bf16.mxu0 0
        %754 = vmatpush2.bf16.msra.mxu0 0
        %755 = vmatprep.subr.bf16.mxu0 0
        %756 = vmatpush2.bf16.msra.mxu0 0
        %757 = vmatprep.subr.bf16.mxu0 0
        %758 = vmatpush2.bf16.msra.mxu0 0
        %759 = vmatprep.subr.bf16.mxu0 0
        %760 = vmatpush2.bf16.msra.mxu0 0
        %761 = vmatprep.subr.bf16.mxu0 0
        %762 = vmatpush2.bf16.msra.mxu0 0
        %763 = vmatprep.mubr.bf16.mxu0 0
        %764 = vmatmul.mubr.bf16.gmra.mxu0 %v729
        %v765 = vpop.f32.mrf.mxu0
        %v766 = vadd.f32 0.0, %v765
        %v767 = vpop.f32.mrf.mxu0
        %v768 = vpop.f32.mrf.mxu0
        %v769 = vpop.f32.mrf.mxu0
        %770 = vdwg.mxu0
        %772 = vrot.lane.b32.xlu0 %v766, 120
        %v773 = vpop.permute.xlu0 %772
        %775 = vrot.lane.b32.xlu0 %v766, 112
        %v776 = vpop.permute.xlu0 %775
        %778 = vrot.lane.b32.xlu0 %v766, 104
        %v779 = vpop.permute.xlu0 %778
        %v781 = vpack.c.bf16 %v766, %v766
        %v782 = vpack.c.bf16 %v773, %v773
        %v783 = vpack.c.bf16 %v776, %v776
        %v784 = vpack.c.bf16 %v779, %v779
        %v785 = vmul.f32 %v704, -1e+09
        %787 = vrot.lane.b32.xlu0 %v781, 96
        %v788 = vpop.permute.xlu0 %787
        %vm789 = vcmask 64512
        %v791 = vsel %vm789, %v781, 0
        %v794 = vsel %vm789, %v788, 0
        %796 = vmatprep.subr.bf16.mxu0 0
        %797 = vmatpush1.bf16.xpose.msra.mxu0 0
        %798 = vmatprep.subr.bf16.mxu0 0
        %799 = vmatpush1.bf16.xpose.msra.mxu0 0
        %800 = vmatprep.subr.bf16.mxu0 0
        %801 = vmatpush1.bf16.xpose.msra.mxu0 0
        %802 = vmatprep.subr.bf16.mxu0 0
        %803 = vmatpush1.bf16.xpose.msra.mxu0 0
        %804 = vmatprep.subr.bf16.mxu0 0
        %805 = vmatpush1.bf16.xpose.msra.mxu0 0
        %806 = vmatprep.subr.bf16.mxu0 0
        %807 = vmatpush1.bf16.xpose.msra.mxu0 0
        %808 = vmatprep.subr.bf16.mxu0 0
        %809 = vmatpush1.bf16.xpose.msra.mxu0 0
        %810 = vmatprep.subr.bf16.mxu0 0
        %811 = vmatpush1.bf16.xpose.msra.mxu0 %v794
        %812 = vmatprep.subr.bf16.mxu0 0
        %813 = vmatpush2.bf16.xpose.msra.mxu0 0
        %814 = vmatprep.subr.bf16.mxu0 0
        %815 = vmatpush2.bf16.xpose.msra.mxu0 0
        %816 = vmatprep.subr.bf16.mxu0 0
        %817 = vmatpush2.bf16.xpose.msra.mxu0 0
        %818 = vmatprep.subr.bf16.mxu0 0
        %819 = vmatpush2.bf16.xpose.msra.mxu0 0
        %820 = vmatprep.subr.bf16.mxu0 0
        %821 = vmatpush2.bf16.xpose.msra.mxu0 0
        %822 = vmatprep.subr.bf16.mxu0 0
        %823 = vmatpush2.bf16.xpose.msra.mxu0 0
        %824 = vmatprep.subr.bf16.mxu0 0
        %825 = vmatpush2.bf16.xpose.msra.mxu0 0
        %826 = vmatprep.subr.bf16.mxu0 0
        %827 = vmatpush2.bf16.xpose.msra.mxu0 0
        %828 = vmatprep.mubr.bf16.mxu0 0
        %829 = vmatmul.mubr.bf16.gmra.mxu0 %v791
        %v830 = vpop.f32.mrf.mxu0
        %v831 = vadd.f32 %v785, %v830
        %v832 = vpop.f32.mrf.mxu0
        %v833 = vpop.f32.mrf.mxu0
        %v834 = vpop.f32.mrf.mxu0
        %835 = vdwg.mxu0
        %837 = vrot.lane.b32.xlu0 %v782, 96
        %v838 = vpop.permute.xlu0 %837
        %v840 = vsel %vm789, %v782, 0
        %v843 = vsel %vm789, %v838, 0
        %845 = vmatprep.subr.bf16.mxu0 0
        %846 = vmatpush1.bf16.xpose.msra.mxu0 0
        %847 = vmatprep.subr.bf16.mxu0 0
        %848 = vmatpush1.bf16.xpose.msra.mxu0 0
        %849 = vmatprep.subr.bf16.mxu0 0
        %850 = vmatpush1.bf16.xpose.msra.mxu0 0
        %851 = vmatprep.subr.bf16.mxu0 0
        %852 = vmatpush1.bf16.xpose.msra.mxu0 0
        %853 = vmatprep.subr.bf16.mxu0 0
        %854 = vmatpush1.bf16.xpose.msra.mxu0 0
        %855 = vmatprep.subr.bf16.mxu0 0
        %856 = vmatpush1.bf16.xpose.msra.mxu0 0
        %857 = vmatprep.subr.bf16.mxu0 0
        %858 = vmatpush1.bf16.xpose.msra.mxu0 0
        %859 = vmatprep.subr.bf16.mxu0 0
        %860 = vmatpush1.bf16.xpose.msra.mxu0 %v843
        %861 = vmatprep.subr.bf16.mxu0 0
        %862 = vmatpush2.bf16.xpose.msra.mxu0 0
        %863 = vmatprep.subr.bf16.mxu0 0
        %864 = vmatpush2.bf16.xpose.msra.mxu0 0
        %865 = vmatprep.subr.bf16.mxu0 0
        %866 = vmatpush2.bf16.xpose.msra.mxu0 0
        %867 = vmatprep.subr.bf16.mxu0 0
        %868 = vmatpush2.bf16.xpose.msra.mxu0 0
        %869 = vmatprep.subr.bf16.mxu0 0
        %870 = vmatpush2.bf16.xpose.msra.mxu0 0
        %871 = vmatprep.subr.bf16.mxu0 0
        %872 = vmatpush2.bf16.xpose.msra.mxu0 0
        %873 = vmatprep.subr.bf16.mxu0 0
        %874 = vmatpush2.bf16.xpose.msra.mxu0 0
        %875 = vmatprep.subr.bf16.mxu0 0
        %876 = vmatpush2.bf16.xpose.msra.mxu0 0
        %877 = vmatprep.mubr.bf16.mxu0 0
        %878 = vmatmul.mubr.bf16.gmra.mxu0 %v840
        %v879 = vpop.f32.mrf.mxu0
        %v880 = vadd.f32 %v785, %v879
        %v881 = vpop.f32.mrf.mxu0
        %v882 = vpop.f32.mrf.mxu0
        %v883 = vpop.f32.mrf.mxu0
        %884 = vdwg.mxu0
        %886 = vrot.lane.b32.xlu0 %v783, 96
        %v887 = vpop.permute.xlu0 %886
        %v889 = vsel %vm789, %v783, 0
        %v892 = vsel %vm789, %v887, 0
        %894 = vmatprep.subr.bf16.mxu0 0
        %895 = vmatpush1.bf16.xpose.msra.mxu0 0
        %896 = vmatprep.subr.bf16.mxu0 0
        %897 = vmatpush1.bf16.xpose.msra.mxu0 0
        %898 = vmatprep.subr.bf16.mxu0 0
        %899 = vmatpush1.bf16.xpose.msra.mxu0 0
        %900 = vmatprep.subr.bf16.mxu0 0
        %901 = vmatpush1.bf16.xpose.msra.mxu0 0
        %902 = vmatprep.subr.bf16.mxu0 0
        %903 = vmatpush1.bf16.xpose.msra.mxu0 0
        %904 = vmatprep.subr.bf16.mxu0 0
        %905 = vmatpush1.bf16.xpose.msra.mxu0 0
        %906 = vmatprep.subr.bf16.mxu0 0
        %907 = vmatpush1.bf16.xpose.msra.mxu0 0
        %908 = vmatprep.subr.bf16.mxu0 0
        %909 = vmatpush1.bf16.xpose.msra.mxu0 %v892
        %910 = vmatprep.subr.bf16.mxu0 0
        %911 = vmatpush2.bf16.xpose.msra.mxu0 0
        %912 = vmatprep.subr.bf16.mxu0 0
        %913 = vmatpush2.bf16.xpose.msra.mxu0 0
        %914 = vmatprep.subr.bf16.mxu0 0
        %915 = vmatpush2.bf16.xpose.msra.mxu0 0
        %916 = vmatprep.subr.bf16.mxu0 0
        %917 = vmatpush2.bf16.xpose.msra.mxu0 0
        %918 = vmatprep.subr.bf16.mxu0 0
        %919 = vmatpush2.bf16.xpose.msra.mxu0 0
        %920 = vmatprep.subr.bf16.mxu0 0
        %921 = vmatpush2.bf16.xpose.msra.mxu0 0
        %922 = vmatprep.subr.bf16.mxu0 0
        %923 = vmatpush2.bf16.xpose.msra.mxu0 0
        %924 = vmatprep.subr.bf16.mxu0 0
        %925 = vmatpush2.bf16.xpose.msra.mxu0 0
        %926 = vmatprep.mubr.bf16.mxu0 0
        %927 = vmatmul.mubr.bf16.gmra.mxu0 %v889
        %v928 = vpop.f32.mrf.mxu0
        %v929 = vadd.f32 %v785, %v928
        %v930 = vpop.f32.mrf.mxu0
        %v931 = vpop.f32.mrf.mxu0
        %v932 = vpop.f32.mrf.mxu0
        %933 = vdwg.mxu0
        %935 = vrot.lane.b32.xlu0 %v784, 96
        %v936 = vpop.permute.xlu0 %935
        %v938 = vsel %vm789, %v784, 0
        %v941 = vsel %vm789, %v936, 0
        %943 = vmatprep.subr.bf16.mxu0 0
        %944 = vmatpush1.bf16.xpose.msra.mxu0 0
        %945 = vmatprep.subr.bf16.mxu0 0
        %946 = vmatpush1.bf16.xpose.msra.mxu0 0
        %947 = vmatprep.subr.bf16.mxu0 0
        %948 = vmatpush1.bf16.xpose.msra.mxu0 0
        %949 = vmatprep.subr.bf16.mxu0 0
        %950 = vmatpush1.bf16.xpose.msra.mxu0 0
        %951 = vmatprep.subr.bf16.mxu0 0
        %952 = vmatpush1.bf16.xpose.msra.mxu0 0
        %953 = vmatprep.subr.bf16.mxu0 0
        %954 = vmatpush1.bf16.xpose.msra.mxu0 0
        %955 = vmatprep.subr.bf16.mxu0 0
        %956 = vmatpush1.bf16.xpose.msra.mxu0 0
        %957 = vmatprep.subr.bf16.mxu0 0
        %958 = vmatpush1.bf16.xpose.msra.mxu0 %v941
        %959 = vmatprep.subr.bf16.mxu0 0
        %960 = vmatpush2.bf16.xpose.msra.mxu0 0
        %961 = vmatprep.subr.bf16.mxu0 0
        %962 = vmatpush2.bf16.xpose.msra.mxu0 0
        %963 = vmatprep.subr.bf16.mxu0 0
        %964 = vmatpush2.bf16.xpose.msra.mxu0 0
        %965 = vmatprep.subr.bf16.mxu0 0
        %966 = vmatpush2.bf16.xpose.msra.mxu0 0
        %967 = vmatprep.subr.bf16.mxu0 0
        %968 = vmatpush2.bf16.xpose.msra.mxu0 0
        %969 = vmatprep.subr.bf16.mxu0 0
        %970 = vmatpush2.bf16.xpose.msra.mxu0 0
        %971 = vmatprep.subr.bf16.mxu0 0
        %972 = vmatpush2.bf16.xpose.msra.mxu0 0
        %973 = vmatprep.subr.bf16.mxu0 0
        %974 = vmatpush2.bf16.xpose.msra.mxu0 0
        %975 = vmatprep.mubr.bf16.mxu0 0
        %976 = vmatmul.mubr.bf16.gmra.mxu0 %v938
        %v977 = vpop.f32.mrf.mxu0
        %v978 = vadd.f32 %v785, %v977
        %v979 = vpop.f32.mrf.mxu0
        %v980 = vpop.f32.mrf.mxu0
        %v981 = vpop.f32.mrf.mxu0
        %982 = vdwg.mxu0
        %v983 = vmul.f32 %v831, 0.35355338
        %v984 = vmul.f32 %v880, 0.35355338
        %v985 = vmul.f32 %v929, 0.35355338
        %v986 = vmul.f32 %v978, 0.35355338
        %v987 = vsel %vm789, %v983, -inf
        %988 = vmax.xlane.f32.xlu0 %v987
        %v989 = vpop.xlane.xlu0 %988
        %v990 = vsel %vm789, %v984, -inf
        %991 = vmax.xlane.f32.xlu0 %v990
        %v992 = vpop.xlane.xlu0 %991
        %v993 = vsel %vm789, %v985, -inf
        %994 = vmax.xlane.f32.xlu0 %v993
        %v995 = vpop.xlane.xlu0 %994
        %v996 = vsel %vm789, %v986, -inf
        %997 = vmax.xlane.f32.xlu0 %v996
        %v998 = vpop.xlane.xlu0 %997
        %v999 = vsub.f32 %v983, %v989
        %v1000 = vsub.f32 %v984, %v992
        %v1001 = vsub.f32 %v985, %v995
        %v1002 = vsub.f32 %v986, %v998
        %v1003 = vmul.f32 %v999, 1.442695
        %v1004 = vpow.pop %v1003
        %v1005 = vmul.f32 %v1000, 1.442695
        %v1006 = vpow.pop %v1005
        %v1007 = vmul.f32 %v1001, 1.442695
        %v1008 = vpow.pop %v1007
        %v1009 = vmul.f32 %v1002, 1.442695
        %v1010 = vpow.pop %v1009
        %v1011 = vsel %vm789, %v1004, 0.0
        %1012 = vadd.xlane.f32.xlu0 %v1011
        %v1013 = vpop.xlane.xlu0 %1012
        %v1014 = vsel %vm789, %v1006, 0.0
        %1015 = vadd.xlane.f32.xlu0 %v1014
        %v1016 = vpop.xlane.xlu0 %1015
        %v1017 = vsel %vm789, %v1008, 0.0
        %1018 = vadd.xlane.f32.xlu0 %v1017
        %v1019 = vpop.xlane.xlu0 %1018
        %v1020 = vsel %vm789, %v1010, 0.0
        %1021 = vadd.xlane.f32.xlu0 %v1020
        %v1022 = vpop.xlane.xlu0 %1021
        %v1023 = vrcp.pop %v1013
        %v1024 = vrcp.pop %v1016
        %v1025 = vrcp.pop %v1019
        %v1026 = vrcp.pop %v1022
        %v1027 = vmul.f32 %v1004, %v1023
        %v1028 = vmul.f32 %v1006, %v1024
        %v1029 = vmul.f32 %v1008, %v1025
        %v1030 = vmul.f32 %v1010, %v1026
        %v1031 = vpack.c.bf16 %v1027, %v1027
        %v1032 = vpack.c.bf16 %v1028, %v1028
        %v1033 = vpack.c.bf16 %v1029, %v1029
        %v1034 = vpack.c.bf16 %v1030, %v1030
        %1035 = vrot.lane.b32.xlu0 %v781, 64
        %v1036 = vpop.permute.xlu0 %1035
        %v1038 = vsel %vm789, %v1031, 0
        %vm1040 = vcmask 1043456
        %v1042 = vsel %vm1040, %v1036, 0
        %1044 = vmatprep.subr.bf16.mxu0 0
        %1045 = vmatpush1.bf16.msra.mxu0 0
        %1046 = vmatprep.subr.bf16.mxu0 0
        %1047 = vmatpush1.bf16.msra.mxu0 0
        %1048 = vmatprep.subr.bf16.mxu0 0
        %1049 = vmatpush1.bf16.msra.mxu0 0
        %1050 = vmatprep.subr.bf16.mxu0 0
        %1051 = vmatpush1.bf16.msra.mxu0 0
        %1052 = vmatprep.subr.bf16.mxu0 0
        %1053 = vmatpush1.bf16.msra.mxu0 0
        %1054 = vmatprep.subr.bf16.mxu0 0
        %1055 = vmatpush1.bf16.msra.mxu0 0
        %1056 = vmatprep.subr.bf16.mxu0 0
        %1057 = vmatpush1.bf16.msra.mxu0 0
        %1058 = vmatprep.subr.bf16.mxu0 0
        %1059 = vmatpush1.bf16.msra.mxu0 %v1042
        %1060 = vmatprep.subr.bf16.mxu0 0
        %1061 = vmatpush2.bf16.msra.mxu0 0
        %1062 = vmatprep.subr.bf16.mxu0 0
        %1063 = vmatpush2.bf16.msra.mxu0 0
        %1064 = vmatprep.subr.bf16.mxu0 0
        %1065 = vmatpush2.bf16.msra.mxu0 0
        %1066 = vmatprep.subr.bf16.mxu0 0
        %1067 = vmatpush2.bf16.msra.mxu0 0
        %1068 = vmatprep.subr.bf16.mxu0 0
        %1069 = vmatpush2.bf16.msra.mxu0 0
        %1070 = vmatprep.subr.bf16.mxu0 0
        %1071 = vmatpush2.bf16.msra.mxu0 0
        %1072 = vmatprep.subr.bf16.mxu0 0
        %1073 = vmatpush2.bf16.msra.mxu0 0
        %1074 = vmatprep.subr.bf16.mxu0 0
        %1075 = vmatpush2.bf16.msra.mxu0 0
        %1076 = vmatprep.mubr.bf16.mxu0 0
        %1077 = vmatmul.mubr.bf16.gmra.mxu0 %v1038
        %v1078 = vpop.f32.mrf.mxu0
        %v1079 = vadd.f32 0.0, %v1078
        %v1080 = vpop.f32.mrf.mxu0
        %v1081 = vpop.f32.mrf.mxu0
        %v1082 = vpop.f32.mrf.mxu0
        %1083 = vdwg.mxu0
        %1084 = vrot.lane.b32.xlu0 %v782, 64
        %v1085 = vpop.permute.xlu0 %1084
        %v1087 = vsel %vm789, %v1032, 0
        %v1090 = vsel %vm1040, %v1085, 0
        %1092 = vmatprep.subr.bf16.mxu0 0
        %1093 = vmatpush1.bf16.msra.mxu0 0
        %1094 = vmatprep.subr.bf16.mxu0 0
        %1095 = vmatpush1.bf16.msra.mxu0 0
        %1096 = vmatprep.subr.bf16.mxu0 0
        %1097 = vmatpush1.bf16.msra.mxu0 0
        %1098 = vmatprep.subr.bf16.mxu0 0
        %1099 = vmatpush1.bf16.msra.mxu0 0
        %1100 = vmatprep.subr.bf16.mxu0 0
        %1101 = vmatpush1.bf16.msra.mxu0 0
        %1102 = vmatprep.subr.bf16.mxu0 0
        %1103 = vmatpush1.bf16.msra.mxu0 0
        %1104 = vmatprep.subr.bf16.mxu0 0
        %1105 = vmatpush1.bf16.msra.mxu0 0
        %1106 = vmatprep.subr.bf16.mxu0 0
        %1107 = vmatpush1.bf16.msra.mxu0 %v1090
        %1108 = vmatprep.subr.bf16.mxu0 0
        %1109 = vmatpush2.bf16.msra.mxu0 0
        %1110 = vmatprep.subr.bf16.mxu0 0
        %1111 = vmatpush2.bf16.msra.mxu0 0
        %1112 = vmatprep.subr.bf16.mxu0 0
        %1113 = vmatpush2.bf16.msra.mxu0 0
        %1114 = vmatprep.subr.bf16.mxu0 0
        %1115 = vmatpush2.bf16.msra.mxu0 0
        %1116 = vmatprep.subr.bf16.mxu0 0
        %1117 = vmatpush2.bf16.msra.mxu0 0
        %1118 = vmatprep.subr.bf16.mxu0 0
        %1119 = vmatpush2.bf16.msra.mxu0 0
        %1120 = vmatprep.subr.bf16.mxu0 0
        %1121 = vmatpush2.bf16.msra.mxu0 0
        %1122 = vmatprep.subr.bf16.mxu0 0
        %1123 = vmatpush2.bf16.msra.mxu0 0
        %1124 = vmatprep.mubr.bf16.mxu0 0
        %1125 = vmatmul.mubr.bf16.gmra.mxu0 %v1087
        %v1126 = vpop.f32.mrf.mxu0
        %v1127 = vadd.f32 0.0, %v1126
        %v1128 = vpop.f32.mrf.mxu0
        %v1129 = vpop.f32.mrf.mxu0
        %v1130 = vpop.f32.mrf.mxu0
        %1131 = vdwg.mxu0
        %1132 = vrot.lane.b32.xlu0 %v783, 64
        %v1133 = vpop.permute.xlu0 %1132
        %v1135 = vsel %vm789, %v1033, 0
        %v1138 = vsel %vm1040, %v1133, 0
        %1140 = vmatprep.subr.bf16.mxu0 0
        %1141 = vmatpush1.bf16.msra.mxu0 0
        %1142 = vmatprep.subr.bf16.mxu0 0
        %1143 = vmatpush1.bf16.msra.mxu0 0
        %1144 = vmatprep.subr.bf16.mxu0 0
        %1145 = vmatpush1.bf16.msra.mxu0 0
        %1146 = vmatprep.subr.bf16.mxu0 0
        %1147 = vmatpush1.bf16.msra.mxu0 0
        %1148 = vmatprep.subr.bf16.mxu0 0
        %1149 = vmatpush1.bf16.msra.mxu0 0
        %1150 = vmatprep.subr.bf16.mxu0 0
        %1151 = vmatpush1.bf16.msra.mxu0 0
        %1152 = vmatprep.subr.bf16.mxu0 0
        %1153 = vmatpush1.bf16.msra.mxu0 0
        %1154 = vmatprep.subr.bf16.mxu0 0
        %1155 = vmatpush1.bf16.msra.mxu0 %v1138
        %1156 = vmatprep.subr.bf16.mxu0 0
        %1157 = vmatpush2.bf16.msra.mxu0 0
        %1158 = vmatprep.subr.bf16.mxu0 0
        %1159 = vmatpush2.bf16.msra.mxu0 0
        %1160 = vmatprep.subr.bf16.mxu0 0
        %1161 = vmatpush2.bf16.msra.mxu0 0
        %1162 = vmatprep.subr.bf16.mxu0 0
        %1163 = vmatpush2.bf16.msra.mxu0 0
        %1164 = vmatprep.subr.bf16.mxu0 0
        %1165 = vmatpush2.bf16.msra.mxu0 0
        %1166 = vmatprep.subr.bf16.mxu0 0
        %1167 = vmatpush2.bf16.msra.mxu0 0
        %1168 = vmatprep.subr.bf16.mxu0 0
        %1169 = vmatpush2.bf16.msra.mxu0 0
        %1170 = vmatprep.subr.bf16.mxu0 0
        %1171 = vmatpush2.bf16.msra.mxu0 0
        %1172 = vmatprep.mubr.bf16.mxu0 0
        %1173 = vmatmul.mubr.bf16.gmra.mxu0 %v1135
        %v1174 = vpop.f32.mrf.mxu0
        %v1175 = vadd.f32 0.0, %v1174
        %v1176 = vpop.f32.mrf.mxu0
        %v1177 = vpop.f32.mrf.mxu0
        %v1178 = vpop.f32.mrf.mxu0
        %1179 = vdwg.mxu0
        %1180 = vrot.lane.b32.xlu0 %v784, 64
        %v1181 = vpop.permute.xlu0 %1180
        %v1183 = vsel %vm789, %v1034, 0
        %v1186 = vsel %vm1040, %v1181, 0
        %1188 = vmatprep.subr.bf16.mxu0 0
        %1189 = vmatpush1.bf16.msra.mxu0 0
        %1190 = vmatprep.subr.bf16.mxu0 0
        %1191 = vmatpush1.bf16.msra.mxu0 0
        %1192 = vmatprep.subr.bf16.mxu0 0
        %1193 = vmatpush1.bf16.msra.mxu0 0
        %1194 = vmatprep.subr.bf16.mxu0 0
        %1195 = vmatpush1.bf16.msra.mxu0 0
        %1196 = vmatprep.subr.bf16.mxu0 0
        %1197 = vmatpush1.bf16.msra.mxu0 0
        %1198 = vmatprep.subr.bf16.mxu0 0
        %1199 = vmatpush1.bf16.msra.mxu0 0
        %1200 = vmatprep.subr.bf16.mxu0 0
        %1201 = vmatpush1.bf16.msra.mxu0 0
        %1202 = vmatprep.subr.bf16.mxu0 0
        %1203 = vmatpush1.bf16.msra.mxu0 %v1186
        %1204 = vmatprep.subr.bf16.mxu0 0
        %1205 = vmatpush2.bf16.msra.mxu0 0
        %1206 = vmatprep.subr.bf16.mxu0 0
        %1207 = vmatpush2.bf16.msra.mxu0 0
        %1208 = vmatprep.subr.bf16.mxu0 0
        %1209 = vmatpush2.bf16.msra.mxu0 0
        %1210 = vmatprep.subr.bf16.mxu0 0
        %1211 = vmatpush2.bf16.msra.mxu0 0
        %1212 = vmatprep.subr.bf16.mxu0 0
        %1213 = vmatpush2.bf16.msra.mxu0 0
        %1214 = vmatprep.subr.bf16.mxu0 0
        %1215 = vmatpush2.bf16.msra.mxu0 0
        %1216 = vmatprep.subr.bf16.mxu0 0
        %1217 = vmatpush2.bf16.msra.mxu0 0
        %1218 = vmatprep.subr.bf16.mxu0 0
        %1219 = vmatpush2.bf16.msra.mxu0 0
        %1220 = vmatprep.mubr.bf16.mxu0 0
        %1221 = vmatmul.mubr.bf16.gmra.mxu0 %v1183
        %v1222 = vpop.f32.mrf.mxu0
        %v1223 = vadd.f32 0.0, %v1222
        %v1224 = vpop.f32.mrf.mxu0
        %v1225 = vpop.f32.mrf.mxu0
        %v1226 = vpop.f32.mrf.mxu0
        %1227 = vdwg.mxu0
        %1229 = vrot.lane.b32.xlu0 %v1127, 8
        %v1230 = vpop.permute.xlu0 %1229
        %1233 = vrot.lane.b32.xlu0 %v1175, 16
        %v1234 = vpop.permute.xlu0 %1233
        %1237 = vrot.lane.b32.xlu0 %v1223, 24
        %v1238 = vpop.permute.xlu0 %1237
        %v1240 = vsel %vm789, %v1079, %v1230
        %vm1241 = vcmask 130048
        %v1242 = vsel %vm1241, %v1240, %v1234
        %vm1243 = vcmask 195584
        %v1244 = vsel %vm1243, %v1242, %v1238
        %v1245 = vpack.c.bf16 %v1244, %v1244
        %v1250 = vunpack.c.l.b16 %v710
        %v1251 = vunpack.c.l.b16 %v711
        %v1252 = vunpack.c.l.b16 %v712
        %v1253 = vunpack.c.l.b16 %v713
        %v1254 = vpack.c.b16 %v1251, %v1250
        %v1255 = vpack.c.b16 %v1253, %v1252
        %v1259 = vsel %vm727, %v1245, 0
        %1261 = vmatprep.subr.bf16.mxu0 0
        %1262 = vmatpush1.bf16.msra.mxu0 0
        %1263 = vmatprep.subr.bf16.mxu0 0
        %1264 = vmatpush1.bf16.msra.mxu0 0
        %1265 = vmatprep.subr.bf16.mxu0 0
        %1266 = vmatpush1.bf16.msra.mxu0 0
        %1267 = vmatprep.subr.bf16.mxu0 0
        %1268 = vmatpush1.bf16.msra.mxu0 0
        %1269 = vmatprep.subr.bf16.mxu0 0
        %1270 = vmatpush1.bf16.msra.mxu0 0
        %1271 = vmatprep.subr.bf16.mxu0 0
        %1272 = vmatpush1.bf16.msra.mxu0 0
        %1273 = vmatprep.subr.bf16.mxu0 0
        %1274 = vmatpush1.bf16.msra.mxu0 %v1255
        %1275 = vmatprep.subr.bf16.mxu0 0
        %1276 = vmatpush1.bf16.msra.mxu0 %v1254
        %1277 = vmatprep.subr.bf16.mxu0 0
        %1278 = vmatpush2.bf16.msra.mxu0 0
        %1279 = vmatprep.subr.bf16.mxu0 0
        %1280 = vmatpush2.bf16.msra.mxu0 0
        %1281 = vmatprep.subr.bf16.mxu0 0
        %1282 = vmatpush2.bf16.msra.mxu0 0
        %1283 = vmatprep.subr.bf16.mxu0 0
        %1284 = vmatpush2.bf16.msra.mxu0 0
        %1285 = vmatprep.subr.bf16.mxu0 0
        %1286 = vmatpush2.bf16.msra.mxu0 0
        %1287 = vmatprep.subr.bf16.mxu0 0
        %1288 = vmatpush2.bf16.msra.mxu0 0
        %1289 = vmatprep.subr.bf16.mxu0 0
        %1290 = vmatpush2.bf16.msra.mxu0 0
        %1291 = vmatprep.subr.bf16.mxu0 0
        %1292 = vmatpush2.bf16.msra.mxu0 0
        %1293 = vmatprep.mubr.bf16.mxu0 0
        %1294 = vmatmul.mubr.bf16.gmra.mxu0 %v1259
        %v1295 = vpop.f32.mrf.mxu0
        %v1296 = vadd.f32 0.0, %v1295
        %v1297 = vpop.f32.mrf.mxu0
        %v1298 = vpop.f32.mrf.mxu0
        %v1299 = vpop.f32.mrf.mxu0
        %1300 = vdwg.mxu0
        %1301 = vst.msk [vmem:[%s671] sm:$0xff] %vm789, %v1027
        %1302 = vst.msk [vmem:[%s671 + $0x8] sm:$0xff] %vm789, %v1028
        %1303 = vst.msk [vmem:[%s671 + $0x10] sm:$0xff] %vm789, %v1029
        %1304 = vst.msk [vmem:[%s671 + $0x18] sm:$0xff] %vm789, %v1030
        %v1305 = vld [vmem:[%s6] sm:$0x1]
        %v1306 = vld [vmem:[%s7] sm:$0x1]
        %v1307 = vadd.f32 %v701, %v1296
        %v1308 = vsel %vm727, %v1307, 0.0
        %1309 = vadd.xlane.f32.xlu0 %v1308
        %v1310 = vpop.xlane.xlu0 %1309
        %v1311 = vrcp.pop 32.0
        %v1312 = vmul.f32 %v1310, %v1311
        %v1313 = vsub.f32 %v1307, %v1312
        %v1314 = vmul.f32 %v1313, %v1313
        %v1315 = vsel %vm727, %v1314, 0.0
        %1316 = vadd.xlane.f32.xlu0 %v1315
        %v1317 = vpop.xlane.xlu0 %1316
        %v1318 = vmul.f32 %v1317, %v1311
        %v1319 = vadd.f32 %v1318, 1e-05
        %v1320 = vrsqrt.pop %v1319
        %v1321 = vmul.f32 %v1313, %v1320
        %v1323 = vlaneseq
        %v1324 = vshrl.u32 %v1323, 7
        %v1325 = vsub.s32 0, %v1324
        %v1326 = vrot.slane %v1305, %v1325
        %v1328 = vmul.f32 %v1321, %v1326
        %v1330 = vlaneseq
        %v1331 = vshrl.u32 %v1330, 7
        %v1332 = vsub.s32 0, %v1331
        %v1333 = vrot.slane %v1306, %v1332
        %v1335 = vadd.f32 %v1328, %v1333
        %v1336 = vld [vmem:[%s8] sm:$0xf]
        %v1337 = vld [vmem:[%s8 + $0x4] sm:$0xf]
        %v1338 = vld [vmem:[%s8 + $0x8] sm:$0xf]
        %v1339 = vld [vmem:[%s8 + $0xc] sm:$0xf]
        %v1340 = vld [vmem:[%s9] sm:$0xf]
        %v1341 = vld [vmem:[%s9 + $0x4] sm:$0xf]
        %v1342 = vld [vmem:[%s9 + $0x8] sm:$0xf]
        %v1343 = vld [vmem:[%s9 + $0xc] sm:$0xf]
        %v1344 = vpack.c.bf16 %v1335, %v1335
        %v1349 = vunpack.c.l.b16 %v1336
        %v1350 = vunpack.c.l.b16 %v1337
        %v1351 = vunpack.c.l.b16 %v1338
        %v1352 = vunpack.c.l.b16 %v1339
        %v1353 = vpack.c.b16 %v1350, %v1349
        %v1354 = vpack.c.b16 %v1352, %v1351
        %v1358 = vsel %vm727, %v1344, 0
        %1360 = vmatprep.subr.bf16.mxu0 0
        %1361 = vmatpush1.bf16.msra.mxu0 0
        %1362 = vmatprep.subr.bf16.mxu0 0
        %1363 = vmatpush1.bf16.msra.mxu0 0
        %1364 = vmatprep.subr.bf16.mxu0 0
        %1365 = vmatpush1.bf16.msra.mxu0 0
        %1366 = vmatprep.subr.bf16.mxu0 0
        %1367 = vmatpush1.bf16.msra.mxu0 0
        %1368 = vmatprep.subr.bf16.mxu0 0
        %1369 = vmatpush1.bf16.msra.mxu0 0
        %1370 = vmatprep.subr.bf16.mxu0 0
        %1371 = vmatpush1.bf16.msra.mxu0 0
        %1372 = vmatprep.subr.bf16.mxu0 0
        %1373 = vmatpush1.bf16.msra.mxu0 %v1354
        %1374 = vmatprep.subr.bf16.mxu0 0
        %1375 = vmatpush1.bf16.msra.mxu0 %v1353
        %1376 = vmatprep.subr.bf16.mxu0 0
        %1377 = vmatpush2.bf16.msra.mxu0 0
        %1378 = vmatprep.subr.bf16.mxu0 0
        %1379 = vmatpush2.bf16.msra.mxu0 0
        %1380 = vmatprep.subr.bf16.mxu0 0
        %1381 = vmatpush2.bf16.msra.mxu0 0
        %1382 = vmatprep.subr.bf16.mxu0 0
        %1383 = vmatpush2.bf16.msra.mxu0 0
        %1384 = vmatprep.subr.bf16.mxu0 0
        %1385 = vmatpush2.bf16.msra.mxu0 0
        %1386 = vmatprep.subr.bf16.mxu0 0
        %1387 = vmatpush2.bf16.msra.mxu0 0
        %1388 = vmatprep.subr.bf16.mxu0 0
        %1389 = vmatpush2.bf16.msra.mxu0 0
        %1390 = vmatprep.subr.bf16.mxu0 0
        %1391 = vmatpush2.bf16.msra.mxu0 0
        %1392 = vmatprep.mubr.bf16.mxu0 0
        %1393 = vmatmul.mubr.bf16.gmra.mxu0 %v1358
        %v1394 = vpop.f32.mrf.mxu0
        %v1395 = vadd.f32 0.0, %v1394
        %v1396 = vpop.f32.mrf.mxu0
        %v1397 = vpop.f32.mrf.mxu0
        %v1398 = vpop.f32.mrf.mxu0
        %1399 = vdwg.mxu0
        %v1400 = vpack.c.bf16 %v703, %v702
        %1401 = vrot.lane.b32.xlu0 %v1353, 96
        %v1402 = vpop.permute.xlu0 %1401
        %1403 = vrot.lane.b32.xlu0 %v1354, 96
        %v1404 = vpop.permute.xlu0 %1403
        %v1408 = vsel %vm727, %v1400, 0
        %1410 = vmatprep.subr.bf16.mxu0 0
        %1411 = vmatpush1.bf16.msra.mxu0 0
        %1412 = vmatprep.subr.bf16.mxu0 0
        %1413 = vmatpush1.bf16.msra.mxu0 0
        %1414 = vmatprep.subr.bf16.mxu0 0
        %1415 = vmatpush1.bf16.msra.mxu0 0
        %1416 = vmatprep.subr.bf16.mxu0 0
        %1417 = vmatpush1.bf16.msra.mxu0 0
        %1418 = vmatprep.subr.bf16.mxu0 0
        %1419 = vmatpush1.bf16.msra.mxu0 0
        %1420 = vmatprep.subr.bf16.mxu0 0
        %1421 = vmatpush1.bf16.msra.mxu0 0
        %1422 = vmatprep.subr.bf16.mxu0 0
        %1423 = vmatpush1.bf16.msra.mxu0 %v1404
        %1424 = vmatprep.subr.bf16.mxu0 0
        %1425 = vmatpush1.bf16.msra.mxu0 %v1402
        %1426 = vmatprep.subr.bf16.mxu0 0
        %1427 = vmatpush2.bf16.msra.mxu0 0
        %1428 = vmatprep.subr.bf16.mxu0 0
        %1429 = vmatpush2.bf16.msra.mxu0 0
        %1430 = vmatprep.subr.bf16.mxu0 0
        %1431 = vmatpush2.bf16.msra.mxu0 0
        %1432 = vmatprep.subr.bf16.mxu0 0
        %1433 = vmatpush2.bf16.msra.mxu0 0
        %1434 = vmatprep.subr.bf16.mxu0 0
        %1435 = vmatpush2.bf16.msra.mxu0 0
        %1436 = vmatprep.subr.bf16.mxu0 0
        %1437 = vmatpush2.bf16.msra.mxu0 0
        %1438 = vmatprep.subr.bf16.mxu0 0
        %1439 = vmatpush2.bf16.msra.mxu0 0
        %1440 = vmatprep.subr.bf16.mxu0 0
        %1441 = vmatpush2.bf16.msra.mxu0 0
        %1442 = vmatprep.mubr.bf16.mxu0 0
        %1443 = vmatmul.mubr.bf16.gmra.mxu0 %v1408
        %v1444 = vpop.f32.mrf.mxu0
        %v1445 = vadd.f32 0.0, %v1444
        %v1446 = vpop.f32.mrf.mxu0
        %v1447 = vpop.f32.mrf.mxu0
        %v1448 = vadd.f32 0.0, %v1447
        %v1449 = vpop.f32.mrf.mxu0
        %1450 = vdwg.mxu0
        %1452 = vrot.lane.b32.xlu0 %v1395, 120
        %v1453 = vpop.permute.xlu0 %1452
        %1455 = vrot.lane.b32.xlu0 %v1395, 112
        %v1456 = vpop.permute.xlu0 %1455
        %1458 = vrot.lane.b32.xlu0 %v1395, 104
        %v1459 = vpop.permute.xlu0 %1458
        %v1461 = vpack.c.bf16 %v1395, %v1395
        %v1462 = vpack.c.bf16 %v1453, %v1453
        %v1463 = vpack.c.bf16 %v1456, %v1456
        %v1464 = vpack.c.bf16 %v1459, %v1459
        %1467 = vrot.lane.b32.xlu0 %v1445, 120
        %v1468 = vpop.permute.xlu0 %1467
        %1469 = vrot.lane.b32.xlu0 %v1448, 120
        %v1470 = vpop.permute.xlu0 %1469
        %1473 = vrot.lane.b32.xlu0 %v1445, 112
        %v1474 = vpop.permute.xlu0 %1473
        %1475 = vrot.lane.b32.xlu0 %v1448, 112
        %v1476 = vpop.permute.xlu0 %1475
        %1479 = vrot.lane.b32.xlu0 %v1445, 104
        %v1480 = vpop.permute.xlu0 %1479
        %1481 = vrot.lane.b32.xlu0 %v1448, 104
        %v1482 = vpop.permute.xlu0 %1481
        %v1485 = vpack.c.bf16 %v1448, %v1445
        %v1486 = vpack.c.bf16 %v1470, %v1468
        %v1487 = vpack.c.bf16 %v1476, %v1474
        %v1488 = vpack.c.bf16 %v1482, %v1480
        %v1489 = vmul.f32 %v705, -1e+09
        %v1491 = vsel %vm789, %v1461, 0
        %v1494 = vsel %vm789, %v1485, 0
        %1496 = vmatprep.subr.bf16.mxu0 0
        %1497 = vmatpush1.bf16.xpose.msra.mxu0 0
        %1498 = vmatprep.subr.bf16.mxu0 0
        %1499 = vmatpush1.bf16.xpose.msra.mxu0 0
        %1500 = vmatprep.subr.bf16.mxu0 0
        %1501 = vmatpush1.bf16.xpose.msra.mxu0 0
        %1502 = vmatprep.subr.bf16.mxu0 0
        %1503 = vmatpush1.bf16.xpose.msra.mxu0 0
        %1504 = vmatprep.subr.bf16.mxu0 0
        %1505 = vmatpush1.bf16.xpose.msra.mxu0 0
        %1506 = vmatprep.subr.bf16.mxu0 0
        %1507 = vmatpush1.bf16.xpose.msra.mxu0 0
        %1508 = vmatprep.subr.bf16.mxu0 0
        %1509 = vmatpush1.bf16.xpose.msra.mxu0 0
        %1510 = vmatprep.subr.bf16.mxu0 0
        %1511 = vmatpush1.bf16.xpose.msra.mxu0 %v1494
        %1512 = vmatprep.subr.bf16.mxu0 0
        %1513 = vmatpush2.bf16.xpose.msra.mxu0 0
        %1514 = vmatprep.subr.bf16.mxu0 0
        %1515 = vmatpush2.bf16.xpose.msra.mxu0 0
        %1516 = vmatprep.subr.bf16.mxu0 0
        %1517 = vmatpush2.bf16.xpose.msra.mxu0 0
        %1518 = vmatprep.subr.bf16.mxu0 0
        %1519 = vmatpush2.bf16.xpose.msra.mxu0 0
        %1520 = vmatprep.subr.bf16.mxu0 0
        %1521 = vmatpush2.bf16.xpose.msra.mxu0 0
        %1522 = vmatprep.subr.bf16.mxu0 0
        %1523 = vmatpush2.bf16.xpose.msra.mxu0 0
        %1524 = vmatprep.subr.bf16.mxu0 0
        %1525 = vmatpush2.bf16.xpose.msra.mxu0 0
        %1526 = vmatprep.subr.bf16.mxu0 0
        %1527 = vmatpush2.bf16.xpose.msra.mxu0 0
        %1528 = vmatprep.mubr.bf16.mxu0 0
        %1529 = vmatmul.mubr.bf16.gmra.mxu0 %v1491
        %v1530 = vpop.f32.mrf.mxu0
        %v1531 = vadd.f32 %v1489, %v1530
        %v1532 = vpop.f32.mrf.mxu0
        %v1533 = vpop.f32.mrf.mxu0
        %v1534 = vpop.f32.mrf.mxu0
        %1535 = vdwg.mxu0
        %v1537 = vsel %vm789, %v1462, 0
        %v1540 = vsel %vm789, %v1486, 0
        %1542 = vmatprep.subr.bf16.mxu0 0
        %1543 = vmatpush1.bf16.xpose.msra.mxu0 0
        %1544 = vmatprep.subr.bf16.mxu0 0
        %1545 = vmatpush1.bf16.xpose.msra.mxu0 0
        %1546 = vmatprep.subr.bf16.mxu0 0
        %1547 = vmatpush1.bf16.xpose.msra.mxu0 0
        %1548 = vmatprep.subr.bf16.mxu0 0
        %1549 = vmatpush1.bf16.xpose.msra.mxu0 0
        %1550 = vmatprep.subr.bf16.mxu0 0
        %1551 = vmatpush1.bf16.xpose.msra.mxu0 0
        %1552 = vmatprep.subr.bf16.mxu0 0
        %1553 = vmatpush1.bf16.xpose.msra.mxu0 0
        %1554 = vmatprep.subr.bf16.mxu0 0
        %1555 = vmatpush1.bf16.xpose.msra.mxu0 0
        %1556 = vmatprep.subr.bf16.mxu0 0
        %1557 = vmatpush1.bf16.xpose.msra.mxu0 %v1540
        %1558 = vmatprep.subr.bf16.mxu0 0
        %1559 = vmatpush2.bf16.xpose.msra.mxu0 0
        %1560 = vmatprep.subr.bf16.mxu0 0
        %1561 = vmatpush2.bf16.xpose.msra.mxu0 0
        %1562 = vmatprep.subr.bf16.mxu0 0
        %1563 = vmatpush2.bf16.xpose.msra.mxu0 0
        %1564 = vmatprep.subr.bf16.mxu0 0
        %1565 = vmatpush2.bf16.xpose.msra.mxu0 0
        %1566 = vmatprep.subr.bf16.mxu0 0
        %1567 = vmatpush2.bf16.xpose.msra.mxu0 0
        %1568 = vmatprep.subr.bf16.mxu0 0
        %1569 = vmatpush2.bf16.xpose.msra.mxu0 0
        %1570 = vmatprep.subr.bf16.mxu0 0
        %1571 = vmatpush2.bf16.xpose.msra.mxu0 0
        %1572 = vmatprep.subr.bf16.mxu0 0
        %1573 = vmatpush2.bf16.xpose.msra.mxu0 0
        %1574 = vmatprep.mubr.bf16.mxu0 0
        %1575 = vmatmul.mubr.bf16.gmra.mxu0 %v1537
        %v1576 = vpop.f32.mrf.mxu0
        %v1577 = vadd.f32 %v1489, %v1576
        %v1578 = vpop.f32.mrf.mxu0
        %v1579 = vpop.f32.mrf.mxu0
        %v1580 = vpop.f32.mrf.mxu0
        %1581 = vdwg.mxu0
        %v1583 = vsel %vm789, %v1463, 0
        %v1586 = vsel %vm789, %v1487, 0
        %1588 = vmatprep.subr.bf16.mxu0 0
        %1589 = vmatpush1.bf16.xpose.msra.mxu0 0
        %1590 = vmatprep.subr.bf16.mxu0 0
        %1591 = vmatpush1.bf16.xpose.msra.mxu0 0
        %1592 = vmatprep.subr.bf16.mxu0 0
        %1593 = vmatpush1.bf16.xpose.msra.mxu0 0
        %1594 = vmatprep.subr.bf16.mxu0 0
        %1595 = vmatpush1.bf16.xpose.msra.mxu0 0
        %1596 = vmatprep.subr.bf16.mxu0 0
        %1597 = vmatpush1.bf16.xpose.msra.mxu0 0
        %1598 = vmatprep.subr.bf16.mxu0 0
        %1599 = vmatpush1.bf16.xpose.msra.mxu0 0
        %1600 = vmatprep.subr.bf16.mxu0 0
        %1601 = vmatpush1.bf16.xpose.msra.mxu0 0
        %1602 = vmatprep.subr.bf16.mxu0 0
        %1603 = vmatpush1.bf16.xpose.msra.mxu0 %v1586
        %1604 = vmatprep.subr.bf16.mxu0 0
        %1605 = vmatpush2.bf16.xpose.msra.mxu0 0
        %1606 = vmatprep.subr.bf16.mxu0 0
        %1607 = vmatpush2.bf16.xpose.msra.mxu0 0
        %1608 = vmatprep.subr.bf16.mxu0 0
        %1609 = vmatpush2.bf16.xpose.msra.mxu0 0
        %1610 = vmatprep.subr.bf16.mxu0 0
        %1611 = vmatpush2.bf16.xpose.msra.mxu0 0
        %1612 = vmatprep.subr.bf16.mxu0 0
        %1613 = vmatpush2.bf16.xpose.msra.mxu0 0
        %1614 = vmatprep.subr.bf16.mxu0 0
        %1615 = vmatpush2.bf16.xpose.msra.mxu0 0
        %1616 = vmatprep.subr.bf16.mxu0 0
        %1617 = vmatpush2.bf16.xpose.msra.mxu0 0
        %1618 = vmatprep.subr.bf16.mxu0 0
        %1619 = vmatpush2.bf16.xpose.msra.mxu0 0
        %1620 = vmatprep.mubr.bf16.mxu0 0
        %1621 = vmatmul.mubr.bf16.gmra.mxu0 %v1583
        %v1622 = vpop.f32.mrf.mxu0
        %v1623 = vadd.f32 %v1489, %v1622
        %v1624 = vpop.f32.mrf.mxu0
        %v1625 = vpop.f32.mrf.mxu0
        %v1626 = vpop.f32.mrf.mxu0
        %1627 = vdwg.mxu0
        %v1629 = vsel %vm789, %v1464, 0
        %v1632 = vsel %vm789, %v1488, 0
        %1634 = vmatprep.subr.bf16.mxu0 0
        %1635 = vmatpush1.bf16.xpose.msra.mxu0 0
        %1636 = vmatprep.subr.bf16.mxu0 0
        %1637 = vmatpush1.bf16.xpose.msra.mxu0 0
        %1638 = vmatprep.subr.bf16.mxu0 0
        %1639 = vmatpush1.bf16.xpose.msra.mxu0 0
        %1640 = vmatprep.subr.bf16.mxu0 0
        %1641 = vmatpush1.bf16.xpose.msra.mxu0 0
        %1642 = vmatprep.subr.bf16.mxu0 0
        %1643 = vmatpush1.bf16.xpose.msra.mxu0 0
        %1644 = vmatprep.subr.bf16.mxu0 0
        %1645 = vmatpush1.bf16.xpose.msra.mxu0 0
        %1646 = vmatprep.subr.bf16.mxu0 0
        %1647 = vmatpush1.bf16.xpose.msra.mxu0 0
        %1648 = vmatprep.subr.bf16.mxu0 0
        %1649 = vmatpush1.bf16.xpose.msra.mxu0 %v1632
        %1650 = vmatprep.subr.bf16.mxu0 0
        %1651 = vmatpush2.bf16.xpose.msra.mxu0 0
        %1652 = vmatprep.subr.bf16.mxu0 0
        %1653 = vmatpush2.bf16.xpose.msra.mxu0 0
        %1654 = vmatprep.subr.bf16.mxu0 0
        %1655 = vmatpush2.bf16.xpose.msra.mxu0 0
        %1656 = vmatprep.subr.bf16.mxu0 0
        %1657 = vmatpush2.bf16.xpose.msra.mxu0 0
        %1658 = vmatprep.subr.bf16.mxu0 0
        %1659 = vmatpush2.bf16.xpose.msra.mxu0 0
        %1660 = vmatprep.subr.bf16.mxu0 0
        %1661 = vmatpush2.bf16.xpose.msra.mxu0 0
        %1662 = vmatprep.subr.bf16.mxu0 0
        %1663 = vmatpush2.bf16.xpose.msra.mxu0 0
        %1664 = vmatprep.subr.bf16.mxu0 0
        %1665 = vmatpush2.bf16.xpose.msra.mxu0 0
        %1666 = vmatprep.mubr.bf16.mxu0 0
        %1667 = vmatmul.mubr.bf16.gmra.mxu0 %v1629
        %v1668 = vpop.f32.mrf.mxu0
        %v1669 = vadd.f32 %v1489, %v1668
        %v1670 = vpop.f32.mrf.mxu0
        %v1671 = vpop.f32.mrf.mxu0
        %v1672 = vpop.f32.mrf.mxu0
        %1673 = vdwg.mxu0
        %v1674 = vmul.f32 %v1531, 0.35355338
        %v1675 = vmul.f32 %v1577, 0.35355338
        %v1676 = vmul.f32 %v1623, 0.35355338
        %v1677 = vmul.f32 %v1669, 0.35355338
        %v1678 = vsel %vm1241, %v1674, -inf
        %1679 = vmax.xlane.f32.xlu0 %v1678
        %v1680 = vpop.xlane.xlu0 %1679
        %v1681 = vsel %vm1241, %v1675, -inf
        %1682 = vmax.xlane.f32.xlu0 %v1681
        %v1683 = vpop.xlane.xlu0 %1682
        %v1684 = vsel %vm1241, %v1676, -inf
        %1685 = vmax.xlane.f32.xlu0 %v1684
        %v1686 = vpop.xlane.xlu0 %1685
        %v1687 = vsel %vm1241, %v1677, -inf
        %1688 = vmax.xlane.f32.xlu0 %v1687
        %v1689 = vpop.xlane.xlu0 %1688
        %v1690 = vsub.f32 %v1674, %v1680
        %v1691 = vsub.f32 %v1675, %v1683
        %v1692 = vsub.f32 %v1676, %v1686
        %v1693 = vsub.f32 %v1677, %v1689
        %v1694 = vmul.f32 %v1690, 1.442695
        %v1695 = vpow.pop %v1694
        %v1696 = vmul.f32 %v1691, 1.442695
        %v1697 = vpow.pop %v1696
        %v1698 = vmul.f32 %v1692, 1.442695
        %v1699 = vpow.pop %v1698
        %v1700 = vmul.f32 %v1693, 1.442695
        %v1701 = vpow.pop %v1700
        %v1702 = vsel %vm1241, %v1695, 0.0
        %1703 = vadd.xlane.f32.xlu0 %v1702
        %v1704 = vpop.xlane.xlu0 %1703
        %v1705 = vsel %vm1241, %v1697, 0.0
        %1706 = vadd.xlane.f32.xlu0 %v1705
        %v1707 = vpop.xlane.xlu0 %1706
        %v1708 = vsel %vm1241, %v1699, 0.0
        %1709 = vadd.xlane.f32.xlu0 %v1708
        %v1710 = vpop.xlane.xlu0 %1709
        %v1711 = vsel %vm1241, %v1701, 0.0
        %1712 = vadd.xlane.f32.xlu0 %v1711
        %v1713 = vpop.xlane.xlu0 %1712
        %v1714 = vrcp.pop %v1704
        %v1715 = vrcp.pop %v1707
        %v1716 = vrcp.pop %v1710
        %v1717 = vrcp.pop %v1713
        %v1718 = vmul.f32 %v1695, %v1714
        %v1719 = vmul.f32 %v1697, %v1715
        %v1720 = vmul.f32 %v1699, %v1716
        %v1721 = vmul.f32 %v1701, %v1717
        %v1722 = vpack.c.bf16 %v1718, %v1718
        %v1723 = vpack.c.bf16 %v1719, %v1719
        %v1724 = vpack.c.bf16 %v1720, %v1720
        %v1725 = vpack.c.bf16 %v1721, %v1721
        %1727 = vrot.lane.b32.xlu0 %v1485, 96
        %v1728 = vpop.permute.xlu0 %1727
        %v1731 = vsel %vm1241, %v1722, 0
        %1733 = vmatprep.subr.bf16.mxu0 0
        %1734 = vmatpush1.bf16.msra.mxu0 0
        %1735 = vmatprep.subr.bf16.mxu0 0
        %1736 = vmatpush1.bf16.msra.mxu0 0
        %1737 = vmatprep.subr.bf16.mxu0 0
        %1738 = vmatpush1.bf16.msra.mxu0 0
        %1739 = vmatprep.subr.bf16.mxu0 0
        %1740 = vmatpush1.bf16.msra.mxu0 0
        %1741 = vmatprep.subr.bf16.mxu0 0
        %1742 = vmatpush1.bf16.msra.mxu0 0
        %1743 = vmatprep.subr.bf16.mxu0 0
        %1744 = vmatpush1.bf16.msra.mxu0 0
        %1745 = vmatprep.subr.bf16.mxu0 0
        %1746 = vmatpush1.bf16.msra.mxu0 0
        %1747 = vmatprep.subr.bf16.mxu0 0
        %1748 = vmatpush1.bf16.msra.mxu0 %v1728
        %1749 = vmatprep.subr.bf16.mxu0 0
        %1750 = vmatpush2.bf16.msra.mxu0 0
        %1751 = vmatprep.subr.bf16.mxu0 0
        %1752 = vmatpush2.bf16.msra.mxu0 0
        %1753 = vmatprep.subr.bf16.mxu0 0
        %1754 = vmatpush2.bf16.msra.mxu0 0
        %1755 = vmatprep.subr.bf16.mxu0 0
        %1756 = vmatpush2.bf16.msra.mxu0 0
        %1757 = vmatprep.subr.bf16.mxu0 0
        %1758 = vmatpush2.bf16.msra.mxu0 0
        %1759 = vmatprep.subr.bf16.mxu0 0
        %1760 = vmatpush2.bf16.msra.mxu0 0
        %1761 = vmatprep.subr.bf16.mxu0 0
        %1762 = vmatpush2.bf16.msra.mxu0 0
        %1763 = vmatprep.subr.bf16.mxu0 0
        %1764 = vmatpush2.bf16.msra.mxu0 0
        %1765 = vmatprep.mubr.bf16.mxu0 0
        %1766 = vmatmul.mubr.bf16.gmra.mxu0 %v1731
        %v1767 = vpop.f32.mrf.mxu0
        %v1768 = vadd.f32 0.0, %v1767
        %v1769 = vpop.f32.mrf.mxu0
        %v1770 = vpop.f32.mrf.mxu0
        %v1771 = vpop.f32.mrf.mxu0
        %1772 = vdwg.mxu0
        %1774 = vrot.lane.b32.xlu0 %v1486, 96
        %v1775 = vpop.permute.xlu0 %1774
        %v1778 = vsel %vm1241, %v1723, 0
        %1780 = vmatprep.subr.bf16.mxu0 0
        %1781 = vmatpush1.bf16.msra.mxu0 0
        %1782 = vmatprep.subr.bf16.mxu0 0
        %1783 = vmatpush1.bf16.msra.mxu0 0
        %1784 = vmatprep.subr.bf16.mxu0 0
        %1785 = vmatpush1.bf16.msra.mxu0 0
        %1786 = vmatprep.subr.bf16.mxu0 0
        %1787 = vmatpush1.bf16.msra.mxu0 0
        %1788 = vmatprep.subr.bf16.mxu0 0
        %1789 = vmatpush1.bf16.msra.mxu0 0
        %1790 = vmatprep.subr.bf16.mxu0 0
        %1791 = vmatpush1.bf16.msra.mxu0 0
        %1792 = vmatprep.subr.bf16.mxu0 0
        %1793 = vmatpush1.bf16.msra.mxu0 0
        %1794 = vmatprep.subr.bf16.mxu0 0
        %1795 = vmatpush1.bf16.msra.mxu0 %v1775
        %1796 = vmatprep.subr.bf16.mxu0 0
        %1797 = vmatpush2.bf16.msra.mxu0 0
        %1798 = vmatprep.subr.bf16.mxu0 0
        %1799 = vmatpush2.bf16.msra.mxu0 0
        %1800 = vmatprep.subr.bf16.mxu0 0
        %1801 = vmatpush2.bf16.msra.mxu0 0
        %1802 = vmatprep.subr.bf16.mxu0 0
        %1803 = vmatpush2.bf16.msra.mxu0 0
        %1804 = vmatprep.subr.bf16.mxu0 0
        %1805 = vmatpush2.bf16.msra.mxu0 0
        %1806 = vmatprep.subr.bf16.mxu0 0
        %1807 = vmatpush2.bf16.msra.mxu0 0
        %1808 = vmatprep.subr.bf16.mxu0 0
        %1809 = vmatpush2.bf16.msra.mxu0 0
        %1810 = vmatprep.subr.bf16.mxu0 0
        %1811 = vmatpush2.bf16.msra.mxu0 0
        %1812 = vmatprep.mubr.bf16.mxu0 0
        %1813 = vmatmul.mubr.bf16.gmra.mxu0 %v1778
        %v1814 = vpop.f32.mrf.mxu0
        %v1815 = vadd.f32 0.0, %v1814
        %v1816 = vpop.f32.mrf.mxu0
        %v1817 = vpop.f32.mrf.mxu0
        %v1818 = vpop.f32.mrf.mxu0
        %1819 = vdwg.mxu0
        %1821 = vrot.lane.b32.xlu0 %v1487, 96
        %v1822 = vpop.permute.xlu0 %1821
        %v1825 = vsel %vm1241, %v1724, 0
        %1827 = vmatprep.subr.bf16.mxu0 0
        %1828 = vmatpush1.bf16.msra.mxu0 0
        %1829 = vmatprep.subr.bf16.mxu0 0
        %1830 = vmatpush1.bf16.msra.mxu0 0
        %1831 = vmatprep.subr.bf16.mxu0 0
        %1832 = vmatpush1.bf16.msra.mxu0 0
        %1833 = vmatprep.subr.bf16.mxu0 0
        %1834 = vmatpush1.bf16.msra.mxu0 0
        %1835 = vmatprep.subr.bf16.mxu0 0
        %1836 = vmatpush1.bf16.msra.mxu0 0
        %1837 = vmatprep.subr.bf16.mxu0 0
        %1838 = vmatpush1.bf16.msra.mxu0 0
        %1839 = vmatprep.subr.bf16.mxu0 0
        %1840 = vmatpush1.bf16.msra.mxu0 0
        %1841 = vmatprep.subr.bf16.mxu0 0
        %1842 = vmatpush1.bf16.msra.mxu0 %v1822
        %1843 = vmatprep.subr.bf16.mxu0 0
        %1844 = vmatpush2.bf16.msra.mxu0 0
        %1845 = vmatprep.subr.bf16.mxu0 0
        %1846 = vmatpush2.bf16.msra.mxu0 0
        %1847 = vmatprep.subr.bf16.mxu0 0
        %1848 = vmatpush2.bf16.msra.mxu0 0
        %1849 = vmatprep.subr.bf16.mxu0 0
        %1850 = vmatpush2.bf16.msra.mxu0 0
        %1851 = vmatprep.subr.bf16.mxu0 0
        %1852 = vmatpush2.bf16.msra.mxu0 0
        %1853 = vmatprep.subr.bf16.mxu0 0
        %1854 = vmatpush2.bf16.msra.mxu0 0
        %1855 = vmatprep.subr.bf16.mxu0 0
        %1856 = vmatpush2.bf16.msra.mxu0 0
        %1857 = vmatprep.subr.bf16.mxu0 0
        %1858 = vmatpush2.bf16.msra.mxu0 0
        %1859 = vmatprep.mubr.bf16.mxu0 0
        %1860 = vmatmul.mubr.bf16.gmra.mxu0 %v1825
        %v1861 = vpop.f32.mrf.mxu0
        %v1862 = vadd.f32 0.0, %v1861
        %v1863 = vpop.f32.mrf.mxu0
        %v1864 = vpop.f32.mrf.mxu0
        %v1865 = vpop.f32.mrf.mxu0
        %1866 = vdwg.mxu0
        %1868 = vrot.lane.b32.xlu0 %v1488, 96
        %v1869 = vpop.permute.xlu0 %1868
        %v1872 = vsel %vm1241, %v1725, 0
        %1874 = vmatprep.subr.bf16.mxu0 0
        %1875 = vmatpush1.bf16.msra.mxu0 0
        %1876 = vmatprep.subr.bf16.mxu0 0
        %1877 = vmatpush1.bf16.msra.mxu0 0
        %1878 = vmatprep.subr.bf16.mxu0 0
        %1879 = vmatpush1.bf16.msra.mxu0 0
        %1880 = vmatprep.subr.bf16.mxu0 0
        %1881 = vmatpush1.bf16.msra.mxu0 0
        %1882 = vmatprep.subr.bf16.mxu0 0
        %1883 = vmatpush1.bf16.msra.mxu0 0
        %1884 = vmatprep.subr.bf16.mxu0 0
        %1885 = vmatpush1.bf16.msra.mxu0 0
        %1886 = vmatprep.subr.bf16.mxu0 0
        %1887 = vmatpush1.bf16.msra.mxu0 0
        %1888 = vmatprep.subr.bf16.mxu0 0
        %1889 = vmatpush1.bf16.msra.mxu0 %v1869
        %1890 = vmatprep.subr.bf16.mxu0 0
        %1891 = vmatpush2.bf16.msra.mxu0 0
        %1892 = vmatprep.subr.bf16.mxu0 0
        %1893 = vmatpush2.bf16.msra.mxu0 0
        %1894 = vmatprep.subr.bf16.mxu0 0
        %1895 = vmatpush2.bf16.msra.mxu0 0
        %1896 = vmatprep.subr.bf16.mxu0 0
        %1897 = vmatpush2.bf16.msra.mxu0 0
        %1898 = vmatprep.subr.bf16.mxu0 0
        %1899 = vmatpush2.bf16.msra.mxu0 0
        %1900 = vmatprep.subr.bf16.mxu0 0
        %1901 = vmatpush2.bf16.msra.mxu0 0
        %1902 = vmatprep.subr.bf16.mxu0 0
        %1903 = vmatpush2.bf16.msra.mxu0 0
        %1904 = vmatprep.subr.bf16.mxu0 0
        %1905 = vmatpush2.bf16.msra.mxu0 0
        %1906 = vmatprep.mubr.bf16.mxu0 0
        %1907 = vmatmul.mubr.bf16.gmra.mxu0 %v1872
        %v1908 = vpop.f32.mrf.mxu0
        %v1909 = vadd.f32 0.0, %v1908
        %v1910 = vpop.f32.mrf.mxu0
        %v1911 = vpop.f32.mrf.mxu0
        %v1912 = vpop.f32.mrf.mxu0
        %1913 = vdwg.mxu0
        %1915 = vrot.lane.b32.xlu0 %v1815, 8
        %v1916 = vpop.permute.xlu0 %1915
        %1919 = vrot.lane.b32.xlu0 %v1862, 16
        %v1920 = vpop.permute.xlu0 %1919
        %1923 = vrot.lane.b32.xlu0 %v1909, 24
        %v1924 = vpop.permute.xlu0 %1923
        %v1926 = vsel %vm789, %v1768, %v1916
        %v1927 = vsel %vm1241, %v1926, %v1920
        %v1928 = vsel %vm1243, %v1927, %v1924
        %v1929 = vpack.c.bf16 %v1928, %v1928
        %v1934 = vunpack.c.l.b16 %v1340
        %v1935 = vunpack.c.l.b16 %v1341
        %v1936 = vunpack.c.l.b16 %v1342
        %v1937 = vunpack.c.l.b16 %v1343
        %v1938 = vpack.c.b16 %v1935, %v1934
        %v1939 = vpack.c.b16 %v1937, %v1936
        %v1943 = vsel %vm727, %v1929, 0
        %1945 = vmatprep.subr.bf16.mxu0 0
        %1946 = vmatpush1.bf16.msra.mxu0 0
        %1947 = vmatprep.subr.bf16.mxu0 0
        %1948 = vmatpush1.bf16.msra.mxu0 0
        %1949 = vmatprep.subr.bf16.mxu0 0
        %1950 = vmatpush1.bf16.msra.mxu0 0
        %1951 = vmatprep.subr.bf16.mxu0 0
        %1952 = vmatpush1.bf16.msra.mxu0 0
        %1953 = vmatprep.subr.bf16.mxu0 0
        %1954 = vmatpush1.bf16.msra.mxu0 0
        %1955 = vmatprep.subr.bf16.mxu0 0
        %1956 = vmatpush1.bf16.msra.mxu0 0
        %1957 = vmatprep.subr.bf16.mxu0 0
        %1958 = vmatpush1.bf16.msra.mxu0 %v1939
        %1959 = vmatprep.subr.bf16.mxu0 0
        %1960 = vmatpush1.bf16.msra.mxu0 %v1938
        %1961 = vmatprep.subr.bf16.mxu0 0
        %1962 = vmatpush2.bf16.msra.mxu0 0
        %1963 = vmatprep.subr.bf16.mxu0 0
        %1964 = vmatpush2.bf16.msra.mxu0 0
        %1965 = vmatprep.subr.bf16.mxu0 0
        %1966 = vmatpush2.bf16.msra.mxu0 0
        %1967 = vmatprep.subr.bf16.mxu0 0
        %1968 = vmatpush2.bf16.msra.mxu0 0
        %1969 = vmatprep.subr.bf16.mxu0 0
        %1970 = vmatpush2.bf16.msra.mxu0 0
        %1971 = vmatprep.subr.bf16.mxu0 0
        %1972 = vmatpush2.bf16.msra.mxu0 0
        %1973 = vmatprep.subr.bf16.mxu0 0
        %1974 = vmatpush2.bf16.msra.mxu0 0
        %1975 = vmatprep.subr.bf16.mxu0 0
        %1976 = vmatpush2.bf16.msra.mxu0 0
        %1977 = vmatprep.mubr.bf16.mxu0 0
        %1978 = vmatmul.mubr.bf16.gmra.mxu0 %v1943
        %v1979 = vpop.f32.mrf.mxu0
        %v1980 = vadd.f32 0.0, %v1979
        %v1981 = vpop.f32.mrf.mxu0
        %v1982 = vpop.f32.mrf.mxu0
        %v1983 = vpop.f32.mrf.mxu0
        %1984 = vdwg.mxu0
        %1985 = vst.msk [vmem:[%s678] sm:$0xff] %vm1241, %v1718
        %1986 = vst.msk [vmem:[%s678 + $0x8] sm:$0xff] %vm1241, %v1719
        %1987 = vst.msk [vmem:[%s678 + $0x10] sm:$0xff] %vm1241, %v1720
        %1988 = vst.msk [vmem:[%s678 + $0x18] sm:$0xff] %vm1241, %v1721
        %v1989 = vld [vmem:[%s10] sm:$0x1]
        %v1990 = vld [vmem:[%s11] sm:$0x1]
        %v1991 = vadd.f32 %v1335, %v1980
        %v1992 = vsel %vm727, %v1991, 0.0
        %1993 = vadd.xlane.f32.xlu0 %v1992
        %v1994 = vpop.xlane.xlu0 %1993
        %v1995 = vmul.f32 %v1994, %v1311
        %v1996 = vsub.f32 %v1991, %v1995
        %v1997 = vmul.f32 %v1996, %v1996
        %v1998 = vsel %vm727, %v1997, 0.0
        %1999 = vadd.xlane.f32.xlu0 %v1998
        %v2000 = vpop.xlane.xlu0 %1999
        %v2001 = vmul.f32 %v2000, %v1311
        %v2002 = vadd.f32 %v2001, 1e-05
        %v2003 = vrsqrt.pop %v2002
        %v2004 = vmul.f32 %v1996, %v2003
        %v2006 = vlaneseq
        %v2007 = vshrl.u32 %v2006, 7
        %v2008 = vsub.s32 0, %v2007
        %v2009 = vrot.slane %v1989, %v2008
        %v2011 = vmul.f32 %v2004, %v2009
        %v2013 = vlaneseq
        %v2014 = vshrl.u32 %v2013, 7
        %v2015 = vsub.s32 0, %v2014
        %v2016 = vrot.slane %v1990, %v2015
        %v2018 = vadd.f32 %v2011, %v2016
        %v2019 = vld [vmem:[%s12] sm:$0xf]
        %v2020 = vld [vmem:[%s12 + $0x4] sm:$0xf]
        %v2021 = vld [vmem:[%s12 + $0x8] sm:$0xf]
        %v2022 = vld [vmem:[%s12 + $0xc] sm:$0xf]
        %v2023 = vld [vmem:[%s13] sm:$0x1]
        %v2024 = vld [vmem:[%s14] sm:$0xf]
        %v2025 = vld [vmem:[%s14 + $0x4] sm:$0xf]
        %v2026 = vld [vmem:[%s14 + $0x8] sm:$0xf]
        %v2027 = vld [vmem:[%s14 + $0xc] sm:$0xf]
        %v2028 = vld [vmem:[%s14 + $0x10] sm:$0xf]
        %v2029 = vld [vmem:[%s14 + $0x14] sm:$0xf]
        %v2030 = vld [vmem:[%s14 + $0x18] sm:$0xf]
        %v2031 = vld [vmem:[%s14 + $0x1c] sm:$0xf]
        %v2032 = vld [vmem:[%s15] sm:$0x1]
        %v2033 = vpack.c.bf16 %v2018, %v2018
        %v2035 = vlaneseq
        %v2036 = vshrl.u32 %v2035, 7
        %v2037 = vsub.s32 0, %v2036
        %v2038 = vrot.slane %v2023, %v2037
        %v2044 = vunpack.c.l.b16 %v2019
        %v2045 = vunpack.c.l.b16 %v2020
        %v2046 = vunpack.c.l.b16 %v2021
        %v2047 = vunpack.c.l.b16 %v2022
        %v2048 = vpack.c.b16 %v2045, %v2044
        %v2049 = vpack.c.b16 %v2047, %v2046
        %v2053 = vsel %vm727, %v2033, 0
        %2055 = vmatprep.subr.bf16.mxu0 0
        %2056 = vmatpush1.bf16.msra.mxu0 0
        %2057 = vmatprep.subr.bf16.mxu0 0
        %2058 = vmatpush1.bf16.msra.mxu0 0
        %2059 = vmatprep.subr.bf16.mxu0 0
        %2060 = vmatpush1.bf16.msra.mxu0 0
        %2061 = vmatprep.subr.bf16.mxu0 0
        %2062 = vmatpush1.bf16.msra.mxu0 0
        %2063 = vmatprep.subr.bf16.mxu0 0
        %2064 = vmatpush1.bf16.msra.mxu0 0
        %2065 = vmatprep.subr.bf16.mxu0 0
        %2066 = vmatpush1.bf16.msra.mxu0 0
        %2067 = vmatprep.subr.bf16.mxu0 0
        %2068 = vmatpush1.bf16.msra.mxu0 %v2049
        %2069 = vmatprep.subr.bf16.mxu0 0
        %2070 = vmatpush1.bf16.msra.mxu0 %v2048
        %2071 = vmatprep.subr.bf16.mxu0 0
        %2072 = vmatpush2.bf16.msra.mxu0 0
        %2073 = vmatprep.subr.bf16.mxu0 0
        %2074 = vmatpush2.bf16.msra.mxu0 0
        %2075 = vmatprep.subr.bf16.mxu0 0
        %2076 = vmatpush2.bf16.msra.mxu0 0
        %2077 = vmatprep.subr.bf16.mxu0 0
        %2078 = vmatpush2.bf16.msra.mxu0 0
        %2079 = vmatprep.subr.bf16.mxu0 0
        %2080 = vmatpush2.bf16.msra.mxu0 0
        %2081 = vmatprep.subr.bf16.mxu0 0
        %2082 = vmatpush2.bf16.msra.mxu0 0
        %2083 = vmatprep.subr.bf16.mxu0 0
        %2084 = vmatpush2.bf16.msra.mxu0 0
        %2085 = vmatprep.subr.bf16.mxu0 0
        %2086 = vmatpush2.bf16.msra.mxu0 0
        %2087 = vmatprep.mubr.bf16.mxu0 0
        %2088 = vmatmul.mubr.bf16.gmra.mxu0 %v2053
        %v2089 = vpop.f32.mrf.mxu0
        %v2090 = vadd.f32 %v2038, %v2089
        %v2091 = vpop.f32.mrf.mxu0
        %v2092 = vpop.f32.mrf.mxu0
        %v2093 = vpop.f32.mrf.mxu0
        %2094 = vdwg.mxu0
        %v2095 = vmax.f32 %v2090, 0.0
        %v2096 = vpack.c.bf16 %v2095, %v2095
        %v2098 = vlaneseq
        %v2099 = vshrl.u32 %v2098, 7
        %v2100 = vsub.s32 0, %v2099
        %v2101 = vrot.slane %v2032, %v2100
        %v2111 = vunpack.c.l.b16 %v2024
        %v2112 = vunpack.c.l.b16 %v2025
        %v2113 = vunpack.c.l.b16 %v2026
        %v2114 = vunpack.c.l.b16 %v2027
        %v2115 = vunpack.c.l.b16 %v2028
        %v2116 = vunpack.c.l.b16 %v2029
        %v2117 = vunpack.c.l.b16 %v2030
        %v2118 = vunpack.c.l.b16 %v2031
        %v2119 = vpack.c.b16 %v2112, %v2111
        %v2120 = vpack.c.b16 %v2114, %v2113
        %v2121 = vpack.c.b16 %v2116, %v2115
        %v2122 = vpack.c.b16 %v2118, %v2117
        %vm2127 = vcmask 523264
        %v2129 = vsel %vm2127, %v2096, 0
        %2131 = vmatprep.subr.bf16.mxu0 0
        %2132 = vmatpush1.bf16.msra.mxu0 0
        %2133 = vmatprep.subr.bf16.mxu0 0
        %2134 = vmatpush1.bf16.msra.mxu0 0
        %2135 = vmatprep.subr.bf16.mxu0 0
        %2136 = vmatpush1.bf16.msra.mxu0 0
        %2137 = vmatprep.subr.bf16.mxu0 0
        %2138 = vmatpush1.bf16.msra.mxu0 0
        %2139 = vmatprep.subr.bf16.mxu0 0
        %2140 = vmatpush1.bf16.msra.mxu0 %v2122
        %2141 = vmatprep.subr.bf16.mxu0 0
        %2142 = vmatpush1.bf16.msra.mxu0 %v2121
        %2143 = vmatprep.subr.bf16.mxu0 0
        %2144 = vmatpush1.bf16.msra.mxu0 %v2120
        %2145 = vmatprep.subr.bf16.mxu0 0
        %2146 = vmatpush1.bf16.msra.mxu0 %v2119
        %2147 = vmatprep.subr.bf16.mxu0 0
        %2148 = vmatpush2.bf16.msra.mxu0 0
        %2149 = vmatprep.subr.bf16.mxu0 0
        %2150 = vmatpush2.bf16.msra.mxu0 0
        %2151 = vmatprep.subr.bf16.mxu0 0
        %2152 = vmatpush2.bf16.msra.mxu0 0
        %2153 = vmatprep.subr.bf16.mxu0 0
        %2154 = vmatpush2.bf16.msra.mxu0 0
        %2155 = vmatprep.subr.bf16.mxu0 0
        %2156 = vmatpush2.bf16.msra.mxu0 0
        %2157 = vmatprep.subr.bf16.mxu0 0
        %2158 = vmatpush2.bf16.msra.mxu0 0
        %2159 = vmatprep.subr.bf16.mxu0 0
        %2160 = vmatpush2.bf16.msra.mxu0 0
        %2161 = vmatprep.subr.bf16.mxu0 0
        %2162 = vmatpush2.bf16.msra.mxu0 0
        %2163 = vmatprep.mubr.bf16.mxu0 0
        %2164 = vmatmul.mubr.bf16.gmra.mxu0 %v2129
        %v2165 = vpop.f32.mrf.mxu0
        %v2166 = vadd.f32 %v2101, %v2165
        %v2167 = vpop.f32.mrf.mxu0
        %v2168 = vpop.f32.mrf.mxu0
        %v2169 = vpop.f32.mrf.mxu0
        %2170 = vdwg.mxu0
        %v2171 = vld [vmem:[%s16] sm:$0x1]
        %v2172 = vld [vmem:[%s17] sm:$0x1]
        %v2173 = vadd.f32 %v2018, %v2166
        %v2174 = vsel %vm727, %v2173, 0.0
        %2175 = vadd.xlane.f32.xlu0 %v2174
        %v2176 = vpop.xlane.xlu0 %2175
        %v2177 = vmul.f32 %v2176, %v1311
        %v2178 = vsub.f32 %v2173, %v2177
        %v2179 = vmul.f32 %v2178, %v2178
        %v2180 = vsel %vm727, %v2179, 0.0
        %2181 = vadd.xlane.f32.xlu0 %v2180
        %v2182 = vpop.xlane.xlu0 %2181
        %v2183 = vmul.f32 %v2182, %v1311
        %v2184 = vadd.f32 %v2183, 1e-05
        %v2185 = vrsqrt.pop %v2184
        %v2186 = vmul.f32 %v2178, %v2185
        %v2188 = vlaneseq
        %v2189 = vshrl.u32 %v2188, 7
        %v2190 = vsub.s32 0, %v2189
        %v2191 = vrot.slane %v2171, %v2190
        %v2193 = vmul.f32 %v2186, %v2191
        %v2195 = vlaneseq
        %v2196 = vshrl.u32 %v2195, 7
        %v2197 = vsub.s32 0, %v2196
        %v2198 = vrot.slane %v2172, %v2197
        %v2200 = vadd.f32 %v2193, %v2198
        %2201 = vst.msk [vmem:[%s699] sm:$0xff] %vm727, %v2200
        %p2202 = scmp.lt.s32.totalorder %s38, 1
        %s2203 = scalar_select %p2202, %s38, 1
        %s2204 = smul.addr %s2203, 8
        %s2205 = scalar_lea.vmem %s18, %s2204
        %s2206 = sand.u32 %s470, 1
        %s2207 = scalar_lea.sflag [#allocation3], %s2206
        %s2208 = sand.u32 %s470, 1
        %s2209 = smul.addr %s2208, 32
        %s2210 = scalar_lea.vmem [#allocation2], %s2209
        %s2211 = sand.u32 %s496, 1
        %s2212 = scalar_lea.sflag [#allocation5], %s2211
        %s2213 = sand.u32 %s496, 1
        %s2214 = smul.addr %s2213, 32
        %s2215 = scalar_lea.vmem [#allocation4], %s2214
        // Predicated region
        $region93: #{_lambda_.7} parent=91 // pred_check
          %p2216 = pneg %p454
        $region94: #{_lambda_.7} parent=91 // pred_check_branch
          %2218 = sbr.rel (%p2216) target = $region96
        $region95: #{_lambda_.7} parent=91 // pred_region
          _
        $region96: #{_lambda_.7} parent=91 // pred_fallthru
          _
        // Predicated region
        $region97: #{_lambda_.7} parent=91 // pred_check
          %p2219 = pneg %p480
        $region98: #{_lambda_.7} parent=91 // pred_check_branch
          %2221 = sbr.rel (%p2219) target = $region100
        $region99: #{_lambda_.7} parent=91 // pred_region
          %s2223 = ssub.s32 512, 512
          %2224 = vsyncadd %s2207, %s2223
          %s2225 = smul.addr %s38, 4
          %s2226 = smul.addr %s2225, 128
          %s2227 = scalar_lea.hbm %s19, %s2226
          %s2228 = sshll.u32 %s2210, 4
          %s2229 = int_to_ptr.vmem [resolvable:$true] %s2228
          %2234 = dma.vmem_to_hbm [thread:$0]  %s2229, 512, %s2227, %s2207, 128, 128, 8
        $region100: #{_lambda_.7} parent=91 // pred_fallthru
          _
        // Predicated region
        $region101: #{_lambda_.7} parent=91 // pred_check
          %p2235 = pneg %p506
        $region102: #{_lambda_.7} parent=91 // pred_check_branch
          %2237 = sbr.rel (%p2235) target = $region104
        $region103: #{_lambda_.7} parent=91 // pred_region
          %s2239 = ssub.s32 512, 512
          %2240 = vsyncadd %s2212, %s2239
          %s2241 = smul.addr %s38, 4
          %s2242 = smul.addr %s2241, 128
          %s2243 = scalar_lea.hbm %s20, %s2242
          %s2244 = sshll.u32 %s2215, 4
          %s2245 = int_to_ptr.vmem [resolvable:$true] %s2244
          %2250 = dma.vmem_to_hbm [thread:$0]  %s2245, 512, %s2243, %s2212, 128, 128, 8
        $region104: #{_lambda_.7} parent=91 // pred_fallthru
          _
      $region92: #{_lambda_.7} parent=5 // pred_fallthru
        _
      %p2251 = scmp.le.s32.totalorder 2, %s33
      // Predicated region
      $region105: #{_lambda_.7} parent=5 // pred_check
        %p2252 = pneg %p2251
      $region106: #{_lambda_.7} parent=5 // pred_check_branch
        %2254 = sbr.rel (%p2252) target = $region108
      $region107: #{_lambda_.7} parent=5 // pred_region
        %s2255 = ssub.s32 %s33, 2
        // Predicated region
        $region109: #{_lambda_.7} parent=107 // pred_check
          %p2256 = pneg %p460
        $region110: #{_lambda_.7} parent=107 // pred_check_branch
          %2258 = sbr.rel (%p2256) target = $region112
        $region111: #{_lambda_.7} parent=107 // pred_region
          %p2259 = scmp.lt.s32.totalorder %s39, 1
          %s2260 = scalar_select %p2259, %s39, 1
          %s2261 = smul.addr %s2260, 8
          %s2262 = scalar_lea.vmem %s18, %s2261
        $region112: #{_lambda_.7} parent=107 // pred_fallthru
          _
        // Predicated region
        $region113: #{_lambda_.7} parent=107 // pred_check
          %p2263 = pneg %p486
        $region114: #{_lambda_.7} parent=107 // pred_check_branch
          %2265 = sbr.rel (%p2263) target = $region116
        $region115: #{_lambda_.7} parent=107 // pred_region
          %s2266 = sand.u32 %s471, 1
          %s2267 = scalar_lea.sflag [#allocation3], %s2266
          %s2268 = sand.u32 %s471, 1
          %s2269 = smul.addr %s2268, 32
          %s2270 = scalar_lea.vmem [#allocation2], %s2269
          %2271 = dma.done %s2267, 512
        $region116: #{_lambda_.7} parent=107 // pred_fallthru
          _
        // Predicated region
        $region117: #{_lambda_.7} parent=107 // pred_check
          %p2272 = pneg %p512
        $region118: #{_lambda_.7} parent=107 // pred_check_branch
          %2274 = sbr.rel (%p2272) target = $region120
        $region119: #{_lambda_.7} parent=107 // pred_region
          %s2275 = sand.u32 %s497, 1
          %s2276 = scalar_lea.sflag [#allocation5], %s2275
          %s2277 = sand.u32 %s497, 1
          %s2278 = smul.addr %s2277, 32
          %s2279 = scalar_lea.vmem [#allocation4], %s2278
          %2280 = dma.done %s2276, 512
        $region120: #{_lambda_.7} parent=107 // pred_fallthru
          _
      $region108: #{_lambda_.7} parent=5 // pred_fallthru
        _
    $region6: #{_lambda_.7} parent=1 // loop_footer
      %s37 = sadd.s32 1, %s33
    $region7: #{_lambda_.7} parent=1 // loop_footer_branch
      %32 = sbr.rel target = $region3
    $region8: #{_lambda_.7} parent=1 // loop_exit
      _
    %2281 = vsyncpa [#allocation3], 1
    %s2282 = scalar_lea.sflag [#allocation3], 1
    %2283 = vsyncpa %s2282, 1
    %2284 = vsyncpa [#allocation5], 1
    %s2285 = scalar_lea.sflag [#allocation5], 1
    %2286 = vsyncpa %s2285, 1

</llo_original>
